<compile_context>
chip_gen: v5e
topology: v5e:2x2
jax: 0.10.0
libtpu: 0.0.40
codegen_flags: <defaults>
</compile_context>

<pallas_src>
import functools

import jax
import jax.numpy as jnp
from jax.experimental import pallas as pl
from jax.experimental.pallas import tpu as pltpu


# ---------------------------------------------------------------------------
# Kernel
# ---------------------------------------------------------------------------
def _reduced_lissom_kernel(
    x_ref, wa_ref, wc_ref, o_ref,
    *, offset, settling_steps, n_chains, rows_per_chain,
):
    """One batch tile. Weights have strengths and 1/(max-min) pre-folded.

    x_ref : [tb, in_features]            (compute dtype, e.g. bf16)
    wa_ref: [in_features, out_features]  (whole array, VMEM resident)
    wc_ref: [out_features, out_features] (whole array, VMEM resident)
    o_ref : [tb, out_features]           f32
    """
    wa = wa_ref[...]
    wc = wc_ref[...]
    rec_dtype = wc_ref.dtype

    # Afferent pass + first activation, per independent sub-chain.
    affs = []
    ys = []
    for c in range(n_chains):
        r0 = c * rows_per_chain
        xc = x_ref[r0:r0 + rows_per_chain, :]
        aff = jnp.dot(xc, wa, preferred_element_type=jnp.float32)
        affs.append(aff)
        ys.append(jnp.clip(aff - offset, 0.0, 1.0))

    # Settling loop: fully unrolled (static trip count). The n_chains sub-chains are
    # independent, so the scheduler can co-issue one chain's vmatmul with the other
    # chain's VPU clip/cast.
    for _ in range(settling_steps):
        ys_new = []
        for c in range(n_chains):
            y = ys[c]
            if rec_dtype != jnp.float32:
                y = y.astype(rec_dtype)
            s = affs[c] + jnp.dot(y, wc, preferred_element_type=jnp.float32)
            ys_new.append(jnp.clip(s - offset, 0.0, 1.0))
        ys = ys_new

    # Lane-dense stores, once per kernel invocation.
    for c in range(n_chains):
        r0 = c * rows_per_chain
        o_ref[r0:r0 + rows_per_chain, :] = ys[c].astype(o_ref.dtype)


# ---------------------------------------------------------------------------
# Weight / parameter preparation (do once per set of weights, not per call)
# ---------------------------------------------------------------------------
def prepare_reduced_lissom_params(
    w_aff, w_exc, w_inh,
    *, min_theta=0.0, max_theta=1.0,
    afferent_strength=1.0, excitatory_strength=1.0, inhibitory_strength=1.0,
    weight_dtype=jnp.bfloat16,
):
    """w_*: torch.nn.Linear layout [out_features, in_features].

    Returns (wa_t, w_comb, offset) with strengths AND 1/(max_theta-min_theta) folded:
      wa_t   [in,  out] = aff_strength * inv_range * W_aff.T
      w_comb [out, out] = inv_range * (exc_strength * W_exc.T - inh_strength * W_inh.T)
      offset scalar     = min_theta * inv_range
    so that pw_sigmoid(a + e - i) == clip(x@wa_t + y@w_comb - offset, 0, 1).
    """
    min_theta = float(min_theta)
    max_theta = float(max_theta)
    if not max_theta > min_theta:
        # The clip-ramp formulation (and the original PiecewiseSigmoid) needs a
        # positive range; the module default min==max divides by zero.
        raise ValueError("ReducedLissom requires max_theta > min_theta "
                         f"(got min={min_theta}, max={max_theta}).")
    inv_range = 1.0 / (max_theta - min_theta)

    wa_t = (float(afferent_strength) * inv_range) * jnp.transpose(w_aff)
    w_comb = inv_range * (float(excitatory_strength) * jnp.transpose(w_exc)
                          - float(inhibitory_strength) * jnp.transpose(w_inh))
    offset = min_theta * inv_range

    if weight_dtype is not None:
        wa_t = wa_t.astype(weight_dtype)
        w_comb = w_comb.astype(weight_dtype)
    return wa_t, w_comb, float(offset)


# ---------------------------------------------------------------------------
# Wrapper
# ---------------------------------------------------------------------------
def _default_num_chunks():
    """One batch chunk per TensorCore: v5e/v6e have 1 TC per chip, v7x has 2."""
    try:
        kind = jax.devices()[0].device_kind.lower()
    except Exception:
        return 1
    if "v7" in kind or "tpu7" in kind:
        return 2
    return 1


def _pick_batch_tile(batch, num_chunks):
    if num_chunks <= 1:
        return batch
    tb = -(-batch // num_chunks)      # cdiv
    tb = -(-tb // 8) * 8              # round up to sublane multiple
    if tb >= batch:
        return batch                  # full extent (always legal)
    return tb


def reduced_lissom_apply(
    x, wa_t, w_comb, offset,
    *, settling_steps=10, num_chunks=None, max_chains=2,
):
    """x: [B, in_features]; wa_t: [in, out]; w_comb: [out, out] (prepared params)."""
    B, in_features = x.shape
    out_features = wa_t.shape[1]
    assert wa_t.shape[0] == in_features and w_comb.shape == (out_features, out_features)

    # Feed MXU-native operands: match the weight dtype (bf16 by default).
    x_c = x.astype(wa_t.dtype)

    if num_chunks is None:
        num_chunks = _default_num_chunks()
    tb = _pick_batch_tile(B, num_chunks)
    grid = (pl.cdiv(B, tb),)

    # Independent sub-chains inside a tile (needs sublane-aligned halves).
    n_chains = max_chains if (max_chains > 1 and tb >= 8 * max_chains
                              and tb % (8 * max_chains) == 0) else 1
    rows_per_chain = tb // n_chains

    kernel = functools.partial(
        _reduced_lissom_kernel,
        offset=float(offset),
        settling_steps=int(settling_steps),
        n_chains=n_chains,
        rows_per_chain=rows_per_chain,
    )

    x_item = jnp.dtype(x_c.dtype).itemsize
    w_item = jnp.dtype(wa_t.dtype).itemsize

    # VMEM budget: single-buffered weights + double-buffered x/out tiles + f32
    # intermediates (aff + y per chain), with headroom; capped at 64 MiB so the
    # value is valid on v7x as well as v5e/v6e.
    vmem_needed = (
        wa_t.size * w_item + w_comb.size * w_item
        + 2 * tb * in_features * x_item
        + 2 * tb * out_features * 4
        + 4 * tb * out_features * 4
    )
    vmem_limit = min(max(int(vmem_needed * 1.5), 32 << 20), 64 << 20)

    cost = pl.CostEstimate(
        flops=2 * B * in_features * out_features
        + int(settling_steps) * 2 * B * out_features * out_features,
        transcendentals=0,
        bytes_accessed=B * in_features * x_item
        + in_features * out_features * w_item
        + out_features * out_features * w_item
        + B * out_features * 4,
    )

    return pl.pallas_call(
        kernel,
        out_shape=jax.ShapeDtypeStruct((B, out_features), jnp.float32),
        grid=grid,
        in_specs=[
            pl.BlockSpec((tb, in_features), lambda i: (i, 0)),
            # Constant weights: whole-array VMEM residency, no per-step
            # double-buffered re-fetch.
            pl.BlockSpec(memory_space=pltpu.MemorySpace.VMEM),
            pl.BlockSpec(memory_space=pltpu.MemorySpace.VMEM),
        ],
        out_specs=pl.BlockSpec((tb, out_features), lambda i: (i, 0)),
        compiler_params=pltpu.CompilerParams(
            dimension_semantics=("parallel",),
            vmem_limit_bytes=vmem_limit,
        ),
        cost_estimate=cost,
    )(x_c, wa_t, w_comb)


def reduced_lissom(
    x, w_aff, w_exc, w_inh,
    *, min_theta=0.0, max_theta=1.0, settling_steps=10,
    afferent_strength=1.0, excitatory_strength=1.0, inhibitory_strength=1.0,
    weight_dtype=jnp.bfloat16,
):
    """Convenience wrapper matching the original module signature.
    Prefer prepare_reduced_lissom_params + reduced_lissom_apply for repeated calls."""
    wa_t, w_comb, offset = prepare_reduced_lissom_params(
        w_aff, w_exc, w_inh,
        min_theta=min_theta, max_theta=max_theta,
        afferent_strength=afferent_strength,
        excitatory_strength=excitatory_strength,
        inhibitory_strength=inhibitory_strength,
        weight_dtype=weight_dtype,
    )
    return reduced_lissom_apply(x, wa_t, w_comb, offset, settling_steps=settling_steps)


# ---------------------------------------------------------------------------
# Pure-JAX references
# ---------------------------------------------------------------------------
def _reference_original(x, w_aff, w_exc, w_inh, *, min_theta, max_theta, settling_steps,
                        afferent_strength, excitatory_strength, inhibitory_strength):
    """Original (unfused, f32) pylissom semantics."""
    def pw(v):
        out = (v - min_theta) / (max_theta - min_theta)
        out = jnp.where(v <= min_theta, 0.0, out)
        out = jnp.where(v >= max_theta, 1.0, out)
        return out

    aff = afferent_strength * (x @ w_aff.T)
    y = pw(aff)
    for _ in range(settling_steps):
        exc = excitatory_strength * (y @ w_exc.T)
        inh = inhibitory_strength * (y @ w_inh.T)
        y = pw(aff + exc - inh)
    return y


def _reference_folded(x, wa_t, w_comb, offset, settling_steps):
    """Same folded/low-precision parameters as the kernel (isolates kernel bugs)."""
    xb = x.astype(wa_t.dtype)
    aff = jnp.dot(xb, wa_t, preferred_element_type=jnp.float32)
    y = jnp.clip(aff - offset, 0.0, 1.0)
    for _ in range(settling_steps):
        s = aff + jnp.dot(y.astype(w_comb.dtype), w_comb,
                          preferred_element_type=jnp.float32)
        y = jnp.clip(s - offset, 0.0, 1.0)
    return y


# ---------------------------------------------------------------------------
# Demo / self-test
# ---------------------------------------------------------------------------
if __name__ == "__main__":
    # Shapes implied by the forward: flattened retina -> cortex sheet.
    B = 256
    in_features = 256      # e.g. a 16x16 retina, flattened
    out_features = 128     # cortex units

    key = jax.random.PRNGKey(0)
    kx, ka, ke, ki = jax.random.split(key, 4)

    x = jax.random.uniform(kx, (B, in_features), dtype=jnp.float32)
    # Deterministic, normalized positive weights (LISSOM-style connection strengths).
    w_aff = jax.random.uniform(ka, (out_features, in_features), dtype=jnp.float32)
    w_aff = w_aff / jnp.sum(w_aff, axis=1, keepdims=True)
    w_exc = jax.random.uniform(ke, (out_features, out_features), dtype=jnp.float32)
    w_exc = w_exc / jnp.sum(w_exc, axis=1, keepdims=True)
    w_inh = jax.random.uniform(ki, (out_features, out_features), dtype=jnp.float32)
    w_inh = w_inh / jnp.sum(w_inh, axis=1, keepdims=True)

    # NOTE: module defaults are min_theta=max_theta=1.0 which divides by zero in
    # PiecewiseSigmoid; use a valid (min_theta < max_theta) configuration here.
    cfg = dict(
        min_theta=0.0, max_theta=1.0, settling_steps=10,
        afferent_strength=1.0, excitatory_strength=0.9, inhibitory_strength=0.9,
    )

    # One-time parameter prep (strength + 1/range folding, transpose, bf16 cast).
    wa_t, w_comb, offset = prepare_reduced_lissom_params(
        w_aff, w_exc, w_inh,
        min_theta=cfg["min_theta"], max_theta=cfg["max_theta"],
        afferent_strength=cfg["afferent_strength"],
        excitatory_strength=cfg["excitatory_strength"],
        inhibitory_strength=cfg["inhibitory_strength"],
        weight_dtype=jnp.bfloat16,
    )

    out = reduced_lissom_apply(
        x, wa_t, w_comb, offset, settling_steps=cfg["settling_steps"],
    )
    out = jax.block_until_ready(out)
    assert out.shape == (B, out_features)

    # 1) Tight check vs. a pure-JAX reference using the SAME folded bf16 parameters
    #    (validates the kernel itself; small tolerance for accumulation-order deltas).
    ref_folded = _reference_folded(x, wa_t, w_comb, offset, cfg["settling_steps"])
    assert jnp.allclose(out, ref_folded, atol=2e-3, rtol=2e-3), \
        "mismatch vs folded-parameter reference"

    # 2) Sanity check vs. the original unfused f32 semantics: bf16 weights + folded
    #    rounding order compound over 10 settling steps, so use a loose tolerance.
    ref_f32 = _reference_original(x, w_aff, w_exc, w_inh, **cfg)
    assert jnp.allclose(out, ref_f32, atol=5e-2, rtol=0), \
        "mismatch vs original f32 reference"

    print("KERNEL_OK")
</pallas_src>

<mosaic_0001>
module attributes {stable_mosaic.version = 11 : i64} {
  func.func @_reduced_lissom_kernel(%arg0: i32, %arg1: memref<256x256xbf16, #tpu.memory_space<vmem>>, %arg2: memref<256x128xbf16, #tpu.memory_space<vmem>>, %arg3: memref<128x128xbf16, #tpu.memory_space<vmem>>, %arg4: memref<256x128xf32, #tpu.memory_space<vmem>>) attributes {dimension_semantics = [#tpu.dimension_semantics<parallel>], iteration_bounds = array<i64: 1>, scalar_prefetch = 0 : i64, scratch_operands = 0 : i64, tpu.core_type = #tpu.core_type<tc>, window_params = [{transform_indices = @transform_0, window_bounds = array<i64: 256, 256>}, {pipeline_mode = #tpu.pipeline_mode<synchronous>, transform_indices = @transform_1, window_bounds = array<i64: 256, 128>}, {pipeline_mode = #tpu.pipeline_mode<synchronous>, transform_indices = @transform_2, window_bounds = array<i64: 128, 128>}, {transform_indices = @transform_3, window_bounds = array<i64: 256, 128>}]} {
    %c0 = arith.constant 0 : index
    %c0_0 = arith.constant 0 : index
    %0 = vector.load %arg2[%c0, %c0_0] : memref<256x128xbf16, #tpu.memory_space<vmem>>, vector<256x128xbf16>
    %c0_1 = arith.constant 0 : index
    %c0_2 = arith.constant 0 : index
    %1 = vector.load %arg3[%c0_1, %c0_2] : memref<128x128xbf16, #tpu.memory_space<vmem>>, vector<128x128xbf16>
    %c0_3 = arith.constant 0 : index
    %c0_4 = arith.constant 0 : index
    %2 = vector.load %arg1[%c0_3, %c0_4] : memref<256x256xbf16, #tpu.memory_space<vmem>>, vector<128x256xbf16>
    %cst = arith.constant dense<0.000000e+00> : vector<128x128xf32>
    %3 = tpu.matmul %2, %0, %cst {dimension_numbers = #tpu.dot_dimension_numbers<[1], [0], [0], [1], [0, 0, 1, 1], [], []>} : vector<128x256xbf16>, vector<256x128xbf16>, vector<128x128xf32> -> vector<128x128xf32>
    %cst_5 = arith.constant 0.000000e+00 : f32
    %4 = vector.broadcast %cst_5 : f32 to vector<128x128xf32>
    %5 = arith.subf %3, %4 : vector<128x128xf32>
    %cst_6 = arith.constant 0.000000e+00 : f32
    %cst_7 = arith.constant 1.000000e+00 : f32
    %6 = vector.broadcast %cst_6 : f32 to vector<128x128xf32>
    %7 = arith.maximumf %6, %5 : vector<128x128xf32>
    %8 = vector.broadcast %cst_7 : f32 to vector<128x128xf32>
    %9 = arith.minimumf %8, %7 : vector<128x128xf32>
    %c128 = arith.constant 128 : index
    %c0_8 = arith.constant 0 : index
    %10 = vector.load %arg1[%c128, %c0_8] : memref<256x256xbf16, #tpu.memory_space<vmem>>, vector<128x256xbf16>
    %cst_9 = arith.constant dense<0.000000e+00> : vector<128x128xf32>
    %11 = tpu.matmul %10, %0, %cst_9 {dimension_numbers = #tpu.dot_dimension_numbers<[1], [0], [0], [1], [0, 0, 1, 1], [], []>} : vector<128x256xbf16>, vector<256x128xbf16>, vector<128x128xf32> -> vector<128x128xf32>
    %cst_10 = arith.constant 0.000000e+00 : f32
    %12 = vector.broadcast %cst_10 : f32 to vector<128x128xf32>
    %13 = arith.subf %11, %12 : vector<128x128xf32>
    %cst_11 = arith.constant 0.000000e+00 : f32
    %cst_12 = arith.constant 1.000000e+00 : f32
    %14 = vector.broadcast %cst_11 : f32 to vector<128x128xf32>
    %15 = arith.maximumf %14, %13 : vector<128x128xf32>
    %16 = vector.broadcast %cst_12 : f32 to vector<128x128xf32>
    %17 = arith.minimumf %16, %15 : vector<128x128xf32>
    %18 = arith.truncf %9 : vector<128x128xf32> to vector<128x128xbf16>
    %cst_13 = arith.constant dense<0.000000e+00> : vector<128x128xf32>
    %19 = tpu.matmul %18, %1, %cst_13 {dimension_numbers = #tpu.dot_dimension_numbers<[1], [0], [0], [1], [0, 0, 1, 1], [], []>} : vector<128x128xbf16>, vector<128x128xbf16>, vector<128x128xf32> -> vector<128x128xf32>
    %20 = arith.addf %3, %19 : vector<128x128xf32>
    %cst_14 = arith.constant 0.000000e+00 : f32
    %21 = vector.broadcast %cst_14 : f32 to vector<128x128xf32>
    %22 = arith.subf %20, %21 : vector<128x128xf32>
    %cst_15 = arith.constant 0.000000e+00 : f32
    %cst_16 = arith.constant 1.000000e+00 : f32
    %23 = vector.broadcast %cst_15 : f32 to vector<128x128xf32>
    %24 = arith.maximumf %23, %22 : vector<128x128xf32>
    %25 = vector.broadcast %cst_16 : f32 to vector<128x128xf32>
    %26 = arith.minimumf %25, %24 : vector<128x128xf32>
    %27 = arith.truncf %17 : vector<128x128xf32> to vector<128x128xbf16>
    %cst_17 = arith.constant dense<0.000000e+00> : vector<128x128xf32>
    %28 = tpu.matmul %27, %1, %cst_17 {dimension_numbers = #tpu.dot_dimension_numbers<[1], [0], [0], [1], [0, 0, 1, 1], [], []>} : vector<128x128xbf16>, vector<128x128xbf16>, vector<128x128xf32> -> vector<128x128xf32>
    %29 = arith.addf %11, %28 : vector<128x128xf32>
    %cst_18 = arith.constant 0.000000e+00 : f32
    %30 = vector.broadcast %cst_18 : f32 to vector<128x128xf32>
    %31 = arith.subf %29, %30 : vector<128x128xf32>
    %cst_19 = arith.constant 0.000000e+00 : f32
    %cst_20 = arith.constant 1.000000e+00 : f32
    %32 = vector.broadcast %cst_19 : f32 to vector<128x128xf32>
    %33 = arith.maximumf %32, %31 : vector<128x128xf32>
    %34 = vector.broadcast %cst_20 : f32 to vector<128x128xf32>
    %35 = arith.minimumf %34, %33 : vector<128x128xf32>
    %36 = arith.truncf %26 : vector<128x128xf32> to vector<128x128xbf16>
    %cst_21 = arith.constant dense<0.000000e+00> : vector<128x128xf32>
    %37 = tpu.matmul %36, %1, %cst_21 {dimension_numbers = #tpu.dot_dimension_numbers<[1], [0], [0], [1], [0, 0, 1, 1], [], []>} : vector<128x128xbf16>, vector<128x128xbf16>, vector<128x128xf32> -> vector<128x128xf32>
    %38 = arith.addf %3, %37 : vector<128x128xf32>
    %cst_22 = arith.constant 0.000000e+00 : f32
    %39 = vector.broadcast %cst_22 : f32 to vector<128x128xf32>
    %40 = arith.subf %38, %39 : vector<128x128xf32>
    %cst_23 = arith.constant 0.000000e+00 : f32
    %cst_24 = arith.constant 1.000000e+00 : f32
    %41 = vector.broadcast %cst_23 : f32 to vector<128x128xf32>
    %42 = arith.maximumf %41, %40 : vector<128x128xf32>
    %43 = vector.broadcast %cst_24 : f32 to vector<128x128xf32>
    %44 = arith.minimumf %43, %42 : vector<128x128xf32>
    %45 = arith.truncf %35 : vector<128x128xf32> to vector<128x128xbf16>
    %cst_25 = arith.constant dense<0.000000e+00> : vector<128x128xf32>
    %46 = tpu.matmul %45, %1, %cst_25 {dimension_numbers = #tpu.dot_dimension_numbers<[1], [0], [0], [1], [0, 0, 1, 1], [], []>} : vector<128x128xbf16>, vector<128x128xbf16>, vector<128x128xf32> -> vector<128x128xf32>
    %47 = arith.addf %11, %46 : vector<128x128xf32>
    %cst_26 = arith.constant 0.000000e+00 : f32
    %48 = vector.broadcast %cst_26 : f32 to vector<128x128xf32>
    %49 = arith.subf %47, %48 : vector<128x128xf32>
    %cst_27 = arith.constant 0.000000e+00 : f32
    %cst_28 = arith.constant 1.000000e+00 : f32
    %50 = vector.broadcast %cst_27 : f32 to vector<128x128xf32>
    %51 = arith.maximumf %50, %49 : vector<128x128xf32>
    %52 = vector.broadcast %cst_28 : f32 to vector<128x128xf32>
    %53 = arith.minimumf %52, %51 : vector<128x128xf32>
    %54 = arith.truncf %44 : vector<128x128xf32> to vector<128x128xbf16>
    %cst_29 = arith.constant dense<0.000000e+00> : vector<128x128xf32>
    %55 = tpu.matmul %54, %1, %cst_29 {dimension_numbers = #tpu.dot_dimension_numbers<[1], [0], [0], [1], [0, 0, 1, 1], [], []>} : vector<128x128xbf16>, vector<128x128xbf16>, vector<128x128xf32> -> vector<128x128xf32>
    %56 = arith.addf %3, %55 : vector<128x128xf32>
    %cst_30 = arith.constant 0.000000e+00 : f32
    %57 = vector.broadcast %cst_30 : f32 to vector<128x128xf32>
    %58 = arith.subf %56, %57 : vector<128x128xf32>
    %cst_31 = arith.constant 0.000000e+00 : f32
    %cst_32 = arith.constant 1.000000e+00 : f32
    %59 = vector.broadcast %cst_31 : f32 to vector<128x128xf32>
    %60 = arith.maximumf %59, %58 : vector<128x128xf32>
    %61 = vector.broadcast %cst_32 : f32 to vector<128x128xf32>
    %62 = arith.minimumf %61, %60 : vector<128x128xf32>
    %63 = arith.truncf %53 : vector<128x128xf32> to vector<128x128xbf16>
    %cst_33 = arith.constant dense<0.000000e+00> : vector<128x128xf32>
    %64 = tpu.matmul %63, %1, %cst_33 {dimension_numbers = #tpu.dot_dimension_numbers<[1], [0], [0], [1], [0, 0, 1, 1], [], []>} : vector<128x128xbf16>, vector<128x128xbf16>, vector<128x128xf32> -> vector<128x128xf32>
    %65 = arith.addf %11, %64 : vector<128x128xf32>
    %cst_34 = arith.constant 0.000000e+00 : f32
    %66 = vector.broadcast %cst_34 : f32 to vector<128x128xf32>
    %67 = arith.subf %65, %66 : vector<128x128xf32>
    %cst_35 = arith.constant 0.000000e+00 : f32
    %cst_36 = arith.constant 1.000000e+00 : f32
    %68 = vector.broadcast %cst_35 : f32 to vector<128x128xf32>
    %69 = arith.maximumf %68, %67 : vector<128x128xf32>
    %70 = vector.broadcast %cst_36 : f32 to vector<128x128xf32>
    %71 = arith.minimumf %70, %69 : vector<128x128xf32>
    %72 = arith.truncf %62 : vector<128x128xf32> to vector<128x128xbf16>
    %cst_37 = arith.constant dense<0.000000e+00> : vector<128x128xf32>
    %73 = tpu.matmul %72, %1, %cst_37 {dimension_numbers = #tpu.dot_dimension_numbers<[1], [0], [0], [1], [0, 0, 1, 1], [], []>} : vector<128x128xbf16>, vector<128x128xbf16>, vector<128x128xf32> -> vector<128x128xf32>
    %74 = arith.addf %3, %73 : vector<128x128xf32>
    %cst_38 = arith.constant 0.000000e+00 : f32
    %75 = vector.broadcast %cst_38 : f32 to vector<128x128xf32>
    %76 = arith.subf %74, %75 : vector<128x128xf32>
    %cst_39 = arith.constant 0.000000e+00 : f32
    %cst_40 = arith.constant 1.000000e+00 : f32
    %77 = vector.broadcast %cst_39 : f32 to vector<128x128xf32>
    %78 = arith.maximumf %77, %76 : vector<128x128xf32>
    %79 = vector.broadcast %cst_40 : f32 to vector<128x128xf32>
    %80 = arith.minimumf %79, %78 : vector<128x128xf32>
    %81 = arith.truncf %71 : vector<128x128xf32> to vector<128x128xbf16>
    %cst_41 = arith.constant dense<0.000000e+00> : vector<128x128xf32>
    %82 = tpu.matmul %81, %1, %cst_41 {dimension_numbers = #tpu.dot_dimension_numbers<[1], [0], [0], [1], [0, 0, 1, 1], [], []>} : vector<128x128xbf16>, vector<128x128xbf16>, vector<128x128xf32> -> vector<128x128xf32>
    %83 = arith.addf %11, %82 : vector<128x128xf32>
    %cst_42 = arith.constant 0.000000e+00 : f32
    %84 = vector.broadcast %cst_42 : f32 to vector<128x128xf32>
    %85 = arith.subf %83, %84 : vector<128x128xf32>
    %cst_43 = arith.constant 0.000000e+00 : f32
    %cst_44 = arith.constant 1.000000e+00 : f32
    %86 = vector.broadcast %cst_43 : f32 to vector<128x128xf32>
    %87 = arith.maximumf %86, %85 : vector<128x128xf32>
    %88 = vector.broadcast %cst_44 : f32 to vector<128x128xf32>
    %89 = arith.minimumf %88, %87 : vector<128x128xf32>
    %90 = arith.truncf %80 : vector<128x128xf32> to vector<128x128xbf16>
    %cst_45 = arith.constant dense<0.000000e+00> : vector<128x128xf32>
    %91 = tpu.matmul %90, %1, %cst_45 {dimension_numbers = #tpu.dot_dimension_numbers<[1], [0], [0], [1], [0, 0, 1, 1], [], []>} : vector<128x128xbf16>, vector<128x128xbf16>, vector<128x128xf32> -> vector<128x128xf32>
    %92 = arith.addf %3, %91 : vector<128x128xf32>
    %cst_46 = arith.constant 0.000000e+00 : f32
    %93 = vector.broadcast %cst_46 : f32 to vector<128x128xf32>
    %94 = arith.subf %92, %93 : vector<128x128xf32>
    %cst_47 = arith.constant 0.000000e+00 : f32
    %cst_48 = arith.constant 1.000000e+00 : f32
    %95 = vector.broadcast %cst_47 : f32 to vector<128x128xf32>
    %96 = arith.maximumf %95, %94 : vector<128x128xf32>
    %97 = vector.broadcast %cst_48 : f32 to vector<128x128xf32>
    %98 = arith.minimumf %97, %96 : vector<128x128xf32>
    %99 = arith.truncf %89 : vector<128x128xf32> to vector<128x128xbf16>
    %cst_49 = arith.constant dense<0.000000e+00> : vector<128x128xf32>
    %100 = tpu.matmul %99, %1, %cst_49 {dimension_numbers = #tpu.dot_dimension_numbers<[1], [0], [0], [1], [0, 0, 1, 1], [], []>} : vector<128x128xbf16>, vector<128x128xbf16>, vector<128x128xf32> -> vector<128x128xf32>
    %101 = arith.addf %11, %100 : vector<128x128xf32>
    %cst_50 = arith.constant 0.000000e+00 : f32
    %102 = vector.broadcast %cst_50 : f32 to vector<128x128xf32>
    %103 = arith.subf %101, %102 : vector<128x128xf32>
    %cst_51 = arith.constant 0.000000e+00 : f32
    %cst_52 = arith.constant 1.000000e+00 : f32
    %104 = vector.broadcast %cst_51 : f32 to vector<128x128xf32>
    %105 = arith.maximumf %104, %103 : vector<128x128xf32>
    %106 = vector.broadcast %cst_52 : f32 to vector<128x128xf32>
    %107 = arith.minimumf %106, %105 : vector<128x128xf32>
    %108 = arith.truncf %98 : vector<128x128xf32> to vector<128x128xbf16>
    %cst_53 = arith.constant dense<0.000000e+00> : vector<128x128xf32>
    %109 = tpu.matmul %108, %1, %cst_53 {dimension_numbers = #tpu.dot_dimension_numbers<[1], [0], [0], [1], [0, 0, 1, 1], [], []>} : vector<128x128xbf16>, vector<128x128xbf16>, vector<128x128xf32> -> vector<128x128xf32>
    %110 = arith.addf %3, %109 : vector<128x128xf32>
    %cst_54 = arith.constant 0.000000e+00 : f32
    %111 = vector.broadcast %cst_54 : f32 to vector<128x128xf32>
    %112 = arith.subf %110, %111 : vector<128x128xf32>
    %cst_55 = arith.constant 0.000000e+00 : f32
    %cst_56 = arith.constant 1.000000e+00 : f32
    %113 = vector.broadcast %cst_55 : f32 to vector<128x128xf32>
    %114 = arith.maximumf %113, %112 : vector<128x128xf32>
    %115 = vector.broadcast %cst_56 : f32 to vector<128x128xf32>
    %116 = arith.minimumf %115, %114 : vector<128x128xf32>
    %117 = arith.truncf %107 : vector<128x128xf32> to vector<128x128xbf16>
    %cst_57 = arith.constant dense<0.000000e+00> : vector<128x128xf32>
    %118 = tpu.matmul %117, %1, %cst_57 {dimension_numbers = #tpu.dot_dimension_numbers<[1], [0], [0], [1], [0, 0, 1, 1], [], []>} : vector<128x128xbf16>, vector<128x128xbf16>, vector<128x128xf32> -> vector<128x128xf32>
    %119 = arith.addf %11, %118 : vector<128x128xf32>
    %cst_58 = arith.constant 0.000000e+00 : f32
    %120 = vector.broadcast %cst_58 : f32 to vector<128x128xf32>
    %121 = arith.subf %119, %120 : vector<128x128xf32>
    %cst_59 = arith.constant 0.000000e+00 : f32
    %cst_60 = arith.constant 1.000000e+00 : f32
    %122 = vector.broadcast %cst_59 : f32 to vector<128x128xf32>
    %123 = arith.maximumf %122, %121 : vector<128x128xf32>
    %124 = vector.broadcast %cst_60 : f32 to vector<128x128xf32>
    %125 = arith.minimumf %124, %123 : vector<128x128xf32>
    %126 = arith.truncf %116 : vector<128x128xf32> to vector<128x128xbf16>
    %cst_61 = arith.constant dense<0.000000e+00> : vector<128x128xf32>
    %127 = tpu.matmul %126, %1, %cst_61 {dimension_numbers = #tpu.dot_dimension_numbers<[1], [0], [0], [1], [0, 0, 1, 1], [], []>} : vector<128x128xbf16>, vector<128x128xbf16>, vector<128x128xf32> -> vector<128x128xf32>
    %128 = arith.addf %3, %127 : vector<128x128xf32>
    %cst_62 = arith.constant 0.000000e+00 : f32
    %129 = vector.broadcast %cst_62 : f32 to vector<128x128xf32>
    %130 = arith.subf %128, %129 : vector<128x128xf32>
    %cst_63 = arith.constant 0.000000e+00 : f32
    %cst_64 = arith.constant 1.000000e+00 : f32
    %131 = vector.broadcast %cst_63 : f32 to vector<128x128xf32>
    %132 = arith.maximumf %131, %130 : vector<128x128xf32>
    %133 = vector.broadcast %cst_64 : f32 to vector<128x128xf32>
    %134 = arith.minimumf %133, %132 : vector<128x128xf32>
    %135 = arith.truncf %125 : vector<128x128xf32> to vector<128x128xbf16>
    %cst_65 = arith.constant dense<0.000000e+00> : vector<128x128xf32>
    %136 = tpu.matmul %135, %1, %cst_65 {dimension_numbers = #tpu.dot_dimension_numbers<[1], [0], [0], [1], [0, 0, 1, 1], [], []>} : vector<128x128xbf16>, vector<128x128xbf16>, vector<128x128xf32> -> vector<128x128xf32>
    %137 = arith.addf %11, %136 : vector<128x128xf32>
    %cst_66 = arith.constant 0.000000e+00 : f32
    %138 = vector.broadcast %cst_66 : f32 to vector<128x128xf32>
    %139 = arith.subf %137, %138 : vector<128x128xf32>
    %cst_67 = arith.constant 0.000000e+00 : f32
    %cst_68 = arith.constant 1.000000e+00 : f32
    %140 = vector.broadcast %cst_67 : f32 to vector<128x128xf32>
    %141 = arith.maximumf %140, %139 : vector<128x128xf32>
    %142 = vector.broadcast %cst_68 : f32 to vector<128x128xf32>
    %143 = arith.minimumf %142, %141 : vector<128x128xf32>
    %144 = arith.truncf %134 : vector<128x128xf32> to vector<128x128xbf16>
    %cst_69 = arith.constant dense<0.000000e+00> : vector<128x128xf32>
    %145 = tpu.matmul %144, %1, %cst_69 {dimension_numbers = #tpu.dot_dimension_numbers<[1], [0], [0], [1], [0, 0, 1, 1], [], []>} : vector<128x128xbf16>, vector<128x128xbf16>, vector<128x128xf32> -> vector<128x128xf32>
    %146 = arith.addf %3, %145 : vector<128x128xf32>
    %cst_70 = arith.constant 0.000000e+00 : f32
    %147 = vector.broadcast %cst_70 : f32 to vector<128x128xf32>
    %148 = arith.subf %146, %147 : vector<128x128xf32>
    %cst_71 = arith.constant 0.000000e+00 : f32
    %cst_72 = arith.constant 1.000000e+00 : f32
    %149 = vector.broadcast %cst_71 : f32 to vector<128x128xf32>
    %150 = arith.maximumf %149, %148 : vector<128x128xf32>
    %151 = vector.broadcast %cst_72 : f32 to vector<128x128xf32>
    %152 = arith.minimumf %151, %150 : vector<128x128xf32>
    %153 = arith.truncf %143 : vector<128x128xf32> to vector<128x128xbf16>
    %cst_73 = arith.constant dense<0.000000e+00> : vector<128x128xf32>
    %154 = tpu.matmul %153, %1, %cst_73 {dimension_numbers = #tpu.dot_dimension_numbers<[1], [0], [0], [1], [0, 0, 1, 1], [], []>} : vector<128x128xbf16>, vector<128x128xbf16>, vector<128x128xf32> -> vector<128x128xf32>
    %155 = arith.addf %11, %154 : vector<128x128xf32>
    %cst_74 = arith.constant 0.000000e+00 : f32
    %156 = vector.broadcast %cst_74 : f32 to vector<128x128xf32>
    %157 = arith.subf %155, %156 : vector<128x128xf32>
    %cst_75 = arith.constant 0.000000e+00 : f32
    %cst_76 = arith.constant 1.000000e+00 : f32
    %158 = vector.broadcast %cst_75 : f32 to vector<128x128xf32>
    %159 = arith.maximumf %158, %157 : vector<128x128xf32>
    %160 = vector.broadcast %cst_76 : f32 to vector<128x128xf32>
    %161 = arith.minimumf %160, %159 : vector<128x128xf32>
    %162 = arith.truncf %152 : vector<128x128xf32> to vector<128x128xbf16>
    %cst_77 = arith.constant dense<0.000000e+00> : vector<128x128xf32>
    %163 = tpu.matmul %162, %1, %cst_77 {dimension_numbers = #tpu.dot_dimension_numbers<[1], [0], [0], [1], [0, 0, 1, 1], [], []>} : vector<128x128xbf16>, vector<128x128xbf16>, vector<128x128xf32> -> vector<128x128xf32>
    %164 = arith.addf %3, %163 : vector<128x128xf32>
    %cst_78 = arith.constant 0.000000e+00 : f32
    %165 = vector.broadcast %cst_78 : f32 to vector<128x128xf32>
    %166 = arith.subf %164, %165 : vector<128x128xf32>
    %cst_79 = arith.constant 0.000000e+00 : f32
    %cst_80 = arith.constant 1.000000e+00 : f32
    %167 = vector.broadcast %cst_79 : f32 to vector<128x128xf32>
    %168 = arith.maximumf %167, %166 : vector<128x128xf32>
    %169 = vector.broadcast %cst_80 : f32 to vector<128x128xf32>
    %170 = arith.minimumf %169, %168 : vector<128x128xf32>
    %171 = arith.truncf %161 : vector<128x128xf32> to vector<128x128xbf16>
    %cst_81 = arith.constant dense<0.000000e+00> : vector<128x128xf32>
    %172 = tpu.matmul %171, %1, %cst_81 {dimension_numbers = #tpu.dot_dimension_numbers<[1], [0], [0], [1], [0, 0, 1, 1], [], []>} : vector<128x128xbf16>, vector<128x128xbf16>, vector<128x128xf32> -> vector<128x128xf32>
    %173 = arith.addf %11, %172 : vector<128x128xf32>
    %cst_82 = arith.constant 0.000000e+00 : f32
    %174 = vector.broadcast %cst_82 : f32 to vector<128x128xf32>
    %175 = arith.subf %173, %174 : vector<128x128xf32>
    %cst_83 = arith.constant 0.000000e+00 : f32
    %cst_84 = arith.constant 1.000000e+00 : f32
    %176 = vector.broadcast %cst_83 : f32 to vector<128x128xf32>
    %177 = arith.maximumf %176, %175 : vector<128x128xf32>
    %178 = vector.broadcast %cst_84 : f32 to vector<128x128xf32>
    %179 = arith.minimumf %178, %177 : vector<128x128xf32>
    %180 = arith.truncf %170 : vector<128x128xf32> to vector<128x128xbf16>
    %cst_85 = arith.constant dense<0.000000e+00> : vector<128x128xf32>
    %181 = tpu.matmul %180, %1, %cst_85 {dimension_numbers = #tpu.dot_dimension_numbers<[1], [0], [0], [1], [0, 0, 1, 1], [], []>} : vector<128x128xbf16>, vector<128x128xbf16>, vector<128x128xf32> -> vector<128x128xf32>
    %182 = arith.addf %3, %181 : vector<128x128xf32>
    %cst_86 = arith.constant 0.000000e+00 : f32
    %183 = vector.broadcast %cst_86 : f32 to vector<128x128xf32>
    %184 = arith.subf %182, %183 : vector<128x128xf32>
    %cst_87 = arith.constant 0.000000e+00 : f32
    %cst_88 = arith.constant 1.000000e+00 : f32
    %185 = vector.broadcast %cst_87 : f32 to vector<128x128xf32>
    %186 = arith.maximumf %185, %184 : vector<128x128xf32>
    %187 = vector.broadcast %cst_88 : f32 to vector<128x128xf32>
    %188 = arith.minimumf %187, %186 : vector<128x128xf32>
    %189 = arith.truncf %179 : vector<128x128xf32> to vector<128x128xbf16>
    %cst_89 = arith.constant dense<0.000000e+00> : vector<128x128xf32>
    %190 = tpu.matmul %189, %1, %cst_89 {dimension_numbers = #tpu.dot_dimension_numbers<[1], [0], [0], [1], [0, 0, 1, 1], [], []>} : vector<128x128xbf16>, vector<128x128xbf16>, vector<128x128xf32> -> vector<128x128xf32>
    %191 = arith.addf %11, %190 : vector<128x128xf32>
    %cst_90 = arith.constant 0.000000e+00 : f32
    %192 = vector.broadcast %cst_90 : f32 to vector<128x128xf32>
    %193 = arith.subf %191, %192 : vector<128x128xf32>
    %cst_91 = arith.constant 0.000000e+00 : f32
    %cst_92 = arith.constant 1.000000e+00 : f32
    %194 = vector.broadcast %cst_91 : f32 to vector<128x128xf32>
    %195 = arith.maximumf %194, %193 : vector<128x128xf32>
    %196 = vector.broadcast %cst_92 : f32 to vector<128x128xf32>
    %197 = arith.minimumf %196, %195 : vector<128x128xf32>
    %c0_93 = arith.constant 0 : index
    %c0_94 = arith.constant 0 : index
    %198 = vector.load %arg4[%c0_93, %c0_94] : memref<256x128xf32, #tpu.memory_space<vmem>>, vector<128x128xf32>
    tpu.vector_store %arg4[%c0_93, %c0_94], %188 {strides = array<i32>} : memref<256x128xf32, #tpu.memory_space<vmem>>, vector<128x128xf32>,
    %c128_95 = arith.constant 128 : index
    %c0_96 = arith.constant 0 : index
    %199 = vector.load %arg4[%c128_95, %c0_96] : memref<256x128xf32, #tpu.memory_space<vmem>>, vector<128x128xf32>
    tpu.vector_store %arg4[%c128_95, %c0_96], %197 {strides = array<i32>} : memref<256x128xf32, #tpu.memory_space<vmem>>, vector<128x128xf32>,
    return
  }
  func.func @transform_0(%arg0: i32) -> (i32, i32) {
    %c0_i32 = arith.constant 0 : i32
    %c0_i32_0 = arith.constant 0 : i32
    return %arg0, %c0_i32 : i32, i32
  }
  func.func @transform_1(%arg0: i32) -> (i32, i32) {
    %c0_i32 = arith.constant 0 : i32
    %c0_i32_0 = arith.constant 0 : i32
    %c0_i32_1 = arith.constant 0 : i32
    return %c0_i32, %c0_i32_0 : i32, i32
  }
  func.func @transform_2(%arg0: i32) -> (i32, i32) {
    %c0_i32 = arith.constant 0 : i32
    %c0_i32_0 = arith.constant 0 : i32
    %c0_i32_1 = arith.constant 0 : i32
    return %c0_i32, %c0_i32_0 : i32, i32
  }
  func.func @transform_3(%arg0: i32) -> (i32, i32) {
    %c0_i32 = arith.constant 0 : i32
    %c0_i32_0 = arith.constant 0 : i32
    return %arg0, %c0_i32 : i32, i32
  }
}

</mosaic_0001>

<llo_original>
// kernel: tpu_custom_call.1
$region0: #{tpu_custom_call.1}
  #allocation0 [shape = 'u32[]', space=smem, size = 0x4, offset = 0x4, fixed_abs, tag = 'smem constant byte address 0x4 - core index']
  #allocation1 [shape = 'u32[72,128]{1,0:T(1,128)}', space=vmem, size = 0x9000, scoped, tag = 'internal scratch']
  %s0 = inlined_call_operand.hbm [shape: bf16[256,256], index: 0, kind: input, shape index: {}]
  %s1 = inlined_call_operand.hbm [shape: bf16[256,128], index: 1, kind: input, shape index: {}]
  %s2 = inlined_call_operand.hbm [shape: bf16[128,128], index: 2, kind: input, shape index: {}]
  %s3 = inlined_call_operand.hbm [shape: f32[256,128], index: 3, kind: output, shape index: {}]
  %s4 = sld [smem:[#allocation0]]
  $region34: #{tpu_custom_call.1} parent=0
    _
  %s6 = ssub.s32 1, %s4
  %s7 = scalar_select 0, %s6, %s4
  $region1: #{tpu_custom_call.1} parent=0
    #allocation2 [shape = 'u8[131072]{0}', space=vmem, size = 0x20000, scoped, tag = 'input window, operand 0, single buffered']
    #allocation3 [shape = 's32[1]{0}', space=sflag, size = 0x4, scoped, tag = 'scoped memory for tpu_custom_call.1']
    #allocation4 [shape = 's32[1]{0}', space=sflag, size = 0x4, scoped, tag = 'scoped memory for tpu_custom_call.1']
    #allocation5 [shape = 'u8[65536]{0}', space=vmem, size = 0x10000, scoped, tag = 'input window, operand 1, single buffered']
    #allocation6 [shape = 's32[1]{0}', space=sflag, size = 0x4, scoped, tag = 'scoped memory for tpu_custom_call.1']
    #allocation7 [shape = 'u8[32768]{0}', space=vmem, size = 0x8000, scoped, tag = 'input window, operand 2, single buffered']
    #allocation8 [shape = 'u8[131072]{0}', space=vmem, size = 0x20000, scoped, tag = 'output window, operand 0, single buffered']
    %8 = vsyncpa [#allocation3], 0
    %9 = vsyncpa [#allocation6], 0
    %10 = vsyncpa [#allocation4], 0
    // Predicated region
    $region2: #{tpu_custom_call.1} parent=1 // pred_check
      _
    $region3: #{tpu_custom_call.1} parent=1 // pred_check_branch
      %12 = sbr.rel (0) target = $region5
    $region4: #{tpu_custom_call.1} parent=1 // pred_region
      %14 = vsyncadd [#allocation3], 0
      %s15 = sshll.u32 %s0, 4
      %s16 = int_to_ptr.hbm [resolvable:$true] %s15
      %s17 = sshll.u32 [#allocation2], 4
      %s18 = int_to_ptr.vmem [resolvable:$true] %s17
      %23 = dma.hbm_to_vmem [thread:$0]  %s16, 4096, %s18, [#allocation3], 128, 128, 8
    $region5: #{tpu_custom_call.1} parent=1 // pred_fallthru
      _
    // Predicated region
    $region6: #{tpu_custom_call.1} parent=1 // pred_check
      _
    $region7: #{tpu_custom_call.1} parent=1 // pred_check_branch
      %25 = sbr.rel (0) target = $region9
    $region8: #{tpu_custom_call.1} parent=1 // pred_region
      %27 = vsyncadd [#allocation6], 0
      %s28 = sshll.u32 %s1, 4
      %s29 = int_to_ptr.hbm [resolvable:$true] %s28
      %s30 = sshll.u32 [#allocation5], 4
      %s31 = int_to_ptr.vmem [resolvable:$true] %s30
      %36 = dma.hbm_to_vmem [thread:$0]  %s29, 2048, %s31, [#allocation6], 64, 64, 4
    $region9: #{tpu_custom_call.1} parent=1 // pred_fallthru
      _
    // Predicated region
    $region10: #{tpu_custom_call.1} parent=1 // pred_check
      _
    $region11: #{tpu_custom_call.1} parent=1 // pred_check_branch
      %38 = sbr.rel (0) target = $region13
    $region12: #{tpu_custom_call.1} parent=1 // pred_region
      %40 = vsyncadd [#allocation6], 0
      %s41 = sshll.u32 %s2, 4
      %s42 = int_to_ptr.hbm [resolvable:$true] %s41
      %s43 = sshll.u32 [#allocation7], 4
      %s44 = int_to_ptr.vmem [resolvable:$true] %s43
      %49 = dma.hbm_to_vmem [thread:$0]  %s42, 1024, %s44, [#allocation6], 64, 64, 4
    $region13: #{tpu_custom_call.1} parent=1 // pred_fallthru
      _
    // Predicated region
    $region14: #{tpu_custom_call.1} parent=1 // pred_check
      _
    $region15: #{tpu_custom_call.1} parent=1 // pred_check_branch
      %51 = sbr.rel (0) target = $region17
    $region16: #{tpu_custom_call.1} parent=1 // pred_region
      %53 = dma.done [#allocation3], 4096
    $region17: #{tpu_custom_call.1} parent=1 // pred_fallthru
      _
    // Predicated region
    $region18: #{tpu_custom_call.1} parent=1 // pred_check
      _
    $region19: #{tpu_custom_call.1} parent=1 // pred_check_branch
      %55 = sbr.rel (0) target = $region21
    $region20: #{tpu_custom_call.1} parent=1 // pred_region
      %57 = dma.done [#allocation6], 2048
    $region21: #{tpu_custom_call.1} parent=1 // pred_fallthru
      _
    // Predicated region
    $region22: #{tpu_custom_call.1} parent=1 // pred_check
      _
    $region23: #{tpu_custom_call.1} parent=1 // pred_check_branch
      %59 = sbr.rel (0) target = $region25
    $region24: #{tpu_custom_call.1} parent=1 // pred_region
      %61 = dma.done [#allocation6], 1024
    $region25: #{tpu_custom_call.1} parent=1 // pred_fallthru
      _
    %v62 = vld [vmem:[#allocation5] sm:$0xf]
    %v63 = vld [vmem:[#allocation5 + $0x4] sm:$0xf]
    %v64 = vld [vmem:[#allocation5 + $0x8] sm:$0xf]
    %v65 = vld [vmem:[#allocation5 + $0xc] sm:$0xf]
    %v66 = vld [vmem:[#allocation5 + $0x10] sm:$0xf]
    %v67 = vld [vmem:[#allocation5 + $0x14] sm:$0xf]
    %v68 = vld [vmem:[#allocation5 + $0x18] sm:$0xf]
    %v69 = vld [vmem:[#allocation5 + $0x1c] sm:$0xf]
    %v70 = vld [vmem:[#allocation5 + $0x20] sm:$0xf]
    %v71 = vld [vmem:[#allocation5 + $0x24] sm:$0xf]
    %v72 = vld [vmem:[#allocation5 + $0x28] sm:$0xf]
    %v73 = vld [vmem:[#allocation5 + $0x2c] sm:$0xf]
    %v74 = vld [vmem:[#allocation5 + $0x30] sm:$0xf]
    %v75 = vld [vmem:[#allocation5 + $0x34] sm:$0xf]
    %v76 = vld [vmem:[#allocation5 + $0x38] sm:$0xf]
    %v77 = vld [vmem:[#allocation5 + $0x3c] sm:$0xf]
    %v78 = vld [vmem:[#allocation5 + $0x40] sm:$0xf]
    %v79 = vld [vmem:[#allocation5 + $0x44] sm:$0xf]
    %v80 = vld [vmem:[#allocation5 + $0x48] sm:$0xf]
    %v81 = vld [vmem:[#allocation5 + $0x4c] sm:$0xf]
    %v82 = vld [vmem:[#allocation5 + $0x50] sm:$0xf]
    %v83 = vld [vmem:[#allocation5 + $0x54] sm:$0xf]
    %v84 = vld [vmem:[#allocation5 + $0x58] sm:$0xf]
    %v85 = vld [vmem:[#allocation5 + $0x5c] sm:$0xf]
    %v86 = vld [vmem:[#allocation5 + $0x60] sm:$0xf]
    %v87 = vld [vmem:[#allocation5 + $0x64] sm:$0xf]
    %v88 = vld [vmem:[#allocation5 + $0x68] sm:$0xf]
    %v89 = vld [vmem:[#allocation5 + $0x6c] sm:$0xf]
    %v90 = vld [vmem:[#allocation5 + $0x70] sm:$0xf]
    %v91 = vld [vmem:[#allocation5 + $0x74] sm:$0xf]
    %v92 = vld [vmem:[#allocation5 + $0x78] sm:$0xf]
    %v93 = vld [vmem:[#allocation5 + $0x7c] sm:$0xf]
    %v94 = vld [vmem:[#allocation7] sm:$0xf]
    %v95 = vld [vmem:[#allocation7 + $0x4] sm:$0xf]
    %v96 = vld [vmem:[#allocation7 + $0x8] sm:$0xf]
    %v97 = vld [vmem:[#allocation7 + $0xc] sm:$0xf]
    %v98 = vld [vmem:[#allocation7 + $0x10] sm:$0xf]
    %v99 = vld [vmem:[#allocation7 + $0x14] sm:$0xf]
    %v100 = vld [vmem:[#allocation7 + $0x18] sm:$0xf]
    %v101 = vld [vmem:[#allocation7 + $0x1c] sm:$0xf]
    %v102 = vld [vmem:[#allocation7 + $0x20] sm:$0xf]
    %v103 = vld [vmem:[#allocation7 + $0x24] sm:$0xf]
    %v104 = vld [vmem:[#allocation7 + $0x28] sm:$0xf]
    %v105 = vld [vmem:[#allocation7 + $0x2c] sm:$0xf]
    %v106 = vld [vmem:[#allocation7 + $0x30] sm:$0xf]
    %v107 = vld [vmem:[#allocation7 + $0x34] sm:$0xf]
    %v108 = vld [vmem:[#allocation7 + $0x38] sm:$0xf]
    %v109 = vld [vmem:[#allocation7 + $0x3c] sm:$0xf]
    %v110 = vld [vmem:[#allocation2] sm:$0xff]
    %v111 = vld [vmem:[#allocation2 + $0x8] sm:$0xff]
    %v112 = vld [vmem:[#allocation2 + $0x10] sm:$0xff]
    %v113 = vld [vmem:[#allocation2 + $0x18] sm:$0xff]
    %v114 = vld [vmem:[#allocation2 + $0x20] sm:$0xff]
    %v115 = vld [vmem:[#allocation2 + $0x28] sm:$0xff]
    %v116 = vld [vmem:[#allocation2 + $0x30] sm:$0xff]
    %v117 = vld [vmem:[#allocation2 + $0x38] sm:$0xff]
    %v118 = vld [vmem:[#allocation2 + $0x40] sm:$0xff]
    %v119 = vld [vmem:[#allocation2 + $0x48] sm:$0xff]
    %v120 = vld [vmem:[#allocation2 + $0x50] sm:$0xff]
    %v121 = vld [vmem:[#allocation2 + $0x58] sm:$0xff]
    %v122 = vld [vmem:[#allocation2 + $0x60] sm:$0xff]
    %v123 = vld [vmem:[#allocation2 + $0x68] sm:$0xff]
    %v124 = vld [vmem:[#allocation2 + $0x70] sm:$0xff]
    %v125 = vld [vmem:[#allocation2 + $0x78] sm:$0xff]
    %v142 = vunpack.c.l.b16 %v110
    %v143 = vunpack.c.h.b16 %v110
    %v144 = vunpack.c.l.b16 %v111
    %v145 = vunpack.c.h.b16 %v111
    %v146 = vunpack.c.l.b16 %v112
    %v147 = vunpack.c.h.b16 %v112
    %v148 = vunpack.c.l.b16 %v113
    %v149 = vunpack.c.h.b16 %v113
    %v150 = vunpack.c.l.b16 %v114
    %v151 = vunpack.c.h.b16 %v114
    %v152 = vunpack.c.l.b16 %v115
    %v153 = vunpack.c.h.b16 %v115
    %v154 = vunpack.c.l.b16 %v116
    %v155 = vunpack.c.h.b16 %v116
    %v156 = vunpack.c.l.b16 %v117
    %v157 = vunpack.c.h.b16 %v117
    %v158 = vunpack.c.l.b16 %v118
    %v159 = vunpack.c.h.b16 %v118
    %v160 = vunpack.c.l.b16 %v119
    %v161 = vunpack.c.h.b16 %v119
    %v162 = vunpack.c.l.b16 %v120
    %v163 = vunpack.c.h.b16 %v120
    %v164 = vunpack.c.l.b16 %v121
    %v165 = vunpack.c.h.b16 %v121
    %v166 = vunpack.c.l.b16 %v122
    %v167 = vunpack.c.h.b16 %v122
    %v168 = vunpack.c.l.b16 %v123
    %v169 = vunpack.c.h.b16 %v123
    %v170 = vunpack.c.l.b16 %v124
    %v171 = vunpack.c.h.b16 %v124
    %v172 = vunpack.c.l.b16 %v125
    %v173 = vunpack.c.h.b16 %v125
    %v174 = vpack.c.b16 %v144, %v142
    %v175 = vpack.c.b16 %v145, %v143
    %v176 = vpack.c.b16 %v148, %v146
    %v177 = vpack.c.b16 %v149, %v147
    %v178 = vpack.c.b16 %v152, %v150
    %v179 = vpack.c.b16 %v153, %v151
    %v180 = vpack.c.b16 %v156, %v154
    %v181 = vpack.c.b16 %v157, %v155
    %v182 = vpack.c.b16 %v160, %v158
    %v183 = vpack.c.b16 %v161, %v159
    %v184 = vpack.c.b16 %v164, %v162
    %v185 = vpack.c.b16 %v165, %v163
    %v186 = vpack.c.b16 %v168, %v166
    %v187 = vpack.c.b16 %v169, %v167
    %v188 = vpack.c.b16 %v172, %v170
    %v189 = vpack.c.b16 %v173, %v171
    %v238 = vunpack.c.l.b16 %v62
    %v239 = vunpack.c.l.b16 %v63
    %v240 = vunpack.c.l.b16 %v64
    %v241 = vunpack.c.l.b16 %v65
    %v242 = vunpack.c.l.b16 %v66
    %v243 = vunpack.c.l.b16 %v67
    %v244 = vunpack.c.l.b16 %v68
    %v245 = vunpack.c.l.b16 %v69
    %v246 = vunpack.c.l.b16 %v70
    %v247 = vunpack.c.l.b16 %v71
    %v248 = vunpack.c.l.b16 %v72
    %v249 = vunpack.c.l.b16 %v73
    %v250 = vunpack.c.l.b16 %v74
    %v251 = vunpack.c.l.b16 %v75
    %v252 = vunpack.c.l.b16 %v76
    %v253 = vunpack.c.l.b16 %v77
    %v254 = vunpack.c.l.b16 %v78
    %v255 = vunpack.c.l.b16 %v79
    %v256 = vunpack.c.l.b16 %v80
    %v257 = vunpack.c.l.b16 %v81
    %v258 = vunpack.c.l.b16 %v82
    %v259 = vunpack.c.l.b16 %v83
    %v260 = vunpack.c.l.b16 %v84
    %v261 = vunpack.c.l.b16 %v85
    %v262 = vunpack.c.l.b16 %v86
    %v263 = vunpack.c.l.b16 %v87
    %v264 = vunpack.c.l.b16 %v88
    %v265 = vunpack.c.l.b16 %v89
    %v266 = vunpack.c.l.b16 %v90
    %v267 = vunpack.c.l.b16 %v91
    %v268 = vunpack.c.l.b16 %v92
    %v269 = vunpack.c.l.b16 %v93
    %v270 = vpack.c.b16 %v239, %v238
    %v271 = vpack.c.b16 %v241, %v240
    %v272 = vpack.c.b16 %v243, %v242
    %v273 = vpack.c.b16 %v245, %v244
    %v274 = vpack.c.b16 %v247, %v246
    %v275 = vpack.c.b16 %v249, %v248
    %v276 = vpack.c.b16 %v251, %v250
    %v277 = vpack.c.b16 %v253, %v252
    %v278 = vpack.c.b16 %v255, %v254
    %v279 = vpack.c.b16 %v257, %v256
    %v280 = vpack.c.b16 %v259, %v258
    %v281 = vpack.c.b16 %v261, %v260
    %v282 = vpack.c.b16 %v263, %v262
    %v283 = vpack.c.b16 %v265, %v264
    %v284 = vpack.c.b16 %v267, %v266
    %v285 = vpack.c.b16 %v269, %v268
    %302 = vmatpush.bf16.msra.mxu0 %v277
    %303 = vmatpush.bf16.msra.mxu0 %v276
    %304 = vmatpush.bf16.msra.mxu0 %v275
    %305 = vmatpush.bf16.msra.mxu0 %v274
    %306 = vmatpush.bf16.msra.mxu0 %v273
    %307 = vmatpush.bf16.msra.mxu0 %v272
    %308 = vmatpush.bf16.msra.mxu0 %v271
    %309 = vmatpush.bf16.msra.mxu0 %v270
    %310 = vmatmul.bf16.gmra.mxu0 %v174
    %v311 = vpop.f32.mrf.mxu0
    %v312 = vadd.f32 0.0, %v311
    %v313 = vpop.f32.mrf.mxu0
    %v314 = vadd.f32 0.0, %v313
    %315 = vmatmul.bf16.gmra.mxu0 %v176
    %v316 = vpop.f32.mrf.mxu0
    %v317 = vadd.f32 0.0, %v316
    %v318 = vpop.f32.mrf.mxu0
    %v319 = vadd.f32 0.0, %v318
    %320 = vmatmul.bf16.gmra.mxu0 %v178
    %v321 = vpop.f32.mrf.mxu0
    %v322 = vadd.f32 0.0, %v321
    %v323 = vpop.f32.mrf.mxu0
    %v324 = vadd.f32 0.0, %v323
    %325 = vmatmul.bf16.gmra.mxu0 %v180
    %v326 = vpop.f32.mrf.mxu0
    %v327 = vadd.f32 0.0, %v326
    %v328 = vpop.f32.mrf.mxu0
    %v329 = vadd.f32 0.0, %v328
    %330 = vmatmul.bf16.gmra.mxu0 %v182
    %v331 = vpop.f32.mrf.mxu0
    %v332 = vadd.f32 0.0, %v331
    %v333 = vpop.f32.mrf.mxu0
    %v334 = vadd.f32 0.0, %v333
    %335 = vmatmul.bf16.gmra.mxu0 %v184
    %v336 = vpop.f32.mrf.mxu0
    %v337 = vadd.f32 0.0, %v336
    %v338 = vpop.f32.mrf.mxu0
    %v339 = vadd.f32 0.0, %v338
    %340 = vmatmul.bf16.gmra.mxu0 %v186
    %v341 = vpop.f32.mrf.mxu0
    %v342 = vadd.f32 0.0, %v341
    %v343 = vpop.f32.mrf.mxu0
    %v344 = vadd.f32 0.0, %v343
    %345 = vmatmul.bf16.gmra.mxu0 %v188
    %v346 = vpop.f32.mrf.mxu0
    %v347 = vadd.f32 0.0, %v346
    %v348 = vpop.f32.mrf.mxu0
    %v349 = vadd.f32 0.0, %v348
    %350 = vdwg.mxu0
    %351 = vmatpush.bf16.msra.mxu0 %v285
    %352 = vmatpush.bf16.msra.mxu0 %v284
    %353 = vmatpush.bf16.msra.mxu0 %v283
    %354 = vmatpush.bf16.msra.mxu0 %v282
    %355 = vmatpush.bf16.msra.mxu0 %v281
    %356 = vmatpush.bf16.msra.mxu0 %v280
    %357 = vmatpush.bf16.msra.mxu0 %v279
    %358 = vmatpush.bf16.msra.mxu0 %v278
    %359 = vmatmul.bf16.gmra.mxu0 %v175
    %v360 = vpop.f32.mrf.mxu0
    %v361 = vadd.f32 %v312, %v360
    %v362 = vpop.f32.mrf.mxu0
    %v363 = vadd.f32 %v314, %v362
    %364 = vmatmul.bf16.gmra.mxu0 %v177
    %v365 = vpop.f32.mrf.mxu0
    %v366 = vadd.f32 %v317, %v365
    %v367 = vpop.f32.mrf.mxu0
    %v368 = vadd.f32 %v319, %v367
    %369 = vmatmul.bf16.gmra.mxu0 %v179
    %v370 = vpop.f32.mrf.mxu0
    %v371 = vadd.f32 %v322, %v370
    %v372 = vpop.f32.mrf.mxu0
    %v373 = vadd.f32 %v324, %v372
    %374 = vmatmul.bf16.gmra.mxu0 %v181
    %v375 = vpop.f32.mrf.mxu0
    %v376 = vadd.f32 %v327, %v375
    %v377 = vpop.f32.mrf.mxu0
    %v378 = vadd.f32 %v329, %v377
    %379 = vmatmul.bf16.gmra.mxu0 %v183
    %v380 = vpop.f32.mrf.mxu0
    %v381 = vadd.f32 %v332, %v380
    %v382 = vpop.f32.mrf.mxu0
    %v383 = vadd.f32 %v334, %v382
    %384 = vmatmul.bf16.gmra.mxu0 %v185
    %v385 = vpop.f32.mrf.mxu0
    %v386 = vadd.f32 %v337, %v385
    %v387 = vpop.f32.mrf.mxu0
    %v388 = vadd.f32 %v339, %v387
    %389 = vmatmul.bf16.gmra.mxu0 %v187
    %v390 = vpop.f32.mrf.mxu0
    %v391 = vadd.f32 %v342, %v390
    %v392 = vpop.f32.mrf.mxu0
    %v393 = vadd.f32 %v344, %v392
    %394 = vmatmul.bf16.gmra.mxu0 %v189
    %v395 = vpop.f32.mrf.mxu0
    %v396 = vadd.f32 %v347, %v395
    %v397 = vpop.f32.mrf.mxu0
    %v398 = vadd.f32 %v349, %v397
    %399 = vdwg.mxu0
    %v400 = vmax.f32 %v361, 0.0
    %v401 = vmax.f32 %v363, 0.0
    %v402 = vmax.f32 %v366, 0.0
    %v403 = vmax.f32 %v368, 0.0
    %v404 = vmax.f32 %v371, 0.0
    %v405 = vmax.f32 %v373, 0.0
    %v406 = vmax.f32 %v376, 0.0
    %v407 = vmax.f32 %v378, 0.0
    %v408 = vmax.f32 %v381, 0.0
    %v409 = vmax.f32 %v383, 0.0
    %v410 = vmax.f32 %v386, 0.0
    %v411 = vmax.f32 %v388, 0.0
    %v412 = vmax.f32 %v391, 0.0
    %v413 = vmax.f32 %v393, 0.0
    %v414 = vmax.f32 %v396, 0.0
    %v415 = vmax.f32 %v398, 0.0
    %v416 = vmin.f32 %v400, 1.0
    %v417 = vmin.f32 %v401, 1.0
    %v418 = vmin.f32 %v402, 1.0
    %v419 = vmin.f32 %v403, 1.0
    %v420 = vmin.f32 %v404, 1.0
    %v421 = vmin.f32 %v405, 1.0
    %v422 = vmin.f32 %v406, 1.0
    %v423 = vmin.f32 %v407, 1.0
    %v424 = vmin.f32 %v408, 1.0
    %v425 = vmin.f32 %v409, 1.0
    %v426 = vmin.f32 %v410, 1.0
    %v427 = vmin.f32 %v411, 1.0
    %v428 = vmin.f32 %v412, 1.0
    %v429 = vmin.f32 %v413, 1.0
    %v430 = vmin.f32 %v414, 1.0
    %v431 = vmin.f32 %v415, 1.0
    %v432 = vld [vmem:[#allocation2 + $0x80] sm:$0xff]
    %v433 = vld [vmem:[#allocation2 + $0x88] sm:$0xff]
    %v434 = vld [vmem:[#allocation2 + $0x90] sm:$0xff]
    %v435 = vld [vmem:[#allocation2 + $0x98] sm:$0xff]
    %v436 = vld [vmem:[#allocation2 + $0xa0] sm:$0xff]
    %v437 = vld [vmem:[#allocation2 + $0xa8] sm:$0xff]
    %v438 = vld [vmem:[#allocation2 + $0xb0] sm:$0xff]
    %v439 = vld [vmem:[#allocation2 + $0xb8] sm:$0xff]
    %v440 = vld [vmem:[#allocation2 + $0xc0] sm:$0xff]
    %v441 = vld [vmem:[#allocation2 + $0xc8] sm:$0xff]
    %v442 = vld [vmem:[#allocation2 + $0xd0] sm:$0xff]
    %v443 = vld [vmem:[#allocation2 + $0xd8] sm:$0xff]
    %v444 = vld [vmem:[#allocation2 + $0xe0] sm:$0xff]
    %v445 = vld [vmem:[#allocation2 + $0xe8] sm:$0xff]
    %v446 = vld [vmem:[#allocation2 + $0xf0] sm:$0xff]
    %v447 = vld [vmem:[#allocation2 + $0xf8] sm:$0xff]
    %v464 = vunpack.c.l.b16 %v432
    %v465 = vunpack.c.h.b16 %v432
    %v466 = vunpack.c.l.b16 %v433
    %v467 = vunpack.c.h.b16 %v433
    %v468 = vunpack.c.l.b16 %v434
    %v469 = vunpack.c.h.b16 %v434
    %v470 = vunpack.c.l.b16 %v435
    %v471 = vunpack.c.h.b16 %v435
    %v472 = vunpack.c.l.b16 %v436
    %v473 = vunpack.c.h.b16 %v436
    %v474 = vunpack.c.l.b16 %v437
    %v475 = vunpack.c.h.b16 %v437
    %v476 = vunpack.c.l.b16 %v438
    %v477 = vunpack.c.h.b16 %v438
    %v478 = vunpack.c.l.b16 %v439
    %v479 = vunpack.c.h.b16 %v439
    %v480 = vunpack.c.l.b16 %v440
    %v481 = vunpack.c.h.b16 %v440
    %v482 = vunpack.c.l.b16 %v441
    %v483 = vunpack.c.h.b16 %v441
    %v484 = vunpack.c.l.b16 %v442
    %v485 = vunpack.c.h.b16 %v442
    %v486 = vunpack.c.l.b16 %v443
    %v487 = vunpack.c.h.b16 %v443
    %v488 = vunpack.c.l.b16 %v444
    %v489 = vunpack.c.h.b16 %v444
    %v490 = vunpack.c.l.b16 %v445
    %v491 = vunpack.c.h.b16 %v445
    %v492 = vunpack.c.l.b16 %v446
    %v493 = vunpack.c.h.b16 %v446
    %v494 = vunpack.c.l.b16 %v447
    %v495 = vunpack.c.h.b16 %v447
    %v496 = vpack.c.b16 %v466, %v464
    %v497 = vpack.c.b16 %v467, %v465
    %v498 = vpack.c.b16 %v470, %v468
    %v499 = vpack.c.b16 %v471, %v469
    %v500 = vpack.c.b16 %v474, %v472
    %v501 = vpack.c.b16 %v475, %v473
    %v502 = vpack.c.b16 %v478, %v476
    %v503 = vpack.c.b16 %v479, %v477
    %v504 = vpack.c.b16 %v482, %v480
    %v505 = vpack.c.b16 %v483, %v481
    %v506 = vpack.c.b16 %v486, %v484
    %v507 = vpack.c.b16 %v487, %v485
    %v508 = vpack.c.b16 %v490, %v488
    %v509 = vpack.c.b16 %v491, %v489
    %v510 = vpack.c.b16 %v494, %v492
    %v511 = vpack.c.b16 %v495, %v493
    %528 = vmatpush.bf16.msra.mxu0 %v277
    %529 = vmatpush.bf16.msra.mxu0 %v276
    %530 = vmatpush.bf16.msra.mxu0 %v275
    %531 = vmatpush.bf16.msra.mxu0 %v274
    %532 = vmatpush.bf16.msra.mxu0 %v273
    %533 = vmatpush.bf16.msra.mxu0 %v272
    %534 = vmatpush.bf16.msra.mxu0 %v271
    %535 = vmatpush.bf16.msra.mxu0 %v270
    %536 = vmatmul.bf16.gmra.mxu0 %v496
    %v537 = vpop.f32.mrf.mxu0
    %v538 = vadd.f32 0.0, %v537
    %v539 = vpop.f32.mrf.mxu0
    %v540 = vadd.f32 0.0, %v539
    %541 = vmatmul.bf16.gmra.mxu0 %v498
    %v542 = vpop.f32.mrf.mxu0
    %v543 = vadd.f32 0.0, %v542
    %v544 = vpop.f32.mrf.mxu0
    %v545 = vadd.f32 0.0, %v544
    %546 = vmatmul.bf16.gmra.mxu0 %v500
    %v547 = vpop.f32.mrf.mxu0
    %v548 = vadd.f32 0.0, %v547
    %v549 = vpop.f32.mrf.mxu0
    %v550 = vadd.f32 0.0, %v549
    %551 = vmatmul.bf16.gmra.mxu0 %v502
    %v552 = vpop.f32.mrf.mxu0
    %v553 = vadd.f32 0.0, %v552
    %v554 = vpop.f32.mrf.mxu0
    %v555 = vadd.f32 0.0, %v554
    %556 = vmatmul.bf16.gmra.mxu0 %v504
    %v557 = vpop.f32.mrf.mxu0
    %v558 = vadd.f32 0.0, %v557
    %v559 = vpop.f32.mrf.mxu0
    %v560 = vadd.f32 0.0, %v559
    %561 = vmatmul.bf16.gmra.mxu0 %v506
    %v562 = vpop.f32.mrf.mxu0
    %v563 = vadd.f32 0.0, %v562
    %v564 = vpop.f32.mrf.mxu0
    %v565 = vadd.f32 0.0, %v564
    %566 = vmatmul.bf16.gmra.mxu0 %v508
    %v567 = vpop.f32.mrf.mxu0
    %v568 = vadd.f32 0.0, %v567
    %v569 = vpop.f32.mrf.mxu0
    %v570 = vadd.f32 0.0, %v569
    %571 = vmatmul.bf16.gmra.mxu0 %v510
    %v572 = vpop.f32.mrf.mxu0
    %v573 = vadd.f32 0.0, %v572
    %v574 = vpop.f32.mrf.mxu0
    %v575 = vadd.f32 0.0, %v574
    %576 = vdwg.mxu0
    %577 = vmatpush.bf16.msra.mxu0 %v285
    %578 = vmatpush.bf16.msra.mxu0 %v284
    %579 = vmatpush.bf16.msra.mxu0 %v283
    %580 = vmatpush.bf16.msra.mxu0 %v282
    %581 = vmatpush.bf16.msra.mxu0 %v281
    %582 = vmatpush.bf16.msra.mxu0 %v280
    %583 = vmatpush.bf16.msra.mxu0 %v279
    %584 = vmatpush.bf16.msra.mxu0 %v278
    %585 = vmatmul.bf16.gmra.mxu0 %v497
    %v586 = vpop.f32.mrf.mxu0
    %v587 = vadd.f32 %v538, %v586
    %v588 = vpop.f32.mrf.mxu0
    %v589 = vadd.f32 %v540, %v588
    %590 = vmatmul.bf16.gmra.mxu0 %v499
    %v591 = vpop.f32.mrf.mxu0
    %v592 = vadd.f32 %v543, %v591
    %v593 = vpop.f32.mrf.mxu0
    %v594 = vadd.f32 %v545, %v593
    %595 = vmatmul.bf16.gmra.mxu0 %v501
    %v596 = vpop.f32.mrf.mxu0
    %v597 = vadd.f32 %v548, %v596
    %v598 = vpop.f32.mrf.mxu0
    %v599 = vadd.f32 %v550, %v598
    %600 = vmatmul.bf16.gmra.mxu0 %v503
    %v601 = vpop.f32.mrf.mxu0
    %v602 = vadd.f32 %v553, %v601
    %v603 = vpop.f32.mrf.mxu0
    %v604 = vadd.f32 %v555, %v603
    %605 = vmatmul.bf16.gmra.mxu0 %v505
    %v606 = vpop.f32.mrf.mxu0
    %v607 = vadd.f32 %v558, %v606
    %v608 = vpop.f32.mrf.mxu0
    %v609 = vadd.f32 %v560, %v608
    %610 = vmatmul.bf16.gmra.mxu0 %v507
    %v611 = vpop.f32.mrf.mxu0
    %v612 = vadd.f32 %v563, %v611
    %v613 = vpop.f32.mrf.mxu0
    %v614 = vadd.f32 %v565, %v613
    %615 = vmatmul.bf16.gmra.mxu0 %v509
    %v616 = vpop.f32.mrf.mxu0
    %v617 = vadd.f32 %v568, %v616
    %v618 = vpop.f32.mrf.mxu0
    %v619 = vadd.f32 %v570, %v618
    %620 = vmatmul.bf16.gmra.mxu0 %v511
    %v621 = vpop.f32.mrf.mxu0
    %v622 = vadd.f32 %v573, %v621
    %v623 = vpop.f32.mrf.mxu0
    %v624 = vadd.f32 %v575, %v623
    %625 = vdwg.mxu0
    %v626 = vmax.f32 %v587, 0.0
    %v627 = vmax.f32 %v589, 0.0
    %v628 = vmax.f32 %v592, 0.0
    %v629 = vmax.f32 %v594, 0.0
    %v630 = vmax.f32 %v597, 0.0
    %v631 = vmax.f32 %v599, 0.0
    %v632 = vmax.f32 %v602, 0.0
    %v633 = vmax.f32 %v604, 0.0
    %v634 = vmax.f32 %v607, 0.0
    %v635 = vmax.f32 %v609, 0.0
    %v636 = vmax.f32 %v612, 0.0
    %v637 = vmax.f32 %v614, 0.0
    %v638 = vmax.f32 %v617, 0.0
    %v639 = vmax.f32 %v619, 0.0
    %v640 = vmax.f32 %v622, 0.0
    %v641 = vmax.f32 %v624, 0.0
    %v642 = vmin.f32 %v626, 1.0
    %v643 = vmin.f32 %v627, 1.0
    %v644 = vmin.f32 %v628, 1.0
    %v645 = vmin.f32 %v629, 1.0
    %v646 = vmin.f32 %v630, 1.0
    %v647 = vmin.f32 %v631, 1.0
    %v648 = vmin.f32 %v632, 1.0
    %v649 = vmin.f32 %v633, 1.0
    %v650 = vmin.f32 %v634, 1.0
    %v651 = vmin.f32 %v635, 1.0
    %v652 = vmin.f32 %v636, 1.0
    %v653 = vmin.f32 %v637, 1.0
    %v654 = vmin.f32 %v638, 1.0
    %v655 = vmin.f32 %v639, 1.0
    %v656 = vmin.f32 %v640, 1.0
    %v657 = vmin.f32 %v641, 1.0
    %v658 = vpack.c.bf16 %v417, %v416
    %v659 = vpack.c.bf16 %v419, %v418
    %v660 = vpack.c.bf16 %v421, %v420
    %v661 = vpack.c.bf16 %v423, %v422
    %v662 = vpack.c.bf16 %v425, %v424
    %v663 = vpack.c.bf16 %v427, %v426
    %v664 = vpack.c.bf16 %v429, %v428
    %v665 = vpack.c.bf16 %v431, %v430
    %v682 = vunpack.c.l.b16 %v94
    %v683 = vunpack.c.l.b16 %v95
    %v684 = vunpack.c.l.b16 %v96
    %v685 = vunpack.c.l.b16 %v97
    %v686 = vunpack.c.l.b16 %v98
    %v687 = vunpack.c.l.b16 %v99
    %v688 = vunpack.c.l.b16 %v100
    %v689 = vunpack.c.l.b16 %v101
    %v690 = vunpack.c.l.b16 %v102
    %v691 = vunpack.c.l.b16 %v103
    %v692 = vunpack.c.l.b16 %v104
    %v693 = vunpack.c.l.b16 %v105
    %v694 = vunpack.c.l.b16 %v106
    %v695 = vunpack.c.l.b16 %v107
    %v696 = vunpack.c.l.b16 %v108
    %v697 = vunpack.c.l.b16 %v109
    %v698 = vpack.c.b16 %v683, %v682
    %v699 = vpack.c.b16 %v685, %v684
    %v700 = vpack.c.b16 %v687, %v686
    %v701 = vpack.c.b16 %v689, %v688
    %v702 = vpack.c.b16 %v691, %v690
    %v703 = vpack.c.b16 %v693, %v692
    %v704 = vpack.c.b16 %v695, %v694
    %v705 = vpack.c.b16 %v697, %v696
    %714 = vmatpush.bf16.msra.mxu0 %v705
    %715 = vmatpush.bf16.msra.mxu0 %v704
    %716 = vmatpush.bf16.msra.mxu0 %v703
    %717 = vmatpush.bf16.msra.mxu0 %v702
    %718 = vmatpush.bf16.msra.mxu0 %v701
    %719 = vmatpush.bf16.msra.mxu0 %v700
    %720 = vmatpush.bf16.msra.mxu0 %v699
    %721 = vmatpush.bf16.msra.mxu0 %v698
    %722 = vmatmul.bf16.gmra.mxu0 %v658
    %v723 = vpop.f32.mrf.mxu0
    %v724 = vadd.f32 0.0, %v723
    %v725 = vpop.f32.mrf.mxu0
    %v726 = vadd.f32 0.0, %v725
    %727 = vmatmul.bf16.gmra.mxu0 %v659
    %v728 = vpop.f32.mrf.mxu0
    %v729 = vadd.f32 0.0, %v728
    %v730 = vpop.f32.mrf.mxu0
    %v731 = vadd.f32 0.0, %v730
    %732 = vmatmul.bf16.gmra.mxu0 %v660
    %v733 = vpop.f32.mrf.mxu0
    %v734 = vadd.f32 0.0, %v733
    %v735 = vpop.f32.mrf.mxu0
    %v736 = vadd.f32 0.0, %v735
    %737 = vmatmul.bf16.gmra.mxu0 %v661
    %v738 = vpop.f32.mrf.mxu0
    %v739 = vadd.f32 0.0, %v738
    %v740 = vpop.f32.mrf.mxu0
    %v741 = vadd.f32 0.0, %v740
    %742 = vmatmul.bf16.gmra.mxu0 %v662
    %v743 = vpop.f32.mrf.mxu0
    %v744 = vadd.f32 0.0, %v743
    %v745 = vpop.f32.mrf.mxu0
    %v746 = vadd.f32 0.0, %v745
    %747 = vmatmul.bf16.gmra.mxu0 %v663
    %v748 = vpop.f32.mrf.mxu0
    %v749 = vadd.f32 0.0, %v748
    %v750 = vpop.f32.mrf.mxu0
    %v751 = vadd.f32 0.0, %v750
    %752 = vmatmul.bf16.gmra.mxu0 %v664
    %v753 = vpop.f32.mrf.mxu0
    %v754 = vadd.f32 0.0, %v753
    %v755 = vpop.f32.mrf.mxu0
    %v756 = vadd.f32 0.0, %v755
    %757 = vmatmul.bf16.gmra.mxu0 %v665
    %v758 = vpop.f32.mrf.mxu0
    %v759 = vadd.f32 0.0, %v758
    %v760 = vpop.f32.mrf.mxu0
    %v761 = vadd.f32 0.0, %v760
    %762 = vdwg.mxu0
    %v763 = vadd.f32 %v361, %v724
    %v764 = vadd.f32 %v363, %v726
    %v765 = vadd.f32 %v366, %v729
    %v766 = vadd.f32 %v368, %v731
    %v767 = vadd.f32 %v371, %v734
    %v768 = vadd.f32 %v373, %v736
    %v769 = vadd.f32 %v376, %v739
    %v770 = vadd.f32 %v378, %v741
    %v771 = vadd.f32 %v381, %v744
    %v772 = vadd.f32 %v383, %v746
    %v773 = vadd.f32 %v386, %v749
    %v774 = vadd.f32 %v388, %v751
    %v775 = vadd.f32 %v391, %v754
    %v776 = vadd.f32 %v393, %v756
    %v777 = vadd.f32 %v396, %v759
    %v778 = vadd.f32 %v398, %v761
    %v779 = vmax.f32 %v763, 0.0
    %v780 = vmax.f32 %v764, 0.0
    %v781 = vmax.f32 %v765, 0.0
    %v782 = vmax.f32 %v766, 0.0
    %v783 = vmax.f32 %v767, 0.0
    %v784 = vmax.f32 %v768, 0.0
    %v785 = vmax.f32 %v769, 0.0
    %v786 = vmax.f32 %v770, 0.0
    %v787 = vmax.f32 %v771, 0.0
    %v788 = vmax.f32 %v772, 0.0
    %v789 = vmax.f32 %v773, 0.0
    %v790 = vmax.f32 %v774, 0.0
    %v791 = vmax.f32 %v775, 0.0
    %v792 = vmax.f32 %v776, 0.0
    %v793 = vmax.f32 %v777, 0.0
    %v794 = vmax.f32 %v778, 0.0
    %v795 = vmin.f32 %v779, 1.0
    %v796 = vmin.f32 %v780, 1.0
    %v797 = vmin.f32 %v781, 1.0
    %v798 = vmin.f32 %v782, 1.0
    %v799 = vmin.f32 %v783, 1.0
    %v800 = vmin.f32 %v784, 1.0
    %v801 = vmin.f32 %v785, 1.0
    %v802 = vmin.f32 %v786, 1.0
    %v803 = vmin.f32 %v787, 1.0
    %v804 = vmin.f32 %v788, 1.0
    %v805 = vmin.f32 %v789, 1.0
    %v806 = vmin.f32 %v790, 1.0
    %v807 = vmin.f32 %v791, 1.0
    %v808 = vmin.f32 %v792, 1.0
    %v809 = vmin.f32 %v793, 1.0
    %v810 = vmin.f32 %v794, 1.0
    %v811 = vpack.c.bf16 %v643, %v642
    %v812 = vpack.c.bf16 %v645, %v644
    %v813 = vpack.c.bf16 %v647, %v646
    %v814 = vpack.c.bf16 %v649, %v648
    %v815 = vpack.c.bf16 %v651, %v650
    %v816 = vpack.c.bf16 %v653, %v652
    %v817 = vpack.c.bf16 %v655, %v654
    %v818 = vpack.c.bf16 %v657, %v656
    %819 = vmatpush.bf16.msra.mxu0 %v705
    %820 = vmatpush.bf16.msra.mxu0 %v704
    %821 = vmatpush.bf16.msra.mxu0 %v703
    %822 = vmatpush.bf16.msra.mxu0 %v702
    %823 = vmatpush.bf16.msra.mxu0 %v701
    %824 = vmatpush.bf16.msra.mxu0 %v700
    %825 = vmatpush.bf16.msra.mxu0 %v699
    %826 = vmatpush.bf16.msra.mxu0 %v698
    %827 = vmatmul.bf16.gmra.mxu0 %v811
    %v828 = vpop.f32.mrf.mxu0
    %v829 = vadd.f32 0.0, %v828
    %v830 = vpop.f32.mrf.mxu0
    %v831 = vadd.f32 0.0, %v830
    %832 = vmatmul.bf16.gmra.mxu0 %v812
    %v833 = vpop.f32.mrf.mxu0
    %v834 = vadd.f32 0.0, %v833
    %v835 = vpop.f32.mrf.mxu0
    %v836 = vadd.f32 0.0, %v835
    %837 = vmatmul.bf16.gmra.mxu0 %v813
    %v838 = vpop.f32.mrf.mxu0
    %v839 = vadd.f32 0.0, %v838
    %v840 = vpop.f32.mrf.mxu0
    %v841 = vadd.f32 0.0, %v840
    %842 = vmatmul.bf16.gmra.mxu0 %v814
    %v843 = vpop.f32.mrf.mxu0
    %v844 = vadd.f32 0.0, %v843
    %v845 = vpop.f32.mrf.mxu0
    %v846 = vadd.f32 0.0, %v845
    %847 = vmatmul.bf16.gmra.mxu0 %v815
    %v848 = vpop.f32.mrf.mxu0
    %v849 = vadd.f32 0.0, %v848
    %v850 = vpop.f32.mrf.mxu0
    %v851 = vadd.f32 0.0, %v850
    %852 = vmatmul.bf16.gmra.mxu0 %v816
    %v853 = vpop.f32.mrf.mxu0
    %v854 = vadd.f32 0.0, %v853
    %v855 = vpop.f32.mrf.mxu0
    %v856 = vadd.f32 0.0, %v855
    %857 = vmatmul.bf16.gmra.mxu0 %v817
    %v858 = vpop.f32.mrf.mxu0
    %v859 = vadd.f32 0.0, %v858
    %v860 = vpop.f32.mrf.mxu0
    %v861 = vadd.f32 0.0, %v860
    %862 = vmatmul.bf16.gmra.mxu0 %v818
    %v863 = vpop.f32.mrf.mxu0
    %v864 = vadd.f32 0.0, %v863
    %v865 = vpop.f32.mrf.mxu0
    %v866 = vadd.f32 0.0, %v865
    %867 = vdwg.mxu0
    %v868 = vadd.f32 %v587, %v829
    %v869 = vadd.f32 %v589, %v831
    %v870 = vadd.f32 %v592, %v834
    %v871 = vadd.f32 %v594, %v836
    %v872 = vadd.f32 %v597, %v839
    %v873 = vadd.f32 %v599, %v841
    %v874 = vadd.f32 %v602, %v844
    %v875 = vadd.f32 %v604, %v846
    %v876 = vadd.f32 %v607, %v849
    %v877 = vadd.f32 %v609, %v851
    %v878 = vadd.f32 %v612, %v854
    %v879 = vadd.f32 %v614, %v856
    %v880 = vadd.f32 %v617, %v859
    %v881 = vadd.f32 %v619, %v861
    %v882 = vadd.f32 %v622, %v864
    %v883 = vadd.f32 %v624, %v866
    %v884 = vmax.f32 %v868, 0.0
    %v885 = vmax.f32 %v869, 0.0
    %v886 = vmax.f32 %v870, 0.0
    %v887 = vmax.f32 %v871, 0.0
    %v888 = vmax.f32 %v872, 0.0
    %v889 = vmax.f32 %v873, 0.0
    %v890 = vmax.f32 %v874, 0.0
    %v891 = vmax.f32 %v875, 0.0
    %v892 = vmax.f32 %v876, 0.0
    %v893 = vmax.f32 %v877, 0.0
    %v894 = vmax.f32 %v878, 0.0
    %v895 = vmax.f32 %v879, 0.0
    %v896 = vmax.f32 %v880, 0.0
    %v897 = vmax.f32 %v881, 0.0
    %v898 = vmax.f32 %v882, 0.0
    %v899 = vmax.f32 %v883, 0.0
    %v900 = vmin.f32 %v884, 1.0
    %v901 = vmin.f32 %v885, 1.0
    %v902 = vmin.f32 %v886, 1.0
    %v903 = vmin.f32 %v887, 1.0
    %v904 = vmin.f32 %v888, 1.0
    %v905 = vmin.f32 %v889, 1.0
    %v906 = vmin.f32 %v890, 1.0
    %v907 = vmin.f32 %v891, 1.0
    %v908 = vmin.f32 %v892, 1.0
    %v909 = vmin.f32 %v893, 1.0
    %v910 = vmin.f32 %v894, 1.0
    %v911 = vmin.f32 %v895, 1.0
    %v912 = vmin.f32 %v896, 1.0
    %v913 = vmin.f32 %v897, 1.0
    %v914 = vmin.f32 %v898, 1.0
    %v915 = vmin.f32 %v899, 1.0
    %v916 = vpack.c.bf16 %v796, %v795
    %v917 = vpack.c.bf16 %v798, %v797
    %v918 = vpack.c.bf16 %v800, %v799
    %v919 = vpack.c.bf16 %v802, %v801
    %v920 = vpack.c.bf16 %v804, %v803
    %v921 = vpack.c.bf16 %v806, %v805
    %v922 = vpack.c.bf16 %v808, %v807
    %v923 = vpack.c.bf16 %v810, %v809
    %924 = vmatpush.bf16.msra.mxu0 %v705
    %925 = vmatpush.bf16.msra.mxu0 %v704
    %926 = vmatpush.bf16.msra.mxu0 %v703
    %927 = vmatpush.bf16.msra.mxu0 %v702
    %928 = vmatpush.bf16.msra.mxu0 %v701
    %929 = vmatpush.bf16.msra.mxu0 %v700
    %930 = vmatpush.bf16.msra.mxu0 %v699
    %931 = vmatpush.bf16.msra.mxu0 %v698
    %932 = vmatmul.bf16.gmra.mxu0 %v916
    %v933 = vpop.f32.mrf.mxu0
    %v934 = vadd.f32 0.0, %v933
    %v935 = vpop.f32.mrf.mxu0
    %v936 = vadd.f32 0.0, %v935
    %937 = vmatmul.bf16.gmra.mxu0 %v917
    %v938 = vpop.f32.mrf.mxu0
    %v939 = vadd.f32 0.0, %v938
    %v940 = vpop.f32.mrf.mxu0
    %v941 = vadd.f32 0.0, %v940
    %942 = vmatmul.bf16.gmra.mxu0 %v918
    %v943 = vpop.f32.mrf.mxu0
    %v944 = vadd.f32 0.0, %v943
    %v945 = vpop.f32.mrf.mxu0
    %v946 = vadd.f32 0.0, %v945
    %947 = vmatmul.bf16.gmra.mxu0 %v919
    %v948 = vpop.f32.mrf.mxu0
    %v949 = vadd.f32 0.0, %v948
    %v950 = vpop.f32.mrf.mxu0
    %v951 = vadd.f32 0.0, %v950
    %952 = vmatmul.bf16.gmra.mxu0 %v920
    %v953 = vpop.f32.mrf.mxu0
    %v954 = vadd.f32 0.0, %v953
    %v955 = vpop.f32.mrf.mxu0
    %v956 = vadd.f32 0.0, %v955
    %957 = vmatmul.bf16.gmra.mxu0 %v921
    %v958 = vpop.f32.mrf.mxu0
    %v959 = vadd.f32 0.0, %v958
    %v960 = vpop.f32.mrf.mxu0
    %v961 = vadd.f32 0.0, %v960
    %962 = vmatmul.bf16.gmra.mxu0 %v922
    %v963 = vpop.f32.mrf.mxu0
    %v964 = vadd.f32 0.0, %v963
    %v965 = vpop.f32.mrf.mxu0
    %v966 = vadd.f32 0.0, %v965
    %967 = vmatmul.bf16.gmra.mxu0 %v923
    %v968 = vpop.f32.mrf.mxu0
    %v969 = vadd.f32 0.0, %v968
    %v970 = vpop.f32.mrf.mxu0
    %v971 = vadd.f32 0.0, %v970
    %972 = vdwg.mxu0
    %v973 = vadd.f32 %v361, %v934
    %v974 = vadd.f32 %v363, %v936
    %v975 = vadd.f32 %v366, %v939
    %v976 = vadd.f32 %v368, %v941
    %v977 = vadd.f32 %v371, %v944
    %v978 = vadd.f32 %v373, %v946
    %v979 = vadd.f32 %v376, %v949
    %v980 = vadd.f32 %v378, %v951
    %v981 = vadd.f32 %v381, %v954
    %v982 = vadd.f32 %v383, %v956
    %v983 = vadd.f32 %v386, %v959
    %v984 = vadd.f32 %v388, %v961
    %v985 = vadd.f32 %v391, %v964
    %v986 = vadd.f32 %v393, %v966
    %v987 = vadd.f32 %v396, %v969
    %v988 = vadd.f32 %v398, %v971
    %v989 = vmax.f32 %v973, 0.0
    %v990 = vmax.f32 %v974, 0.0
    %v991 = vmax.f32 %v975, 0.0
    %v992 = vmax.f32 %v976, 0.0
    %v993 = vmax.f32 %v977, 0.0
    %v994 = vmax.f32 %v978, 0.0
    %v995 = vmax.f32 %v979, 0.0
    %v996 = vmax.f32 %v980, 0.0
    %v997 = vmax.f32 %v981, 0.0
    %v998 = vmax.f32 %v982, 0.0
    %v999 = vmax.f32 %v983, 0.0
    %v1000 = vmax.f32 %v984, 0.0
    %v1001 = vmax.f32 %v985, 0.0
    %v1002 = vmax.f32 %v986, 0.0
    %v1003 = vmax.f32 %v987, 0.0
    %v1004 = vmax.f32 %v988, 0.0
    %v1005 = vmin.f32 %v989, 1.0
    %v1006 = vmin.f32 %v990, 1.0
    %v1007 = vmin.f32 %v991, 1.0
    %v1008 = vmin.f32 %v992, 1.0
    %v1009 = vmin.f32 %v993, 1.0
    %v1010 = vmin.f32 %v994, 1.0
    %v1011 = vmin.f32 %v995, 1.0
    %v1012 = vmin.f32 %v996, 1.0
    %v1013 = vmin.f32 %v997, 1.0
    %v1014 = vmin.f32 %v998, 1.0
    %v1015 = vmin.f32 %v999, 1.0
    %v1016 = vmin.f32 %v1000, 1.0
    %v1017 = vmin.f32 %v1001, 1.0
    %v1018 = vmin.f32 %v1002, 1.0
    %v1019 = vmin.f32 %v1003, 1.0
    %v1020 = vmin.f32 %v1004, 1.0
    %v1021 = vpack.c.bf16 %v901, %v900
    %v1022 = vpack.c.bf16 %v903, %v902
    %v1023 = vpack.c.bf16 %v905, %v904
    %v1024 = vpack.c.bf16 %v907, %v906
    %v1025 = vpack.c.bf16 %v909, %v908
    %v1026 = vpack.c.bf16 %v911, %v910
    %v1027 = vpack.c.bf16 %v913, %v912
    %v1028 = vpack.c.bf16 %v915, %v914
    %1029 = vmatpush.bf16.msra.mxu0 %v705
    %1030 = vmatpush.bf16.msra.mxu0 %v704
    %1031 = vmatpush.bf16.msra.mxu0 %v703
    %1032 = vmatpush.bf16.msra.mxu0 %v702
    %1033 = vmatpush.bf16.msra.mxu0 %v701
    %1034 = vmatpush.bf16.msra.mxu0 %v700
    %1035 = vmatpush.bf16.msra.mxu0 %v699
    %1036 = vmatpush.bf16.msra.mxu0 %v698
    %1037 = vmatmul.bf16.gmra.mxu0 %v1021
    %v1038 = vpop.f32.mrf.mxu0
    %v1039 = vadd.f32 0.0, %v1038
    %v1040 = vpop.f32.mrf.mxu0
    %v1041 = vadd.f32 0.0, %v1040
    %1042 = vmatmul.bf16.gmra.mxu0 %v1022
    %v1043 = vpop.f32.mrf.mxu0
    %v1044 = vadd.f32 0.0, %v1043
    %v1045 = vpop.f32.mrf.mxu0
    %v1046 = vadd.f32 0.0, %v1045
    %1047 = vmatmul.bf16.gmra.mxu0 %v1023
    %v1048 = vpop.f32.mrf.mxu0
    %v1049 = vadd.f32 0.0, %v1048
    %v1050 = vpop.f32.mrf.mxu0
    %v1051 = vadd.f32 0.0, %v1050
    %1052 = vmatmul.bf16.gmra.mxu0 %v1024
    %v1053 = vpop.f32.mrf.mxu0
    %v1054 = vadd.f32 0.0, %v1053
    %v1055 = vpop.f32.mrf.mxu0
    %v1056 = vadd.f32 0.0, %v1055
    %1057 = vmatmul.bf16.gmra.mxu0 %v1025
    %v1058 = vpop.f32.mrf.mxu0
    %v1059 = vadd.f32 0.0, %v1058
    %v1060 = vpop.f32.mrf.mxu0
    %v1061 = vadd.f32 0.0, %v1060
    %1062 = vmatmul.bf16.gmra.mxu0 %v1026
    %v1063 = vpop.f32.mrf.mxu0
    %v1064 = vadd.f32 0.0, %v1063
    %v1065 = vpop.f32.mrf.mxu0
    %v1066 = vadd.f32 0.0, %v1065
    %1067 = vmatmul.bf16.gmra.mxu0 %v1027
    %v1068 = vpop.f32.mrf.mxu0
    %v1069 = vadd.f32 0.0, %v1068
    %v1070 = vpop.f32.mrf.mxu0
    %v1071 = vadd.f32 0.0, %v1070
    %1072 = vmatmul.bf16.gmra.mxu0 %v1028
    %v1073 = vpop.f32.mrf.mxu0
    %v1074 = vadd.f32 0.0, %v1073
    %v1075 = vpop.f32.mrf.mxu0
    %v1076 = vadd.f32 0.0, %v1075
    %1077 = vdwg.mxu0
    %v1078 = vadd.f32 %v587, %v1039
    %v1079 = vadd.f32 %v589, %v1041
    %v1080 = vadd.f32 %v592, %v1044
    %v1081 = vadd.f32 %v594, %v1046
    %v1082 = vadd.f32 %v597, %v1049
    %v1083 = vadd.f32 %v599, %v1051
    %v1084 = vadd.f32 %v602, %v1054
    %v1085 = vadd.f32 %v604, %v1056
    %v1086 = vadd.f32 %v607, %v1059
    %v1087 = vadd.f32 %v609, %v1061
    %v1088 = vadd.f32 %v612, %v1064
    %v1089 = vadd.f32 %v614, %v1066
    %v1090 = vadd.f32 %v617, %v1069
    %v1091 = vadd.f32 %v619, %v1071
    %v1092 = vadd.f32 %v622, %v1074
    %v1093 = vadd.f32 %v624, %v1076
    %v1094 = vmax.f32 %v1078, 0.0
    %v1095 = vmax.f32 %v1079, 0.0
    %v1096 = vmax.f32 %v1080, 0.0
    %v1097 = vmax.f32 %v1081, 0.0
    %v1098 = vmax.f32 %v1082, 0.0
    %v1099 = vmax.f32 %v1083, 0.0
    %v1100 = vmax.f32 %v1084, 0.0
    %v1101 = vmax.f32 %v1085, 0.0
    %v1102 = vmax.f32 %v1086, 0.0
    %v1103 = vmax.f32 %v1087, 0.0
    %v1104 = vmax.f32 %v1088, 0.0
    %v1105 = vmax.f32 %v1089, 0.0
    %v1106 = vmax.f32 %v1090, 0.0
    %v1107 = vmax.f32 %v1091, 0.0
    %v1108 = vmax.f32 %v1092, 0.0
    %v1109 = vmax.f32 %v1093, 0.0
    %v1110 = vmin.f32 %v1094, 1.0
    %v1111 = vmin.f32 %v1095, 1.0
    %v1112 = vmin.f32 %v1096, 1.0
    %v1113 = vmin.f32 %v1097, 1.0
    %v1114 = vmin.f32 %v1098, 1.0
    %v1115 = vmin.f32 %v1099, 1.0
    %v1116 = vmin.f32 %v1100, 1.0
    %v1117 = vmin.f32 %v1101, 1.0
    %v1118 = vmin.f32 %v1102, 1.0
    %v1119 = vmin.f32 %v1103, 1.0
    %v1120 = vmin.f32 %v1104, 1.0
    %v1121 = vmin.f32 %v1105, 1.0
    %v1122 = vmin.f32 %v1106, 1.0
    %v1123 = vmin.f32 %v1107, 1.0
    %v1124 = vmin.f32 %v1108, 1.0
    %v1125 = vmin.f32 %v1109, 1.0
    %v1126 = vpack.c.bf16 %v1006, %v1005
    %v1127 = vpack.c.bf16 %v1008, %v1007
    %v1128 = vpack.c.bf16 %v1010, %v1009
    %v1129 = vpack.c.bf16 %v1012, %v1011
    %v1130 = vpack.c.bf16 %v1014, %v1013
    %v1131 = vpack.c.bf16 %v1016, %v1015
    %v1132 = vpack.c.bf16 %v1018, %v1017
    %v1133 = vpack.c.bf16 %v1020, %v1019
    %1134 = vmatpush.bf16.msra.mxu0 %v705
    %1135 = vmatpush.bf16.msra.mxu0 %v704
    %1136 = vmatpush.bf16.msra.mxu0 %v703
    %1137 = vmatpush.bf16.msra.mxu0 %v702
    %1138 = vmatpush.bf16.msra.mxu0 %v701
    %1139 = vmatpush.bf16.msra.mxu0 %v700
    %1140 = vmatpush.bf16.msra.mxu0 %v699
    %1141 = vmatpush.bf16.msra.mxu0 %v698
    %1142 = vmatmul.bf16.gmra.mxu0 %v1126
    %v1143 = vpop.f32.mrf.mxu0
    %v1144 = vadd.f32 0.0, %v1143
    %v1145 = vpop.f32.mrf.mxu0
    %v1146 = vadd.f32 0.0, %v1145
    %1147 = vmatmul.bf16.gmra.mxu0 %v1127
    %v1148 = vpop.f32.mrf.mxu0
    %v1149 = vadd.f32 0.0, %v1148
    %v1150 = vpop.f32.mrf.mxu0
    %v1151 = vadd.f32 0.0, %v1150
    %1152 = vmatmul.bf16.gmra.mxu0 %v1128
    %v1153 = vpop.f32.mrf.mxu0
    %v1154 = vadd.f32 0.0, %v1153
    %v1155 = vpop.f32.mrf.mxu0
    %v1156 = vadd.f32 0.0, %v1155
    %1157 = vmatmul.bf16.gmra.mxu0 %v1129
    %v1158 = vpop.f32.mrf.mxu0
    %v1159 = vadd.f32 0.0, %v1158
    %v1160 = vpop.f32.mrf.mxu0
    %v1161 = vadd.f32 0.0, %v1160
    %1162 = vmatmul.bf16.gmra.mxu0 %v1130
    %v1163 = vpop.f32.mrf.mxu0
    %v1164 = vadd.f32 0.0, %v1163
    %v1165 = vpop.f32.mrf.mxu0
    %v1166 = vadd.f32 0.0, %v1165
    %1167 = vmatmul.bf16.gmra.mxu0 %v1131
    %v1168 = vpop.f32.mrf.mxu0
    %v1169 = vadd.f32 0.0, %v1168
    %v1170 = vpop.f32.mrf.mxu0
    %v1171 = vadd.f32 0.0, %v1170
    %1172 = vmatmul.bf16.gmra.mxu0 %v1132
    %v1173 = vpop.f32.mrf.mxu0
    %v1174 = vadd.f32 0.0, %v1173
    %v1175 = vpop.f32.mrf.mxu0
    %v1176 = vadd.f32 0.0, %v1175
    %1177 = vmatmul.bf16.gmra.mxu0 %v1133
    %v1178 = vpop.f32.mrf.mxu0
    %v1179 = vadd.f32 0.0, %v1178
    %v1180 = vpop.f32.mrf.mxu0
    %v1181 = vadd.f32 0.0, %v1180
    %1182 = vdwg.mxu0
    %v1183 = vadd.f32 %v361, %v1144
    %v1184 = vadd.f32 %v363, %v1146
    %v1185 = vadd.f32 %v366, %v1149
    %v1186 = vadd.f32 %v368, %v1151
    %v1187 = vadd.f32 %v371, %v1154
    %v1188 = vadd.f32 %v373, %v1156
    %v1189 = vadd.f32 %v376, %v1159
    %v1190 = vadd.f32 %v378, %v1161
    %v1191 = vadd.f32 %v381, %v1164
    %v1192 = vadd.f32 %v383, %v1166
    %v1193 = vadd.f32 %v386, %v1169
    %v1194 = vadd.f32 %v388, %v1171
    %v1195 = vadd.f32 %v391, %v1174
    %v1196 = vadd.f32 %v393, %v1176
    %v1197 = vadd.f32 %v396, %v1179
    %v1198 = vadd.f32 %v398, %v1181
    %v1199 = vmax.f32 %v1183, 0.0
    %v1200 = vmax.f32 %v1184, 0.0
    %v1201 = vmax.f32 %v1185, 0.0
    %v1202 = vmax.f32 %v1186, 0.0
    %v1203 = vmax.f32 %v1187, 0.0
    %v1204 = vmax.f32 %v1188, 0.0
    %v1205 = vmax.f32 %v1189, 0.0
    %v1206 = vmax.f32 %v1190, 0.0
    %v1207 = vmax.f32 %v1191, 0.0
    %v1208 = vmax.f32 %v1192, 0.0
    %v1209 = vmax.f32 %v1193, 0.0
    %v1210 = vmax.f32 %v1194, 0.0
    %v1211 = vmax.f32 %v1195, 0.0
    %v1212 = vmax.f32 %v1196, 0.0
    %v1213 = vmax.f32 %v1197, 0.0
    %v1214 = vmax.f32 %v1198, 0.0
    %v1215 = vmin.f32 %v1199, 1.0
    %v1216 = vmin.f32 %v1200, 1.0
    %v1217 = vmin.f32 %v1201, 1.0
    %v1218 = vmin.f32 %v1202, 1.0
    %v1219 = vmin.f32 %v1203, 1.0
    %v1220 = vmin.f32 %v1204, 1.0
    %v1221 = vmin.f32 %v1205, 1.0
    %v1222 = vmin.f32 %v1206, 1.0
    %v1223 = vmin.f32 %v1207, 1.0
    %v1224 = vmin.f32 %v1208, 1.0
    %v1225 = vmin.f32 %v1209, 1.0
    %v1226 = vmin.f32 %v1210, 1.0
    %v1227 = vmin.f32 %v1211, 1.0
    %v1228 = vmin.f32 %v1212, 1.0
    %v1229 = vmin.f32 %v1213, 1.0
    %v1230 = vmin.f32 %v1214, 1.0
    %v1231 = vpack.c.bf16 %v1111, %v1110
    %v1232 = vpack.c.bf16 %v1113, %v1112
    %v1233 = vpack.c.bf16 %v1115, %v1114
    %v1234 = vpack.c.bf16 %v1117, %v1116
    %v1235 = vpack.c.bf16 %v1119, %v1118
    %v1236 = vpack.c.bf16 %v1121, %v1120
    %v1237 = vpack.c.bf16 %v1123, %v1122
    %v1238 = vpack.c.bf16 %v1125, %v1124
    %1239 = vmatpush.bf16.msra.mxu0 %v705
    %1240 = vmatpush.bf16.msra.mxu0 %v704
    %1241 = vmatpush.bf16.msra.mxu0 %v703
    %1242 = vmatpush.bf16.msra.mxu0 %v702
    %1243 = vmatpush.bf16.msra.mxu0 %v701
    %1244 = vmatpush.bf16.msra.mxu0 %v700
    %1245 = vmatpush.bf16.msra.mxu0 %v699
    %1246 = vmatpush.bf16.msra.mxu0 %v698
    %1247 = vmatmul.bf16.gmra.mxu0 %v1231
    %v1248 = vpop.f32.mrf.mxu0
    %v1249 = vadd.f32 0.0, %v1248
    %v1250 = vpop.f32.mrf.mxu0
    %v1251 = vadd.f32 0.0, %v1250
    %1252 = vmatmul.bf16.gmra.mxu0 %v1232
    %v1253 = vpop.f32.mrf.mxu0
    %v1254 = vadd.f32 0.0, %v1253
    %v1255 = vpop.f32.mrf.mxu0
    %v1256 = vadd.f32 0.0, %v1255
    %1257 = vmatmul.bf16.gmra.mxu0 %v1233
    %v1258 = vpop.f32.mrf.mxu0
    %v1259 = vadd.f32 0.0, %v1258
    %v1260 = vpop.f32.mrf.mxu0
    %v1261 = vadd.f32 0.0, %v1260
    %1262 = vmatmul.bf16.gmra.mxu0 %v1234
    %v1263 = vpop.f32.mrf.mxu0
    %v1264 = vadd.f32 0.0, %v1263
    %v1265 = vpop.f32.mrf.mxu0
    %v1266 = vadd.f32 0.0, %v1265
    %1267 = vmatmul.bf16.gmra.mxu0 %v1235
    %v1268 = vpop.f32.mrf.mxu0
    %v1269 = vadd.f32 0.0, %v1268
    %v1270 = vpop.f32.mrf.mxu0
    %v1271 = vadd.f32 0.0, %v1270
    %1272 = vmatmul.bf16.gmra.mxu0 %v1236
    %v1273 = vpop.f32.mrf.mxu0
    %v1274 = vadd.f32 0.0, %v1273
    %v1275 = vpop.f32.mrf.mxu0
    %v1276 = vadd.f32 0.0, %v1275
    %1277 = vmatmul.bf16.gmra.mxu0 %v1237
    %v1278 = vpop.f32.mrf.mxu0
    %v1279 = vadd.f32 0.0, %v1278
    %v1280 = vpop.f32.mrf.mxu0
    %v1281 = vadd.f32 0.0, %v1280
    %1282 = vmatmul.bf16.gmra.mxu0 %v1238
    %v1283 = vpop.f32.mrf.mxu0
    %v1284 = vadd.f32 0.0, %v1283
    %v1285 = vpop.f32.mrf.mxu0
    %v1286 = vadd.f32 0.0, %v1285
    %1287 = vdwg.mxu0
    %v1288 = vadd.f32 %v587, %v1249
    %v1289 = vadd.f32 %v589, %v1251
    %v1290 = vadd.f32 %v592, %v1254
    %v1291 = vadd.f32 %v594, %v1256
    %v1292 = vadd.f32 %v597, %v1259
    %v1293 = vadd.f32 %v599, %v1261
    %v1294 = vadd.f32 %v602, %v1264
    %v1295 = vadd.f32 %v604, %v1266
    %v1296 = vadd.f32 %v607, %v1269
    %v1297 = vadd.f32 %v609, %v1271
    %v1298 = vadd.f32 %v612, %v1274
    %v1299 = vadd.f32 %v614, %v1276
    %v1300 = vadd.f32 %v617, %v1279
    %v1301 = vadd.f32 %v619, %v1281
    %v1302 = vadd.f32 %v622, %v1284
    %v1303 = vadd.f32 %v624, %v1286
    %v1304 = vmax.f32 %v1288, 0.0
    %v1305 = vmax.f32 %v1289, 0.0
    %v1306 = vmax.f32 %v1290, 0.0
    %v1307 = vmax.f32 %v1291, 0.0
    %v1308 = vmax.f32 %v1292, 0.0
    %v1309 = vmax.f32 %v1293, 0.0
    %v1310 = vmax.f32 %v1294, 0.0
    %v1311 = vmax.f32 %v1295, 0.0
    %v1312 = vmax.f32 %v1296, 0.0
    %v1313 = vmax.f32 %v1297, 0.0
    %v1314 = vmax.f32 %v1298, 0.0
    %v1315 = vmax.f32 %v1299, 0.0
    %v1316 = vmax.f32 %v1300, 0.0
    %v1317 = vmax.f32 %v1301, 0.0
    %v1318 = vmax.f32 %v1302, 0.0
    %v1319 = vmax.f32 %v1303, 0.0
    %v1320 = vmin.f32 %v1304, 1.0
    %v1321 = vmin.f32 %v1305, 1.0
    %v1322 = vmin.f32 %v1306, 1.0
    %v1323 = vmin.f32 %v1307, 1.0
    %v1324 = vmin.f32 %v1308, 1.0
    %v1325 = vmin.f32 %v1309, 1.0
    %v1326 = vmin.f32 %v1310, 1.0
    %v1327 = vmin.f32 %v1311, 1.0
    %v1328 = vmin.f32 %v1312, 1.0
    %v1329 = vmin.f32 %v1313, 1.0
    %v1330 = vmin.f32 %v1314, 1.0
    %v1331 = vmin.f32 %v1315, 1.0
    %v1332 = vmin.f32 %v1316, 1.0
    %v1333 = vmin.f32 %v1317, 1.0
    %v1334 = vmin.f32 %v1318, 1.0
    %v1335 = vmin.f32 %v1319, 1.0
    %v1336 = vpack.c.bf16 %v1216, %v1215
    %v1337 = vpack.c.bf16 %v1218, %v1217
    %v1338 = vpack.c.bf16 %v1220, %v1219
    %v1339 = vpack.c.bf16 %v1222, %v1221
    %v1340 = vpack.c.bf16 %v1224, %v1223
    %v1341 = vpack.c.bf16 %v1226, %v1225
    %v1342 = vpack.c.bf16 %v1228, %v1227
    %v1343 = vpack.c.bf16 %v1230, %v1229
    %1344 = vmatpush.bf16.msra.mxu0 %v705
    %1345 = vmatpush.bf16.msra.mxu0 %v704
    %1346 = vmatpush.bf16.msra.mxu0 %v703
    %1347 = vmatpush.bf16.msra.mxu0 %v702
    %1348 = vmatpush.bf16.msra.mxu0 %v701
    %1349 = vmatpush.bf16.msra.mxu0 %v700
    %1350 = vmatpush.bf16.msra.mxu0 %v699
    %1351 = vmatpush.bf16.msra.mxu0 %v698
    %1352 = vmatmul.bf16.gmra.mxu0 %v1336
    %v1353 = vpop.f32.mrf.mxu0
    %v1354 = vadd.f32 0.0, %v1353
    %v1355 = vpop.f32.mrf.mxu0
    %v1356 = vadd.f32 0.0, %v1355
    %1357 = vmatmul.bf16.gmra.mxu0 %v1337
    %v1358 = vpop.f32.mrf.mxu0
    %v1359 = vadd.f32 0.0, %v1358
    %v1360 = vpop.f32.mrf.mxu0
    %v1361 = vadd.f32 0.0, %v1360
    %1362 = vmatmul.bf16.gmra.mxu0 %v1338
    %v1363 = vpop.f32.mrf.mxu0
    %v1364 = vadd.f32 0.0, %v1363
    %v1365 = vpop.f32.mrf.mxu0
    %v1366 = vadd.f32 0.0, %v1365
    %1367 = vmatmul.bf16.gmra.mxu0 %v1339
    %v1368 = vpop.f32.mrf.mxu0
    %v1369 = vadd.f32 0.0, %v1368
    %v1370 = vpop.f32.mrf.mxu0
    %v1371 = vadd.f32 0.0, %v1370
    %1372 = vmatmul.bf16.gmra.mxu0 %v1340
    %v1373 = vpop.f32.mrf.mxu0
    %v1374 = vadd.f32 0.0, %v1373
    %v1375 = vpop.f32.mrf.mxu0
    %v1376 = vadd.f32 0.0, %v1375
    %1377 = vmatmul.bf16.gmra.mxu0 %v1341
    %v1378 = vpop.f32.mrf.mxu0
    %v1379 = vadd.f32 0.0, %v1378
    %v1380 = vpop.f32.mrf.mxu0
    %v1381 = vadd.f32 0.0, %v1380
    %1382 = vmatmul.bf16.gmra.mxu0 %v1342
    %v1383 = vpop.f32.mrf.mxu0
    %v1384 = vadd.f32 0.0, %v1383
    %v1385 = vpop.f32.mrf.mxu0
    %v1386 = vadd.f32 0.0, %v1385
    %1387 = vmatmul.bf16.gmra.mxu0 %v1343
    %v1388 = vpop.f32.mrf.mxu0
    %v1389 = vadd.f32 0.0, %v1388
    %v1390 = vpop.f32.mrf.mxu0
    %v1391 = vadd.f32 0.0, %v1390
    %1392 = vdwg.mxu0
    %v1393 = vadd.f32 %v361, %v1354
    %v1394 = vadd.f32 %v363, %v1356
    %v1395 = vadd.f32 %v366, %v1359
    %v1396 = vadd.f32 %v368, %v1361
    %v1397 = vadd.f32 %v371, %v1364
    %v1398 = vadd.f32 %v373, %v1366
    %v1399 = vadd.f32 %v376, %v1369
    %v1400 = vadd.f32 %v378, %v1371
    %v1401 = vadd.f32 %v381, %v1374
    %v1402 = vadd.f32 %v383, %v1376
    %v1403 = vadd.f32 %v386, %v1379
    %v1404 = vadd.f32 %v388, %v1381
    %v1405 = vadd.f32 %v391, %v1384
    %v1406 = vadd.f32 %v393, %v1386
    %v1407 = vadd.f32 %v396, %v1389
    %v1408 = vadd.f32 %v398, %v1391
    %v1409 = vmax.f32 %v1393, 0.0
    %v1410 = vmax.f32 %v1394, 0.0
    %v1411 = vmax.f32 %v1395, 0.0
    %v1412 = vmax.f32 %v1396, 0.0
    %v1413 = vmax.f32 %v1397, 0.0
    %v1414 = vmax.f32 %v1398, 0.0
    %v1415 = vmax.f32 %v1399, 0.0
    %v1416 = vmax.f32 %v1400, 0.0
    %v1417 = vmax.f32 %v1401, 0.0
    %v1418 = vmax.f32 %v1402, 0.0
    %v1419 = vmax.f32 %v1403, 0.0
    %v1420 = vmax.f32 %v1404, 0.0
    %v1421 = vmax.f32 %v1405, 0.0
    %v1422 = vmax.f32 %v1406, 0.0
    %v1423 = vmax.f32 %v1407, 0.0
    %v1424 = vmax.f32 %v1408, 0.0
    %v1425 = vmin.f32 %v1409, 1.0
    %v1426 = vmin.f32 %v1410, 1.0
    %v1427 = vmin.f32 %v1411, 1.0
    %v1428 = vmin.f32 %v1412, 1.0
    %v1429 = vmin.f32 %v1413, 1.0
    %v1430 = vmin.f32 %v1414, 1.0
    %v1431 = vmin.f32 %v1415, 1.0
    %v1432 = vmin.f32 %v1416, 1.0
    %v1433 = vmin.f32 %v1417, 1.0
    %v1434 = vmin.f32 %v1418, 1.0
    %v1435 = vmin.f32 %v1419, 1.0
    %v1436 = vmin.f32 %v1420, 1.0
    %v1437 = vmin.f32 %v1421, 1.0
    %v1438 = vmin.f32 %v1422, 1.0
    %v1439 = vmin.f32 %v1423, 1.0
    %v1440 = vmin.f32 %v1424, 1.0
    %v1441 = vpack.c.bf16 %v1321, %v1320
    %v1442 = vpack.c.bf16 %v1323, %v1322
    %v1443 = vpack.c.bf16 %v1325, %v1324
    %v1444 = vpack.c.bf16 %v1327, %v1326
    %v1445 = vpack.c.bf16 %v1329, %v1328
    %v1446 = vpack.c.bf16 %v1331, %v1330
    %v1447 = vpack.c.bf16 %v1333, %v1332
    %v1448 = vpack.c.bf16 %v1335, %v1334
    %1449 = vmatpush.bf16.msra.mxu0 %v705
    %1450 = vmatpush.bf16.msra.mxu0 %v704
    %1451 = vmatpush.bf16.msra.mxu0 %v703
    %1452 = vmatpush.bf16.msra.mxu0 %v702
    %1453 = vmatpush.bf16.msra.mxu0 %v701
    %1454 = vmatpush.bf16.msra.mxu0 %v700
    %1455 = vmatpush.bf16.msra.mxu0 %v699
    %1456 = vmatpush.bf16.msra.mxu0 %v698
    %1457 = vmatmul.bf16.gmra.mxu0 %v1441
    %v1458 = vpop.f32.mrf.mxu0
    %v1459 = vadd.f32 0.0, %v1458
    %v1460 = vpop.f32.mrf.mxu0
    %v1461 = vadd.f32 0.0, %v1460
    %1462 = vmatmul.bf16.gmra.mxu0 %v1442
    %v1463 = vpop.f32.mrf.mxu0
    %v1464 = vadd.f32 0.0, %v1463
    %v1465 = vpop.f32.mrf.mxu0
    %v1466 = vadd.f32 0.0, %v1465
    %1467 = vmatmul.bf16.gmra.mxu0 %v1443
    %v1468 = vpop.f32.mrf.mxu0
    %v1469 = vadd.f32 0.0, %v1468
    %v1470 = vpop.f32.mrf.mxu0
    %v1471 = vadd.f32 0.0, %v1470
    %1472 = vmatmul.bf16.gmra.mxu0 %v1444
    %v1473 = vpop.f32.mrf.mxu0
    %v1474 = vadd.f32 0.0, %v1473
    %v1475 = vpop.f32.mrf.mxu0
    %v1476 = vadd.f32 0.0, %v1475
    %1477 = vmatmul.bf16.gmra.mxu0 %v1445
    %v1478 = vpop.f32.mrf.mxu0
    %v1479 = vadd.f32 0.0, %v1478
    %v1480 = vpop.f32.mrf.mxu0
    %v1481 = vadd.f32 0.0, %v1480
    %1482 = vmatmul.bf16.gmra.mxu0 %v1446
    %v1483 = vpop.f32.mrf.mxu0
    %v1484 = vadd.f32 0.0, %v1483
    %v1485 = vpop.f32.mrf.mxu0
    %v1486 = vadd.f32 0.0, %v1485
    %1487 = vmatmul.bf16.gmra.mxu0 %v1447
    %v1488 = vpop.f32.mrf.mxu0
    %v1489 = vadd.f32 0.0, %v1488
    %v1490 = vpop.f32.mrf.mxu0
    %v1491 = vadd.f32 0.0, %v1490
    %1492 = vmatmul.bf16.gmra.mxu0 %v1448
    %v1493 = vpop.f32.mrf.mxu0
    %v1494 = vadd.f32 0.0, %v1493
    %v1495 = vpop.f32.mrf.mxu0
    %v1496 = vadd.f32 0.0, %v1495
    %1497 = vdwg.mxu0
    %v1498 = vadd.f32 %v587, %v1459
    %v1499 = vadd.f32 %v589, %v1461
    %v1500 = vadd.f32 %v592, %v1464
    %v1501 = vadd.f32 %v594, %v1466
    %v1502 = vadd.f32 %v597, %v1469
    %v1503 = vadd.f32 %v599, %v1471
    %v1504 = vadd.f32 %v602, %v1474
    %v1505 = vadd.f32 %v604, %v1476
    %v1506 = vadd.f32 %v607, %v1479
    %v1507 = vadd.f32 %v609, %v1481
    %v1508 = vadd.f32 %v612, %v1484
    %v1509 = vadd.f32 %v614, %v1486
    %v1510 = vadd.f32 %v617, %v1489
    %v1511 = vadd.f32 %v619, %v1491
    %v1512 = vadd.f32 %v622, %v1494
    %v1513 = vadd.f32 %v624, %v1496
    %v1514 = vmax.f32 %v1498, 0.0
    %v1515 = vmax.f32 %v1499, 0.0
    %v1516 = vmax.f32 %v1500, 0.0
    %v1517 = vmax.f32 %v1501, 0.0
    %v1518 = vmax.f32 %v1502, 0.0
    %v1519 = vmax.f32 %v1503, 0.0
    %v1520 = vmax.f32 %v1504, 0.0
    %v1521 = vmax.f32 %v1505, 0.0
    %v1522 = vmax.f32 %v1506, 0.0
    %v1523 = vmax.f32 %v1507, 0.0
    %v1524 = vmax.f32 %v1508, 0.0
    %v1525 = vmax.f32 %v1509, 0.0
    %v1526 = vmax.f32 %v1510, 0.0
    %v1527 = vmax.f32 %v1511, 0.0
    %v1528 = vmax.f32 %v1512, 0.0
    %v1529 = vmax.f32 %v1513, 0.0
    %v1530 = vmin.f32 %v1514, 1.0
    %v1531 = vmin.f32 %v1515, 1.0
    %v1532 = vmin.f32 %v1516, 1.0
    %v1533 = vmin.f32 %v1517, 1.0
    %v1534 = vmin.f32 %v1518, 1.0
    %v1535 = vmin.f32 %v1519, 1.0
    %v1536 = vmin.f32 %v1520, 1.0
    %v1537 = vmin.f32 %v1521, 1.0
    %v1538 = vmin.f32 %v1522, 1.0
    %v1539 = vmin.f32 %v1523, 1.0
    %v1540 = vmin.f32 %v1524, 1.0
    %v1541 = vmin.f32 %v1525, 1.0
    %v1542 = vmin.f32 %v1526, 1.0
    %v1543 = vmin.f32 %v1527, 1.0
    %v1544 = vmin.f32 %v1528, 1.0
    %v1545 = vmin.f32 %v1529, 1.0
    %v1546 = vpack.c.bf16 %v1426, %v1425
    %v1547 = vpack.c.bf16 %v1428, %v1427
    %v1548 = vpack.c.bf16 %v1430, %v1429
    %v1549 = vpack.c.bf16 %v1432, %v1431
    %v1550 = vpack.c.bf16 %v1434, %v1433
    %v1551 = vpack.c.bf16 %v1436, %v1435
    %v1552 = vpack.c.bf16 %v1438, %v1437
    %v1553 = vpack.c.bf16 %v1440, %v1439
    %1554 = vmatpush.bf16.msra.mxu0 %v705
    %1555 = vmatpush.bf16.msra.mxu0 %v704
    %1556 = vmatpush.bf16.msra.mxu0 %v703
    %1557 = vmatpush.bf16.msra.mxu0 %v702
    %1558 = vmatpush.bf16.msra.mxu0 %v701
    %1559 = vmatpush.bf16.msra.mxu0 %v700
    %1560 = vmatpush.bf16.msra.mxu0 %v699
    %1561 = vmatpush.bf16.msra.mxu0 %v698
    %1562 = vmatmul.bf16.gmra.mxu0 %v1546
    %v1563 = vpop.f32.mrf.mxu0
    %v1564 = vadd.f32 0.0, %v1563
    %v1565 = vpop.f32.mrf.mxu0
    %v1566 = vadd.f32 0.0, %v1565
    %1567 = vmatmul.bf16.gmra.mxu0 %v1547
    %v1568 = vpop.f32.mrf.mxu0
    %v1569 = vadd.f32 0.0, %v1568
    %v1570 = vpop.f32.mrf.mxu0
    %v1571 = vadd.f32 0.0, %v1570
    %1572 = vmatmul.bf16.gmra.mxu0 %v1548
    %v1573 = vpop.f32.mrf.mxu0
    %v1574 = vadd.f32 0.0, %v1573
    %v1575 = vpop.f32.mrf.mxu0
    %v1576 = vadd.f32 0.0, %v1575
    %1577 = vmatmul.bf16.gmra.mxu0 %v1549
    %v1578 = vpop.f32.mrf.mxu0
    %v1579 = vadd.f32 0.0, %v1578
    %v1580 = vpop.f32.mrf.mxu0
    %v1581 = vadd.f32 0.0, %v1580
    %1582 = vmatmul.bf16.gmra.mxu0 %v1550
    %v1583 = vpop.f32.mrf.mxu0
    %v1584 = vadd.f32 0.0, %v1583
    %v1585 = vpop.f32.mrf.mxu0
    %v1586 = vadd.f32 0.0, %v1585
    %1587 = vmatmul.bf16.gmra.mxu0 %v1551
    %v1588 = vpop.f32.mrf.mxu0
    %v1589 = vadd.f32 0.0, %v1588
    %v1590 = vpop.f32.mrf.mxu0
    %v1591 = vadd.f32 0.0, %v1590
    %1592 = vmatmul.bf16.gmra.mxu0 %v1552
    %v1593 = vpop.f32.mrf.mxu0
    %v1594 = vadd.f32 0.0, %v1593
    %v1595 = vpop.f32.mrf.mxu0
    %v1596 = vadd.f32 0.0, %v1595
    %1597 = vmatmul.bf16.gmra.mxu0 %v1553
    %v1598 = vpop.f32.mrf.mxu0
    %v1599 = vadd.f32 0.0, %v1598
    %v1600 = vpop.f32.mrf.mxu0
    %v1601 = vadd.f32 0.0, %v1600
    %1602 = vdwg.mxu0
    %v1603 = vadd.f32 %v361, %v1564
    %v1604 = vadd.f32 %v363, %v1566
    %v1605 = vadd.f32 %v366, %v1569
    %v1606 = vadd.f32 %v368, %v1571
    %v1607 = vadd.f32 %v371, %v1574
    %v1608 = vadd.f32 %v373, %v1576
    %v1609 = vadd.f32 %v376, %v1579
    %v1610 = vadd.f32 %v378, %v1581
    %v1611 = vadd.f32 %v381, %v1584
    %v1612 = vadd.f32 %v383, %v1586
    %v1613 = vadd.f32 %v386, %v1589
    %v1614 = vadd.f32 %v388, %v1591
    %v1615 = vadd.f32 %v391, %v1594
    %v1616 = vadd.f32 %v393, %v1596
    %v1617 = vadd.f32 %v396, %v1599
    %v1618 = vadd.f32 %v398, %v1601
    %v1619 = vmax.f32 %v1603, 0.0
    %v1620 = vmax.f32 %v1604, 0.0
    %v1621 = vmax.f32 %v1605, 0.0
    %v1622 = vmax.f32 %v1606, 0.0
    %v1623 = vmax.f32 %v1607, 0.0
    %v1624 = vmax.f32 %v1608, 0.0
    %v1625 = vmax.f32 %v1609, 0.0
    %v1626 = vmax.f32 %v1610, 0.0
    %v1627 = vmax.f32 %v1611, 0.0
    %v1628 = vmax.f32 %v1612, 0.0
    %v1629 = vmax.f32 %v1613, 0.0
    %v1630 = vmax.f32 %v1614, 0.0
    %v1631 = vmax.f32 %v1615, 0.0
    %v1632 = vmax.f32 %v1616, 0.0
    %v1633 = vmax.f32 %v1617, 0.0
    %v1634 = vmax.f32 %v1618, 0.0
    %v1635 = vmin.f32 %v1619, 1.0
    %v1636 = vmin.f32 %v1620, 1.0
    %v1637 = vmin.f32 %v1621, 1.0
    %v1638 = vmin.f32 %v1622, 1.0
    %v1639 = vmin.f32 %v1623, 1.0
    %v1640 = vmin.f32 %v1624, 1.0
    %v1641 = vmin.f32 %v1625, 1.0
    %v1642 = vmin.f32 %v1626, 1.0
    %v1643 = vmin.f32 %v1627, 1.0
    %v1644 = vmin.f32 %v1628, 1.0
    %v1645 = vmin.f32 %v1629, 1.0
    %v1646 = vmin.f32 %v1630, 1.0
    %v1647 = vmin.f32 %v1631, 1.0
    %v1648 = vmin.f32 %v1632, 1.0
    %v1649 = vmin.f32 %v1633, 1.0
    %v1650 = vmin.f32 %v1634, 1.0
    %v1651 = vpack.c.bf16 %v1531, %v1530
    %v1652 = vpack.c.bf16 %v1533, %v1532
    %v1653 = vpack.c.bf16 %v1535, %v1534
    %v1654 = vpack.c.bf16 %v1537, %v1536
    %v1655 = vpack.c.bf16 %v1539, %v1538
    %v1656 = vpack.c.bf16 %v1541, %v1540
    %v1657 = vpack.c.bf16 %v1543, %v1542
    %v1658 = vpack.c.bf16 %v1545, %v1544
    %1659 = vmatpush.bf16.msra.mxu0 %v705
    %1660 = vmatpush.bf16.msra.mxu0 %v704
    %1661 = vmatpush.bf16.msra.mxu0 %v703
    %1662 = vmatpush.bf16.msra.mxu0 %v702
    %1663 = vmatpush.bf16.msra.mxu0 %v701
    %1664 = vmatpush.bf16.msra.mxu0 %v700
    %1665 = vmatpush.bf16.msra.mxu0 %v699
    %1666 = vmatpush.bf16.msra.mxu0 %v698
    %1667 = vmatmul.bf16.gmra.mxu0 %v1651
    %v1668 = vpop.f32.mrf.mxu0
    %v1669 = vadd.f32 0.0, %v1668
    %v1670 = vpop.f32.mrf.mxu0
    %v1671 = vadd.f32 0.0, %v1670
    %1672 = vmatmul.bf16.gmra.mxu0 %v1652
    %v1673 = vpop.f32.mrf.mxu0
    %v1674 = vadd.f32 0.0, %v1673
    %v1675 = vpop.f32.mrf.mxu0
    %v1676 = vadd.f32 0.0, %v1675
    %1677 = vmatmul.bf16.gmra.mxu0 %v1653
    %v1678 = vpop.f32.mrf.mxu0
    %v1679 = vadd.f32 0.0, %v1678
    %v1680 = vpop.f32.mrf.mxu0
    %v1681 = vadd.f32 0.0, %v1680
    %1682 = vmatmul.bf16.gmra.mxu0 %v1654
    %v1683 = vpop.f32.mrf.mxu0
    %v1684 = vadd.f32 0.0, %v1683
    %v1685 = vpop.f32.mrf.mxu0
    %v1686 = vadd.f32 0.0, %v1685
    %1687 = vmatmul.bf16.gmra.mxu0 %v1655
    %v1688 = vpop.f32.mrf.mxu0
    %v1689 = vadd.f32 0.0, %v1688
    %v1690 = vpop.f32.mrf.mxu0
    %v1691 = vadd.f32 0.0, %v1690
    %1692 = vmatmul.bf16.gmra.mxu0 %v1656
    %v1693 = vpop.f32.mrf.mxu0
    %v1694 = vadd.f32 0.0, %v1693
    %v1695 = vpop.f32.mrf.mxu0
    %v1696 = vadd.f32 0.0, %v1695
    %1697 = vmatmul.bf16.gmra.mxu0 %v1657
    %v1698 = vpop.f32.mrf.mxu0
    %v1699 = vadd.f32 0.0, %v1698
    %v1700 = vpop.f32.mrf.mxu0
    %v1701 = vadd.f32 0.0, %v1700
    %1702 = vmatmul.bf16.gmra.mxu0 %v1658
    %v1703 = vpop.f32.mrf.mxu0
    %v1704 = vadd.f32 0.0, %v1703
    %v1705 = vpop.f32.mrf.mxu0
    %v1706 = vadd.f32 0.0, %v1705
    %1707 = vdwg.mxu0
    %v1708 = vadd.f32 %v587, %v1669
    %v1709 = vadd.f32 %v589, %v1671
    %v1710 = vadd.f32 %v592, %v1674
    %v1711 = vadd.f32 %v594, %v1676
    %v1712 = vadd.f32 %v597, %v1679
    %v1713 = vadd.f32 %v599, %v1681
    %v1714 = vadd.f32 %v602, %v1684
    %v1715 = vadd.f32 %v604, %v1686
    %v1716 = vadd.f32 %v607, %v1689
    %v1717 = vadd.f32 %v609, %v1691
    %v1718 = vadd.f32 %v612, %v1694
    %v1719 = vadd.f32 %v614, %v1696
    %v1720 = vadd.f32 %v617, %v1699
    %v1721 = vadd.f32 %v619, %v1701
    %v1722 = vadd.f32 %v622, %v1704
    %v1723 = vadd.f32 %v624, %v1706
    %v1724 = vmax.f32 %v1708, 0.0
    %v1725 = vmax.f32 %v1709, 0.0
    %v1726 = vmax.f32 %v1710, 0.0
    %v1727 = vmax.f32 %v1711, 0.0
    %v1728 = vmax.f32 %v1712, 0.0
    %v1729 = vmax.f32 %v1713, 0.0
    %v1730 = vmax.f32 %v1714, 0.0
    %v1731 = vmax.f32 %v1715, 0.0
    %v1732 = vmax.f32 %v1716, 0.0
    %v1733 = vmax.f32 %v1717, 0.0
    %v1734 = vmax.f32 %v1718, 0.0
    %v1735 = vmax.f32 %v1719, 0.0
    %v1736 = vmax.f32 %v1720, 0.0
    %v1737 = vmax.f32 %v1721, 0.0
    %v1738 = vmax.f32 %v1722, 0.0
    %v1739 = vmax.f32 %v1723, 0.0
    %v1740 = vmin.f32 %v1724, 1.0
    %v1741 = vmin.f32 %v1725, 1.0
    %v1742 = vmin.f32 %v1726, 1.0
    %v1743 = vmin.f32 %v1727, 1.0
    %v1744 = vmin.f32 %v1728, 1.0
    %v1745 = vmin.f32 %v1729, 1.0
    %v1746 = vmin.f32 %v1730, 1.0
    %v1747 = vmin.f32 %v1731, 1.0
    %v1748 = vmin.f32 %v1732, 1.0
    %v1749 = vmin.f32 %v1733, 1.0
    %v1750 = vmin.f32 %v1734, 1.0
    %v1751 = vmin.f32 %v1735, 1.0
    %v1752 = vmin.f32 %v1736, 1.0
    %v1753 = vmin.f32 %v1737, 1.0
    %v1754 = vmin.f32 %v1738, 1.0
    %v1755 = vmin.f32 %v1739, 1.0
    %v1756 = vpack.c.bf16 %v1636, %v1635
    %v1757 = vpack.c.bf16 %v1638, %v1637
    %v1758 = vpack.c.bf16 %v1640, %v1639
    %v1759 = vpack.c.bf16 %v1642, %v1641
    %v1760 = vpack.c.bf16 %v1644, %v1643
    %v1761 = vpack.c.bf16 %v1646, %v1645
    %v1762 = vpack.c.bf16 %v1648, %v1647
    %v1763 = vpack.c.bf16 %v1650, %v1649
    %1764 = vmatpush.bf16.msra.mxu0 %v705
    %1765 = vmatpush.bf16.msra.mxu0 %v704
    %1766 = vmatpush.bf16.msra.mxu0 %v703
    %1767 = vmatpush.bf16.msra.mxu0 %v702
    %1768 = vmatpush.bf16.msra.mxu0 %v701
    %1769 = vmatpush.bf16.msra.mxu0 %v700
    %1770 = vmatpush.bf16.msra.mxu0 %v699
    %1771 = vmatpush.bf16.msra.mxu0 %v698
    %1772 = vmatmul.bf16.gmra.mxu0 %v1756
    %v1773 = vpop.f32.mrf.mxu0
    %v1774 = vadd.f32 0.0, %v1773
    %v1775 = vpop.f32.mrf.mxu0
    %v1776 = vadd.f32 0.0, %v1775
    %1777 = vmatmul.bf16.gmra.mxu0 %v1757
    %v1778 = vpop.f32.mrf.mxu0
    %v1779 = vadd.f32 0.0, %v1778
    %v1780 = vpop.f32.mrf.mxu0
    %v1781 = vadd.f32 0.0, %v1780
    %1782 = vmatmul.bf16.gmra.mxu0 %v1758
    %v1783 = vpop.f32.mrf.mxu0
    %v1784 = vadd.f32 0.0, %v1783
    %v1785 = vpop.f32.mrf.mxu0
    %v1786 = vadd.f32 0.0, %v1785
    %1787 = vmatmul.bf16.gmra.mxu0 %v1759
    %v1788 = vpop.f32.mrf.mxu0
    %v1789 = vadd.f32 0.0, %v1788
    %v1790 = vpop.f32.mrf.mxu0
    %v1791 = vadd.f32 0.0, %v1790
    %1792 = vmatmul.bf16.gmra.mxu0 %v1760
    %v1793 = vpop.f32.mrf.mxu0
    %v1794 = vadd.f32 0.0, %v1793
    %v1795 = vpop.f32.mrf.mxu0
    %v1796 = vadd.f32 0.0, %v1795
    %1797 = vmatmul.bf16.gmra.mxu0 %v1761
    %v1798 = vpop.f32.mrf.mxu0
    %v1799 = vadd.f32 0.0, %v1798
    %v1800 = vpop.f32.mrf.mxu0
    %v1801 = vadd.f32 0.0, %v1800
    %1802 = vmatmul.bf16.gmra.mxu0 %v1762
    %v1803 = vpop.f32.mrf.mxu0
    %v1804 = vadd.f32 0.0, %v1803
    %v1805 = vpop.f32.mrf.mxu0
    %v1806 = vadd.f32 0.0, %v1805
    %1807 = vmatmul.bf16.gmra.mxu0 %v1763
    %v1808 = vpop.f32.mrf.mxu0
    %v1809 = vadd.f32 0.0, %v1808
    %v1810 = vpop.f32.mrf.mxu0
    %v1811 = vadd.f32 0.0, %v1810
    %1812 = vdwg.mxu0
    %v1813 = vadd.f32 %v361, %v1774
    %v1814 = vadd.f32 %v363, %v1776
    %v1815 = vadd.f32 %v366, %v1779
    %v1816 = vadd.f32 %v368, %v1781
    %v1817 = vadd.f32 %v371, %v1784
    %v1818 = vadd.f32 %v373, %v1786
    %v1819 = vadd.f32 %v376, %v1789
    %v1820 = vadd.f32 %v378, %v1791
    %v1821 = vadd.f32 %v381, %v1794
    %v1822 = vadd.f32 %v383, %v1796
    %v1823 = vadd.f32 %v386, %v1799
    %v1824 = vadd.f32 %v388, %v1801
    %v1825 = vadd.f32 %v391, %v1804
    %v1826 = vadd.f32 %v393, %v1806
    %v1827 = vadd.f32 %v396, %v1809
    %v1828 = vadd.f32 %v398, %v1811
    %v1829 = vmax.f32 %v1813, 0.0
    %v1830 = vmax.f32 %v1814, 0.0
    %v1831 = vmax.f32 %v1815, 0.0
    %v1832 = vmax.f32 %v1816, 0.0
    %v1833 = vmax.f32 %v1817, 0.0
    %v1834 = vmax.f32 %v1818, 0.0
    %v1835 = vmax.f32 %v1819, 0.0
    %v1836 = vmax.f32 %v1820, 0.0
    %v1837 = vmax.f32 %v1821, 0.0
    %v1838 = vmax.f32 %v1822, 0.0
    %v1839 = vmax.f32 %v1823, 0.0
    %v1840 = vmax.f32 %v1824, 0.0
    %v1841 = vmax.f32 %v1825, 0.0
    %v1842 = vmax.f32 %v1826, 0.0
    %v1843 = vmax.f32 %v1827, 0.0
    %v1844 = vmax.f32 %v1828, 0.0
    %v1845 = vmin.f32 %v1829, 1.0
    %v1846 = vmin.f32 %v1830, 1.0
    %v1847 = vmin.f32 %v1831, 1.0
    %v1848 = vmin.f32 %v1832, 1.0
    %v1849 = vmin.f32 %v1833, 1.0
    %v1850 = vmin.f32 %v1834, 1.0
    %v1851 = vmin.f32 %v1835, 1.0
    %v1852 = vmin.f32 %v1836, 1.0
    %v1853 = vmin.f32 %v1837, 1.0
    %v1854 = vmin.f32 %v1838, 1.0
    %v1855 = vmin.f32 %v1839, 1.0
    %v1856 = vmin.f32 %v1840, 1.0
    %v1857 = vmin.f32 %v1841, 1.0
    %v1858 = vmin.f32 %v1842, 1.0
    %v1859 = vmin.f32 %v1843, 1.0
    %v1860 = vmin.f32 %v1844, 1.0
    %v1861 = vpack.c.bf16 %v1741, %v1740
    %v1862 = vpack.c.bf16 %v1743, %v1742
    %v1863 = vpack.c.bf16 %v1745, %v1744
    %v1864 = vpack.c.bf16 %v1747, %v1746
    %v1865 = vpack.c.bf16 %v1749, %v1748
    %v1866 = vpack.c.bf16 %v1751, %v1750
    %v1867 = vpack.c.bf16 %v1753, %v1752
    %v1868 = vpack.c.bf16 %v1755, %v1754
    %1869 = vmatpush.bf16.msra.mxu0 %v705
    %1870 = vmatpush.bf16.msra.mxu0 %v704
    %1871 = vmatpush.bf16.msra.mxu0 %v703
    %1872 = vmatpush.bf16.msra.mxu0 %v702
    %1873 = vmatpush.bf16.msra.mxu0 %v701
    %1874 = vmatpush.bf16.msra.mxu0 %v700
    %1875 = vmatpush.bf16.msra.mxu0 %v699
    %1876 = vmatpush.bf16.msra.mxu0 %v698
    %1877 = vmatmul.bf16.gmra.mxu0 %v1861
    %v1878 = vpop.f32.mrf.mxu0
    %v1879 = vadd.f32 0.0, %v1878
    %v1880 = vpop.f32.mrf.mxu0
    %v1881 = vadd.f32 0.0, %v1880
    %1882 = vmatmul.bf16.gmra.mxu0 %v1862
    %v1883 = vpop.f32.mrf.mxu0
    %v1884 = vadd.f32 0.0, %v1883
    %v1885 = vpop.f32.mrf.mxu0
    %v1886 = vadd.f32 0.0, %v1885
    %1887 = vmatmul.bf16.gmra.mxu0 %v1863
    %v1888 = vpop.f32.mrf.mxu0
    %v1889 = vadd.f32 0.0, %v1888
    %v1890 = vpop.f32.mrf.mxu0
    %v1891 = vadd.f32 0.0, %v1890
    %1892 = vmatmul.bf16.gmra.mxu0 %v1864
    %v1893 = vpop.f32.mrf.mxu0
    %v1894 = vadd.f32 0.0, %v1893
    %v1895 = vpop.f32.mrf.mxu0
    %v1896 = vadd.f32 0.0, %v1895
    %1897 = vmatmul.bf16.gmra.mxu0 %v1865
    %v1898 = vpop.f32.mrf.mxu0
    %v1899 = vadd.f32 0.0, %v1898
    %v1900 = vpop.f32.mrf.mxu0
    %v1901 = vadd.f32 0.0, %v1900
    %1902 = vmatmul.bf16.gmra.mxu0 %v1866
    %v1903 = vpop.f32.mrf.mxu0
    %v1904 = vadd.f32 0.0, %v1903
    %v1905 = vpop.f32.mrf.mxu0
    %v1906 = vadd.f32 0.0, %v1905
    %1907 = vmatmul.bf16.gmra.mxu0 %v1867
    %v1908 = vpop.f32.mrf.mxu0
    %v1909 = vadd.f32 0.0, %v1908
    %v1910 = vpop.f32.mrf.mxu0
    %v1911 = vadd.f32 0.0, %v1910
    %1912 = vmatmul.bf16.gmra.mxu0 %v1868
    %v1913 = vpop.f32.mrf.mxu0
    %v1914 = vadd.f32 0.0, %v1913
    %v1915 = vpop.f32.mrf.mxu0
    %v1916 = vadd.f32 0.0, %v1915
    %1917 = vdwg.mxu0
    %v1918 = vadd.f32 %v587, %v1879
    %v1919 = vadd.f32 %v589, %v1881
    %v1920 = vadd.f32 %v592, %v1884
    %v1921 = vadd.f32 %v594, %v1886
    %v1922 = vadd.f32 %v597, %v1889
    %v1923 = vadd.f32 %v599, %v1891
    %v1924 = vadd.f32 %v602, %v1894
    %v1925 = vadd.f32 %v604, %v1896
    %v1926 = vadd.f32 %v607, %v1899
    %v1927 = vadd.f32 %v609, %v1901
    %v1928 = vadd.f32 %v612, %v1904
    %v1929 = vadd.f32 %v614, %v1906
    %v1930 = vadd.f32 %v617, %v1909
    %v1931 = vadd.f32 %v619, %v1911
    %v1932 = vadd.f32 %v622, %v1914
    %v1933 = vadd.f32 %v624, %v1916
    %v1934 = vmax.f32 %v1918, 0.0
    %v1935 = vmax.f32 %v1919, 0.0
    %v1936 = vmax.f32 %v1920, 0.0
    %v1937 = vmax.f32 %v1921, 0.0
    %v1938 = vmax.f32 %v1922, 0.0
    %v1939 = vmax.f32 %v1923, 0.0
    %v1940 = vmax.f32 %v1924, 0.0
    %v1941 = vmax.f32 %v1925, 0.0
    %v1942 = vmax.f32 %v1926, 0.0
    %v1943 = vmax.f32 %v1927, 0.0
    %v1944 = vmax.f32 %v1928, 0.0
    %v1945 = vmax.f32 %v1929, 0.0
    %v1946 = vmax.f32 %v1930, 0.0
    %v1947 = vmax.f32 %v1931, 0.0
    %v1948 = vmax.f32 %v1932, 0.0
    %v1949 = vmax.f32 %v1933, 0.0
    %v1950 = vmin.f32 %v1934, 1.0
    %v1951 = vmin.f32 %v1935, 1.0
    %v1952 = vmin.f32 %v1936, 1.0
    %v1953 = vmin.f32 %v1937, 1.0
    %v1954 = vmin.f32 %v1938, 1.0
    %v1955 = vmin.f32 %v1939, 1.0
    %v1956 = vmin.f32 %v1940, 1.0
    %v1957 = vmin.f32 %v1941, 1.0
    %v1958 = vmin.f32 %v1942, 1.0
    %v1959 = vmin.f32 %v1943, 1.0
    %v1960 = vmin.f32 %v1944, 1.0
    %v1961 = vmin.f32 %v1945, 1.0
    %v1962 = vmin.f32 %v1946, 1.0
    %v1963 = vmin.f32 %v1947, 1.0
    %v1964 = vmin.f32 %v1948, 1.0
    %v1965 = vmin.f32 %v1949, 1.0
    %v1966 = vpack.c.bf16 %v1846, %v1845
    %v1967 = vpack.c.bf16 %v1848, %v1847
    %v1968 = vpack.c.bf16 %v1850, %v1849
    %v1969 = vpack.c.bf16 %v1852, %v1851
    %v1970 = vpack.c.bf16 %v1854, %v1853
    %v1971 = vpack.c.bf16 %v1856, %v1855
    %v1972 = vpack.c.bf16 %v1858, %v1857
    %v1973 = vpack.c.bf16 %v1860, %v1859
    %1974 = vmatpush.bf16.msra.mxu0 %v705
    %1975 = vmatpush.bf16.msra.mxu0 %v704
    %1976 = vmatpush.bf16.msra.mxu0 %v703
    %1977 = vmatpush.bf16.msra.mxu0 %v702
    %1978 = vmatpush.bf16.msra.mxu0 %v701
    %1979 = vmatpush.bf16.msra.mxu0 %v700
    %1980 = vmatpush.bf16.msra.mxu0 %v699
    %1981 = vmatpush.bf16.msra.mxu0 %v698
    %1982 = vmatmul.bf16.gmra.mxu0 %v1966
    %v1983 = vpop.f32.mrf.mxu0
    %v1984 = vadd.f32 0.0, %v1983
    %v1985 = vpop.f32.mrf.mxu0
    %v1986 = vadd.f32 0.0, %v1985
    %1987 = vmatmul.bf16.gmra.mxu0 %v1967
    %v1988 = vpop.f32.mrf.mxu0
    %v1989 = vadd.f32 0.0, %v1988
    %v1990 = vpop.f32.mrf.mxu0
    %v1991 = vadd.f32 0.0, %v1990
    %1992 = vmatmul.bf16.gmra.mxu0 %v1968
    %v1993 = vpop.f32.mrf.mxu0
    %v1994 = vadd.f32 0.0, %v1993
    %v1995 = vpop.f32.mrf.mxu0
    %v1996 = vadd.f32 0.0, %v1995
    %1997 = vmatmul.bf16.gmra.mxu0 %v1969
    %v1998 = vpop.f32.mrf.mxu0
    %v1999 = vadd.f32 0.0, %v1998
    %v2000 = vpop.f32.mrf.mxu0
    %v2001 = vadd.f32 0.0, %v2000
    %2002 = vmatmul.bf16.gmra.mxu0 %v1970
    %v2003 = vpop.f32.mrf.mxu0
    %v2004 = vadd.f32 0.0, %v2003
    %v2005 = vpop.f32.mrf.mxu0
    %v2006 = vadd.f32 0.0, %v2005
    %2007 = vmatmul.bf16.gmra.mxu0 %v1971
    %v2008 = vpop.f32.mrf.mxu0
    %v2009 = vadd.f32 0.0, %v2008
    %v2010 = vpop.f32.mrf.mxu0
    %v2011 = vadd.f32 0.0, %v2010
    %2012 = vmatmul.bf16.gmra.mxu0 %v1972
    %v2013 = vpop.f32.mrf.mxu0
    %v2014 = vadd.f32 0.0, %v2013
    %v2015 = vpop.f32.mrf.mxu0
    %v2016 = vadd.f32 0.0, %v2015
    %2017 = vmatmul.bf16.gmra.mxu0 %v1973
    %v2018 = vpop.f32.mrf.mxu0
    %v2019 = vadd.f32 0.0, %v2018
    %v2020 = vpop.f32.mrf.mxu0
    %v2021 = vadd.f32 0.0, %v2020
    %2022 = vdwg.mxu0
    %v2023 = vadd.f32 %v361, %v1984
    %v2024 = vadd.f32 %v363, %v1986
    %v2025 = vadd.f32 %v366, %v1989
    %v2026 = vadd.f32 %v368, %v1991
    %v2027 = vadd.f32 %v371, %v1994
    %v2028 = vadd.f32 %v373, %v1996
    %v2029 = vadd.f32 %v376, %v1999
    %v2030 = vadd.f32 %v378, %v2001
    %v2031 = vadd.f32 %v381, %v2004
    %v2032 = vadd.f32 %v383, %v2006
    %v2033 = vadd.f32 %v386, %v2009
    %v2034 = vadd.f32 %v388, %v2011
    %v2035 = vadd.f32 %v391, %v2014
    %v2036 = vadd.f32 %v393, %v2016
    %v2037 = vadd.f32 %v396, %v2019
    %v2038 = vadd.f32 %v398, %v2021
    %v2039 = vmax.f32 %v2023, 0.0
    %v2040 = vmax.f32 %v2024, 0.0
    %v2041 = vmax.f32 %v2025, 0.0
    %v2042 = vmax.f32 %v2026, 0.0
    %v2043 = vmax.f32 %v2027, 0.0
    %v2044 = vmax.f32 %v2028, 0.0
    %v2045 = vmax.f32 %v2029, 0.0
    %v2046 = vmax.f32 %v2030, 0.0
    %v2047 = vmax.f32 %v2031, 0.0
    %v2048 = vmax.f32 %v2032, 0.0
    %v2049 = vmax.f32 %v2033, 0.0
    %v2050 = vmax.f32 %v2034, 0.0
    %v2051 = vmax.f32 %v2035, 0.0
    %v2052 = vmax.f32 %v2036, 0.0
    %v2053 = vmax.f32 %v2037, 0.0
    %v2054 = vmax.f32 %v2038, 0.0
    %v2055 = vmin.f32 %v2039, 1.0
    %v2056 = vmin.f32 %v2040, 1.0
    %v2057 = vmin.f32 %v2041, 1.0
    %v2058 = vmin.f32 %v2042, 1.0
    %v2059 = vmin.f32 %v2043, 1.0
    %v2060 = vmin.f32 %v2044, 1.0
    %v2061 = vmin.f32 %v2045, 1.0
    %v2062 = vmin.f32 %v2046, 1.0
    %v2063 = vmin.f32 %v2047, 1.0
    %v2064 = vmin.f32 %v2048, 1.0
    %v2065 = vmin.f32 %v2049, 1.0
    %v2066 = vmin.f32 %v2050, 1.0
    %v2067 = vmin.f32 %v2051, 1.0
    %v2068 = vmin.f32 %v2052, 1.0
    %v2069 = vmin.f32 %v2053, 1.0
    %v2070 = vmin.f32 %v2054, 1.0
    %v2071 = vpack.c.bf16 %v1951, %v1950
    %v2072 = vpack.c.bf16 %v1953, %v1952
    %v2073 = vpack.c.bf16 %v1955, %v1954
    %v2074 = vpack.c.bf16 %v1957, %v1956
    %v2075 = vpack.c.bf16 %v1959, %v1958
    %v2076 = vpack.c.bf16 %v1961, %v1960
    %v2077 = vpack.c.bf16 %v1963, %v1962
    %v2078 = vpack.c.bf16 %v1965, %v1964
    %2079 = vmatpush.bf16.msra.mxu0 %v705
    %2080 = vmatpush.bf16.msra.mxu0 %v704
    %2081 = vmatpush.bf16.msra.mxu0 %v703
    %2082 = vmatpush.bf16.msra.mxu0 %v702
    %2083 = vmatpush.bf16.msra.mxu0 %v701
    %2084 = vmatpush.bf16.msra.mxu0 %v700
    %2085 = vmatpush.bf16.msra.mxu0 %v699
    %2086 = vmatpush.bf16.msra.mxu0 %v698
    %2087 = vmatmul.bf16.gmra.mxu0 %v2071
    %v2088 = vpop.f32.mrf.mxu0
    %v2089 = vadd.f32 0.0, %v2088
    %v2090 = vpop.f32.mrf.mxu0
    %v2091 = vadd.f32 0.0, %v2090
    %2092 = vmatmul.bf16.gmra.mxu0 %v2072
    %v2093 = vpop.f32.mrf.mxu0
    %v2094 = vadd.f32 0.0, %v2093
    %v2095 = vpop.f32.mrf.mxu0
    %v2096 = vadd.f32 0.0, %v2095
    %2097 = vmatmul.bf16.gmra.mxu0 %v2073
    %v2098 = vpop.f32.mrf.mxu0
    %v2099 = vadd.f32 0.0, %v2098
    %v2100 = vpop.f32.mrf.mxu0
    %v2101 = vadd.f32 0.0, %v2100
    %2102 = vmatmul.bf16.gmra.mxu0 %v2074
    %v2103 = vpop.f32.mrf.mxu0
    %v2104 = vadd.f32 0.0, %v2103
    %v2105 = vpop.f32.mrf.mxu0
    %v2106 = vadd.f32 0.0, %v2105
    %2107 = vmatmul.bf16.gmra.mxu0 %v2075
    %v2108 = vpop.f32.mrf.mxu0
    %v2109 = vadd.f32 0.0, %v2108
    %v2110 = vpop.f32.mrf.mxu0
    %v2111 = vadd.f32 0.0, %v2110
    %2112 = vmatmul.bf16.gmra.mxu0 %v2076
    %v2113 = vpop.f32.mrf.mxu0
    %v2114 = vadd.f32 0.0, %v2113
    %v2115 = vpop.f32.mrf.mxu0
    %v2116 = vadd.f32 0.0, %v2115
    %2117 = vmatmul.bf16.gmra.mxu0 %v2077
    %v2118 = vpop.f32.mrf.mxu0
    %v2119 = vadd.f32 0.0, %v2118
    %v2120 = vpop.f32.mrf.mxu0
    %v2121 = vadd.f32 0.0, %v2120
    %2122 = vmatmul.bf16.gmra.mxu0 %v2078
    %v2123 = vpop.f32.mrf.mxu0
    %v2124 = vadd.f32 0.0, %v2123
    %v2125 = vpop.f32.mrf.mxu0
    %v2126 = vadd.f32 0.0, %v2125
    %2127 = vdwg.mxu0
    %v2128 = vadd.f32 %v587, %v2089
    %v2129 = vadd.f32 %v589, %v2091
    %v2130 = vadd.f32 %v592, %v2094
    %v2131 = vadd.f32 %v594, %v2096
    %v2132 = vadd.f32 %v597, %v2099
    %v2133 = vadd.f32 %v599, %v2101
    %v2134 = vadd.f32 %v602, %v2104
    %v2135 = vadd.f32 %v604, %v2106
    %v2136 = vadd.f32 %v607, %v2109
    %v2137 = vadd.f32 %v609, %v2111
    %v2138 = vadd.f32 %v612, %v2114
    %v2139 = vadd.f32 %v614, %v2116
    %v2140 = vadd.f32 %v617, %v2119
    %v2141 = vadd.f32 %v619, %v2121
    %v2142 = vadd.f32 %v622, %v2124
    %v2143 = vadd.f32 %v624, %v2126
    %v2144 = vmax.f32 %v2128, 0.0
    %v2145 = vmax.f32 %v2129, 0.0
    %v2146 = vmax.f32 %v2130, 0.0
    %v2147 = vmax.f32 %v2131, 0.0
    %v2148 = vmax.f32 %v2132, 0.0
    %v2149 = vmax.f32 %v2133, 0.0
    %v2150 = vmax.f32 %v2134, 0.0
    %v2151 = vmax.f32 %v2135, 0.0
    %v2152 = vmax.f32 %v2136, 0.0
    %v2153 = vmax.f32 %v2137, 0.0
    %v2154 = vmax.f32 %v2138, 0.0
    %v2155 = vmax.f32 %v2139, 0.0
    %v2156 = vmax.f32 %v2140, 0.0
    %v2157 = vmax.f32 %v2141, 0.0
    %v2158 = vmax.f32 %v2142, 0.0
    %v2159 = vmax.f32 %v2143, 0.0
    %v2160 = vmin.f32 %v2144, 1.0
    %v2161 = vmin.f32 %v2145, 1.0
    %v2162 = vmin.f32 %v2146, 1.0
    %v2163 = vmin.f32 %v2147, 1.0
    %v2164 = vmin.f32 %v2148, 1.0
    %v2165 = vmin.f32 %v2149, 1.0
    %v2166 = vmin.f32 %v2150, 1.0
    %v2167 = vmin.f32 %v2151, 1.0
    %v2168 = vmin.f32 %v2152, 1.0
    %v2169 = vmin.f32 %v2153, 1.0
    %v2170 = vmin.f32 %v2154, 1.0
    %v2171 = vmin.f32 %v2155, 1.0
    %v2172 = vmin.f32 %v2156, 1.0
    %v2173 = vmin.f32 %v2157, 1.0
    %v2174 = vmin.f32 %v2158, 1.0
    %v2175 = vmin.f32 %v2159, 1.0
    %v2176 = vpack.c.bf16 %v2056, %v2055
    %v2177 = vpack.c.bf16 %v2058, %v2057
    %v2178 = vpack.c.bf16 %v2060, %v2059
    %v2179 = vpack.c.bf16 %v2062, %v2061
    %v2180 = vpack.c.bf16 %v2064, %v2063
    %v2181 = vpack.c.bf16 %v2066, %v2065
    %v2182 = vpack.c.bf16 %v2068, %v2067
    %v2183 = vpack.c.bf16 %v2070, %v2069
    %2184 = vmatpush.bf16.msra.mxu0 %v705
    %2185 = vmatpush.bf16.msra.mxu0 %v704
    %2186 = vmatpush.bf16.msra.mxu0 %v703
    %2187 = vmatpush.bf16.msra.mxu0 %v702
    %2188 = vmatpush.bf16.msra.mxu0 %v701
    %2189 = vmatpush.bf16.msra.mxu0 %v700
    %2190 = vmatpush.bf16.msra.mxu0 %v699
    %2191 = vmatpush.bf16.msra.mxu0 %v698
    %2192 = vmatmul.bf16.gmra.mxu0 %v2176
    %v2193 = vpop.f32.mrf.mxu0
    %v2194 = vadd.f32 0.0, %v2193
    %v2195 = vpop.f32.mrf.mxu0
    %v2196 = vadd.f32 0.0, %v2195
    %2197 = vmatmul.bf16.gmra.mxu0 %v2177
    %v2198 = vpop.f32.mrf.mxu0
    %v2199 = vadd.f32 0.0, %v2198
    %v2200 = vpop.f32.mrf.mxu0
    %v2201 = vadd.f32 0.0, %v2200
    %2202 = vmatmul.bf16.gmra.mxu0 %v2178
    %v2203 = vpop.f32.mrf.mxu0
    %v2204 = vadd.f32 0.0, %v2203
    %v2205 = vpop.f32.mrf.mxu0
    %v2206 = vadd.f32 0.0, %v2205
    %2207 = vmatmul.bf16.gmra.mxu0 %v2179
    %v2208 = vpop.f32.mrf.mxu0
    %v2209 = vadd.f32 0.0, %v2208
    %v2210 = vpop.f32.mrf.mxu0
    %v2211 = vadd.f32 0.0, %v2210
    %2212 = vmatmul.bf16.gmra.mxu0 %v2180
    %v2213 = vpop.f32.mrf.mxu0
    %v2214 = vadd.f32 0.0, %v2213
    %v2215 = vpop.f32.mrf.mxu0
    %v2216 = vadd.f32 0.0, %v2215
    %2217 = vmatmul.bf16.gmra.mxu0 %v2181
    %v2218 = vpop.f32.mrf.mxu0
    %v2219 = vadd.f32 0.0, %v2218
    %v2220 = vpop.f32.mrf.mxu0
    %v2221 = vadd.f32 0.0, %v2220
    %2222 = vmatmul.bf16.gmra.mxu0 %v2182
    %v2223 = vpop.f32.mrf.mxu0
    %v2224 = vadd.f32 0.0, %v2223
    %v2225 = vpop.f32.mrf.mxu0
    %v2226 = vadd.f32 0.0, %v2225
    %2227 = vmatmul.bf16.gmra.mxu0 %v2183
    %v2228 = vpop.f32.mrf.mxu0
    %v2229 = vadd.f32 0.0, %v2228
    %v2230 = vpop.f32.mrf.mxu0
    %v2231 = vadd.f32 0.0, %v2230
    %2232 = vdwg.mxu0
    %v2233 = vadd.f32 %v361, %v2194
    %v2234 = vadd.f32 %v363, %v2196
    %v2235 = vadd.f32 %v366, %v2199
    %v2236 = vadd.f32 %v368, %v2201
    %v2237 = vadd.f32 %v371, %v2204
    %v2238 = vadd.f32 %v373, %v2206
    %v2239 = vadd.f32 %v376, %v2209
    %v2240 = vadd.f32 %v378, %v2211
    %v2241 = vadd.f32 %v381, %v2214
    %v2242 = vadd.f32 %v383, %v2216
    %v2243 = vadd.f32 %v386, %v2219
    %v2244 = vadd.f32 %v388, %v2221
    %v2245 = vadd.f32 %v391, %v2224
    %v2246 = vadd.f32 %v393, %v2226
    %v2247 = vadd.f32 %v396, %v2229
    %v2248 = vadd.f32 %v398, %v2231
    %v2249 = vmax.f32 %v2233, 0.0
    %v2250 = vmax.f32 %v2234, 0.0
    %v2251 = vmax.f32 %v2235, 0.0
    %v2252 = vmax.f32 %v2236, 0.0
    %v2253 = vmax.f32 %v2237, 0.0
    %v2254 = vmax.f32 %v2238, 0.0
    %v2255 = vmax.f32 %v2239, 0.0
    %v2256 = vmax.f32 %v2240, 0.0
    %v2257 = vmax.f32 %v2241, 0.0
    %v2258 = vmax.f32 %v2242, 0.0
    %v2259 = vmax.f32 %v2243, 0.0
    %v2260 = vmax.f32 %v2244, 0.0
    %v2261 = vmax.f32 %v2245, 0.0
    %v2262 = vmax.f32 %v2246, 0.0
    %v2263 = vmax.f32 %v2247, 0.0
    %v2264 = vmax.f32 %v2248, 0.0
    %v2265 = vmin.f32 %v2249, 1.0
    %v2266 = vmin.f32 %v2250, 1.0
    %v2267 = vmin.f32 %v2251, 1.0
    %v2268 = vmin.f32 %v2252, 1.0
    %v2269 = vmin.f32 %v2253, 1.0
    %v2270 = vmin.f32 %v2254, 1.0
    %v2271 = vmin.f32 %v2255, 1.0
    %v2272 = vmin.f32 %v2256, 1.0
    %v2273 = vmin.f32 %v2257, 1.0
    %v2274 = vmin.f32 %v2258, 1.0
    %v2275 = vmin.f32 %v2259, 1.0
    %v2276 = vmin.f32 %v2260, 1.0
    %v2277 = vmin.f32 %v2261, 1.0
    %v2278 = vmin.f32 %v2262, 1.0
    %v2279 = vmin.f32 %v2263, 1.0
    %v2280 = vmin.f32 %v2264, 1.0
    %v2281 = vpack.c.bf16 %v2161, %v2160
    %v2282 = vpack.c.bf16 %v2163, %v2162
    %v2283 = vpack.c.bf16 %v2165, %v2164
    %v2284 = vpack.c.bf16 %v2167, %v2166
    %v2285 = vpack.c.bf16 %v2169, %v2168
    %v2286 = vpack.c.bf16 %v2171, %v2170
    %v2287 = vpack.c.bf16 %v2173, %v2172
    %v2288 = vpack.c.bf16 %v2175, %v2174
    %2289 = vmatpush.bf16.msra.mxu0 %v705
    %2290 = vmatpush.bf16.msra.mxu0 %v704
    %2291 = vmatpush.bf16.msra.mxu0 %v703
    %2292 = vmatpush.bf16.msra.mxu0 %v702
    %2293 = vmatpush.bf16.msra.mxu0 %v701
    %2294 = vmatpush.bf16.msra.mxu0 %v700
    %2295 = vmatpush.bf16.msra.mxu0 %v699
    %2296 = vmatpush.bf16.msra.mxu0 %v698
    %2297 = vmatmul.bf16.gmra.mxu0 %v2281
    %v2298 = vpop.f32.mrf.mxu0
    %v2299 = vadd.f32 0.0, %v2298
    %v2300 = vpop.f32.mrf.mxu0
    %v2301 = vadd.f32 0.0, %v2300
    %2302 = vmatmul.bf16.gmra.mxu0 %v2282
    %v2303 = vpop.f32.mrf.mxu0
    %v2304 = vadd.f32 0.0, %v2303
    %v2305 = vpop.f32.mrf.mxu0
    %v2306 = vadd.f32 0.0, %v2305
    %2307 = vmatmul.bf16.gmra.mxu0 %v2283
    %v2308 = vpop.f32.mrf.mxu0
    %v2309 = vadd.f32 0.0, %v2308
    %v2310 = vpop.f32.mrf.mxu0
    %v2311 = vadd.f32 0.0, %v2310
    %2312 = vmatmul.bf16.gmra.mxu0 %v2284
    %v2313 = vpop.f32.mrf.mxu0
    %v2314 = vadd.f32 0.0, %v2313
    %v2315 = vpop.f32.mrf.mxu0
    %v2316 = vadd.f32 0.0, %v2315
    %2317 = vmatmul.bf16.gmra.mxu0 %v2285
    %v2318 = vpop.f32.mrf.mxu0
    %v2319 = vadd.f32 0.0, %v2318
    %v2320 = vpop.f32.mrf.mxu0
    %v2321 = vadd.f32 0.0, %v2320
    %2322 = vmatmul.bf16.gmra.mxu0 %v2286
    %v2323 = vpop.f32.mrf.mxu0
    %v2324 = vadd.f32 0.0, %v2323
    %v2325 = vpop.f32.mrf.mxu0
    %v2326 = vadd.f32 0.0, %v2325
    %2327 = vmatmul.bf16.gmra.mxu0 %v2287
    %v2328 = vpop.f32.mrf.mxu0
    %v2329 = vadd.f32 0.0, %v2328
    %v2330 = vpop.f32.mrf.mxu0
    %v2331 = vadd.f32 0.0, %v2330
    %2332 = vmatmul.bf16.gmra.mxu0 %v2288
    %v2333 = vpop.f32.mrf.mxu0
    %v2334 = vadd.f32 0.0, %v2333
    %v2335 = vpop.f32.mrf.mxu0
    %v2336 = vadd.f32 0.0, %v2335
    %2337 = vdwg.mxu0
    %v2338 = vadd.f32 %v587, %v2299
    %v2339 = vadd.f32 %v589, %v2301
    %v2340 = vadd.f32 %v592, %v2304
    %v2341 = vadd.f32 %v594, %v2306
    %v2342 = vadd.f32 %v597, %v2309
    %v2343 = vadd.f32 %v599, %v2311
    %v2344 = vadd.f32 %v602, %v2314
    %v2345 = vadd.f32 %v604, %v2316
    %v2346 = vadd.f32 %v607, %v2319
    %v2347 = vadd.f32 %v609, %v2321
    %v2348 = vadd.f32 %v612, %v2324
    %v2349 = vadd.f32 %v614, %v2326
    %v2350 = vadd.f32 %v617, %v2329
    %v2351 = vadd.f32 %v619, %v2331
    %v2352 = vadd.f32 %v622, %v2334
    %v2353 = vadd.f32 %v624, %v2336
    %v2354 = vmax.f32 %v2338, 0.0
    %v2355 = vmax.f32 %v2339, 0.0
    %v2356 = vmax.f32 %v2340, 0.0
    %v2357 = vmax.f32 %v2341, 0.0
    %v2358 = vmax.f32 %v2342, 0.0
    %v2359 = vmax.f32 %v2343, 0.0
    %v2360 = vmax.f32 %v2344, 0.0
    %v2361 = vmax.f32 %v2345, 0.0
    %v2362 = vmax.f32 %v2346, 0.0
    %v2363 = vmax.f32 %v2347, 0.0
    %v2364 = vmax.f32 %v2348, 0.0
    %v2365 = vmax.f32 %v2349, 0.0
    %v2366 = vmax.f32 %v2350, 0.0
    %v2367 = vmax.f32 %v2351, 0.0
    %v2368 = vmax.f32 %v2352, 0.0
    %v2369 = vmax.f32 %v2353, 0.0
    %v2370 = vmin.f32 %v2354, 1.0
    %v2371 = vmin.f32 %v2355, 1.0
    %v2372 = vmin.f32 %v2356, 1.0
    %v2373 = vmin.f32 %v2357, 1.0
    %v2374 = vmin.f32 %v2358, 1.0
    %v2375 = vmin.f32 %v2359, 1.0
    %v2376 = vmin.f32 %v2360, 1.0
    %v2377 = vmin.f32 %v2361, 1.0
    %v2378 = vmin.f32 %v2362, 1.0
    %v2379 = vmin.f32 %v2363, 1.0
    %v2380 = vmin.f32 %v2364, 1.0
    %v2381 = vmin.f32 %v2365, 1.0
    %v2382 = vmin.f32 %v2366, 1.0
    %v2383 = vmin.f32 %v2367, 1.0
    %v2384 = vmin.f32 %v2368, 1.0
    %v2385 = vmin.f32 %v2369, 1.0
    %v2386 = vpack.c.bf16 %v2266, %v2265
    %v2387 = vpack.c.bf16 %v2268, %v2267
    %v2388 = vpack.c.bf16 %v2270, %v2269
    %v2389 = vpack.c.bf16 %v2272, %v2271
    %v2390 = vpack.c.bf16 %v2274, %v2273
    %v2391 = vpack.c.bf16 %v2276, %v2275
    %v2392 = vpack.c.bf16 %v2278, %v2277
    %v2393 = vpack.c.bf16 %v2280, %v2279
    %2394 = vmatpush.bf16.msra.mxu0 %v705
    %2395 = vmatpush.bf16.msra.mxu0 %v704
    %2396 = vmatpush.bf16.msra.mxu0 %v703
    %2397 = vmatpush.bf16.msra.mxu0 %v702
    %2398 = vmatpush.bf16.msra.mxu0 %v701
    %2399 = vmatpush.bf16.msra.mxu0 %v700
    %2400 = vmatpush.bf16.msra.mxu0 %v699
    %2401 = vmatpush.bf16.msra.mxu0 %v698
    %2402 = vmatmul.bf16.gmra.mxu0 %v2386
    %v2403 = vpop.f32.mrf.mxu0
    %v2404 = vadd.f32 0.0, %v2403
    %v2405 = vpop.f32.mrf.mxu0
    %v2406 = vadd.f32 0.0, %v2405
    %2407 = vmatmul.bf16.gmra.mxu0 %v2387
    %v2408 = vpop.f32.mrf.mxu0
    %v2409 = vadd.f32 0.0, %v2408
    %v2410 = vpop.f32.mrf.mxu0
    %v2411 = vadd.f32 0.0, %v2410
    %2412 = vmatmul.bf16.gmra.mxu0 %v2388
    %v2413 = vpop.f32.mrf.mxu0
    %v2414 = vadd.f32 0.0, %v2413
    %v2415 = vpop.f32.mrf.mxu0
    %v2416 = vadd.f32 0.0, %v2415
    %2417 = vmatmul.bf16.gmra.mxu0 %v2389
    %v2418 = vpop.f32.mrf.mxu0
    %v2419 = vadd.f32 0.0, %v2418
    %v2420 = vpop.f32.mrf.mxu0
    %v2421 = vadd.f32 0.0, %v2420
    %2422 = vmatmul.bf16.gmra.mxu0 %v2390
    %v2423 = vpop.f32.mrf.mxu0
    %v2424 = vadd.f32 0.0, %v2423
    %v2425 = vpop.f32.mrf.mxu0
    %v2426 = vadd.f32 0.0, %v2425
    %2427 = vmatmul.bf16.gmra.mxu0 %v2391
    %v2428 = vpop.f32.mrf.mxu0
    %v2429 = vadd.f32 0.0, %v2428
    %v2430 = vpop.f32.mrf.mxu0
    %v2431 = vadd.f32 0.0, %v2430
    %2432 = vmatmul.bf16.gmra.mxu0 %v2392
    %v2433 = vpop.f32.mrf.mxu0
    %v2434 = vadd.f32 0.0, %v2433
    %v2435 = vpop.f32.mrf.mxu0
    %v2436 = vadd.f32 0.0, %v2435
    %2437 = vmatmul.bf16.gmra.mxu0 %v2393
    %v2438 = vpop.f32.mrf.mxu0
    %v2439 = vadd.f32 0.0, %v2438
    %v2440 = vpop.f32.mrf.mxu0
    %v2441 = vadd.f32 0.0, %v2440
    %2442 = vdwg.mxu0
    %v2443 = vadd.f32 %v361, %v2404
    %v2444 = vadd.f32 %v363, %v2406
    %v2445 = vadd.f32 %v366, %v2409
    %v2446 = vadd.f32 %v368, %v2411
    %v2447 = vadd.f32 %v371, %v2414
    %v2448 = vadd.f32 %v373, %v2416
    %v2449 = vadd.f32 %v376, %v2419
    %v2450 = vadd.f32 %v378, %v2421
    %v2451 = vadd.f32 %v381, %v2424
    %v2452 = vadd.f32 %v383, %v2426
    %v2453 = vadd.f32 %v386, %v2429
    %v2454 = vadd.f32 %v388, %v2431
    %v2455 = vadd.f32 %v391, %v2434
    %v2456 = vadd.f32 %v393, %v2436
    %v2457 = vadd.f32 %v396, %v2439
    %v2458 = vadd.f32 %v398, %v2441
    %v2459 = vmax.f32 %v2443, 0.0
    %v2460 = vmax.f32 %v2444, 0.0
    %v2461 = vmax.f32 %v2445, 0.0
    %v2462 = vmax.f32 %v2446, 0.0
    %v2463 = vmax.f32 %v2447, 0.0
    %v2464 = vmax.f32 %v2448, 0.0
    %v2465 = vmax.f32 %v2449, 0.0
    %v2466 = vmax.f32 %v2450, 0.0
    %v2467 = vmax.f32 %v2451, 0.0
    %v2468 = vmax.f32 %v2452, 0.0
    %v2469 = vmax.f32 %v2453, 0.0
    %v2470 = vmax.f32 %v2454, 0.0
    %v2471 = vmax.f32 %v2455, 0.0
    %v2472 = vmax.f32 %v2456, 0.0
    %v2473 = vmax.f32 %v2457, 0.0
    %v2474 = vmax.f32 %v2458, 0.0
    %v2475 = vmin.f32 %v2459, 1.0
    %v2476 = vmin.f32 %v2460, 1.0
    %v2477 = vmin.f32 %v2461, 1.0
    %v2478 = vmin.f32 %v2462, 1.0
    %v2479 = vmin.f32 %v2463, 1.0
    %v2480 = vmin.f32 %v2464, 1.0
    %v2481 = vmin.f32 %v2465, 1.0
    %v2482 = vmin.f32 %v2466, 1.0
    %v2483 = vmin.f32 %v2467, 1.0
    %v2484 = vmin.f32 %v2468, 1.0
    %v2485 = vmin.f32 %v2469, 1.0
    %v2486 = vmin.f32 %v2470, 1.0
    %v2487 = vmin.f32 %v2471, 1.0
    %v2488 = vmin.f32 %v2472, 1.0
    %v2489 = vmin.f32 %v2473, 1.0
    %v2490 = vmin.f32 %v2474, 1.0
    %v2491 = vpack.c.bf16 %v2371, %v2370
    %v2492 = vpack.c.bf16 %v2373, %v2372
    %v2493 = vpack.c.bf16 %v2375, %v2374
    %v2494 = vpack.c.bf16 %v2377, %v2376
    %v2495 = vpack.c.bf16 %v2379, %v2378
    %v2496 = vpack.c.bf16 %v2381, %v2380
    %v2497 = vpack.c.bf16 %v2383, %v2382
    %v2498 = vpack.c.bf16 %v2385, %v2384
    %2499 = vmatpush.bf16.msra.mxu0 %v705
    %2500 = vmatpush.bf16.msra.mxu0 %v704
    %2501 = vmatpush.bf16.msra.mxu0 %v703
    %2502 = vmatpush.bf16.msra.mxu0 %v702
    %2503 = vmatpush.bf16.msra.mxu0 %v701
    %2504 = vmatpush.bf16.msra.mxu0 %v700
    %2505 = vmatpush.bf16.msra.mxu0 %v699
    %2506 = vmatpush.bf16.msra.mxu0 %v698
    %2507 = vmatmul.bf16.gmra.mxu0 %v2491
    %v2508 = vpop.f32.mrf.mxu0
    %v2509 = vadd.f32 0.0, %v2508
    %v2510 = vpop.f32.mrf.mxu0
    %v2511 = vadd.f32 0.0, %v2510
    %2512 = vmatmul.bf16.gmra.mxu0 %v2492
    %v2513 = vpop.f32.mrf.mxu0
    %v2514 = vadd.f32 0.0, %v2513
    %v2515 = vpop.f32.mrf.mxu0
    %v2516 = vadd.f32 0.0, %v2515
    %2517 = vmatmul.bf16.gmra.mxu0 %v2493
    %v2518 = vpop.f32.mrf.mxu0
    %v2519 = vadd.f32 0.0, %v2518
    %v2520 = vpop.f32.mrf.mxu0
    %v2521 = vadd.f32 0.0, %v2520
    %2522 = vmatmul.bf16.gmra.mxu0 %v2494
    %v2523 = vpop.f32.mrf.mxu0
    %v2524 = vadd.f32 0.0, %v2523
    %v2525 = vpop.f32.mrf.mxu0
    %v2526 = vadd.f32 0.0, %v2525
    %2527 = vmatmul.bf16.gmra.mxu0 %v2495
    %v2528 = vpop.f32.mrf.mxu0
    %v2529 = vadd.f32 0.0, %v2528
    %v2530 = vpop.f32.mrf.mxu0
    %v2531 = vadd.f32 0.0, %v2530
    %2532 = vmatmul.bf16.gmra.mxu0 %v2496
    %v2533 = vpop.f32.mrf.mxu0
    %v2534 = vadd.f32 0.0, %v2533
    %v2535 = vpop.f32.mrf.mxu0
    %v2536 = vadd.f32 0.0, %v2535
    %2537 = vmatmul.bf16.gmra.mxu0 %v2497
    %v2538 = vpop.f32.mrf.mxu0
    %v2539 = vadd.f32 0.0, %v2538
    %v2540 = vpop.f32.mrf.mxu0
    %v2541 = vadd.f32 0.0, %v2540
    %2542 = vmatmul.bf16.gmra.mxu0 %v2498
    %v2543 = vpop.f32.mrf.mxu0
    %v2544 = vadd.f32 0.0, %v2543
    %v2545 = vpop.f32.mrf.mxu0
    %v2546 = vadd.f32 0.0, %v2545
    %2547 = vdwg.mxu0
    %v2548 = vadd.f32 %v587, %v2509
    %v2549 = vadd.f32 %v589, %v2511
    %v2550 = vadd.f32 %v592, %v2514
    %v2551 = vadd.f32 %v594, %v2516
    %v2552 = vadd.f32 %v597, %v2519
    %v2553 = vadd.f32 %v599, %v2521
    %v2554 = vadd.f32 %v602, %v2524
    %v2555 = vadd.f32 %v604, %v2526
    %v2556 = vadd.f32 %v607, %v2529
    %v2557 = vadd.f32 %v609, %v2531
    %v2558 = vadd.f32 %v612, %v2534
    %v2559 = vadd.f32 %v614, %v2536
    %v2560 = vadd.f32 %v617, %v2539
    %v2561 = vadd.f32 %v619, %v2541
    %v2562 = vadd.f32 %v622, %v2544
    %v2563 = vadd.f32 %v624, %v2546
    %v2564 = vmax.f32 %v2548, 0.0
    %v2565 = vmax.f32 %v2549, 0.0
    %v2566 = vmax.f32 %v2550, 0.0
    %v2567 = vmax.f32 %v2551, 0.0
    %v2568 = vmax.f32 %v2552, 0.0
    %v2569 = vmax.f32 %v2553, 0.0
    %v2570 = vmax.f32 %v2554, 0.0
    %v2571 = vmax.f32 %v2555, 0.0
    %v2572 = vmax.f32 %v2556, 0.0
    %v2573 = vmax.f32 %v2557, 0.0
    %v2574 = vmax.f32 %v2558, 0.0
    %v2575 = vmax.f32 %v2559, 0.0
    %v2576 = vmax.f32 %v2560, 0.0
    %v2577 = vmax.f32 %v2561, 0.0
    %v2578 = vmax.f32 %v2562, 0.0
    %v2579 = vmax.f32 %v2563, 0.0
    %v2580 = vmin.f32 %v2564, 1.0
    %v2581 = vmin.f32 %v2565, 1.0
    %v2582 = vmin.f32 %v2566, 1.0
    %v2583 = vmin.f32 %v2567, 1.0
    %v2584 = vmin.f32 %v2568, 1.0
    %v2585 = vmin.f32 %v2569, 1.0
    %v2586 = vmin.f32 %v2570, 1.0
    %v2587 = vmin.f32 %v2571, 1.0
    %v2588 = vmin.f32 %v2572, 1.0
    %v2589 = vmin.f32 %v2573, 1.0
    %v2590 = vmin.f32 %v2574, 1.0
    %v2591 = vmin.f32 %v2575, 1.0
    %v2592 = vmin.f32 %v2576, 1.0
    %v2593 = vmin.f32 %v2577, 1.0
    %v2594 = vmin.f32 %v2578, 1.0
    %v2595 = vmin.f32 %v2579, 1.0
    %v2596 = vpack.c.bf16 %v2476, %v2475
    %v2597 = vpack.c.bf16 %v2478, %v2477
    %v2598 = vpack.c.bf16 %v2480, %v2479
    %v2599 = vpack.c.bf16 %v2482, %v2481
    %v2600 = vpack.c.bf16 %v2484, %v2483
    %v2601 = vpack.c.bf16 %v2486, %v2485
    %v2602 = vpack.c.bf16 %v2488, %v2487
    %v2603 = vpack.c.bf16 %v2490, %v2489
    %2604 = vmatpush.bf16.msra.mxu0 %v705
    %2605 = vmatpush.bf16.msra.mxu0 %v704
    %2606 = vmatpush.bf16.msra.mxu0 %v703
    %2607 = vmatpush.bf16.msra.mxu0 %v702
    %2608 = vmatpush.bf16.msra.mxu0 %v701
    %2609 = vmatpush.bf16.msra.mxu0 %v700
    %2610 = vmatpush.bf16.msra.mxu0 %v699
    %2611 = vmatpush.bf16.msra.mxu0 %v698
    %2612 = vmatmul.bf16.gmra.mxu0 %v2596
    %v2613 = vpop.f32.mrf.mxu0
    %v2614 = vadd.f32 0.0, %v2613
    %v2615 = vpop.f32.mrf.mxu0
    %v2616 = vadd.f32 0.0, %v2615
    %2617 = vmatmul.bf16.gmra.mxu0 %v2597
    %v2618 = vpop.f32.mrf.mxu0
    %v2619 = vadd.f32 0.0, %v2618
    %v2620 = vpop.f32.mrf.mxu0
    %v2621 = vadd.f32 0.0, %v2620
    %2622 = vmatmul.bf16.gmra.mxu0 %v2598
    %v2623 = vpop.f32.mrf.mxu0
    %v2624 = vadd.f32 0.0, %v2623
    %v2625 = vpop.f32.mrf.mxu0
    %v2626 = vadd.f32 0.0, %v2625
    %2627 = vmatmul.bf16.gmra.mxu0 %v2599
    %v2628 = vpop.f32.mrf.mxu0
    %v2629 = vadd.f32 0.0, %v2628
    %v2630 = vpop.f32.mrf.mxu0
    %v2631 = vadd.f32 0.0, %v2630
    %2632 = vmatmul.bf16.gmra.mxu0 %v2600
    %v2633 = vpop.f32.mrf.mxu0
    %v2634 = vadd.f32 0.0, %v2633
    %v2635 = vpop.f32.mrf.mxu0
    %v2636 = vadd.f32 0.0, %v2635
    %2637 = vmatmul.bf16.gmra.mxu0 %v2601
    %v2638 = vpop.f32.mrf.mxu0
    %v2639 = vadd.f32 0.0, %v2638
    %v2640 = vpop.f32.mrf.mxu0
    %v2641 = vadd.f32 0.0, %v2640
    %2642 = vmatmul.bf16.gmra.mxu0 %v2602
    %v2643 = vpop.f32.mrf.mxu0
    %v2644 = vadd.f32 0.0, %v2643
    %v2645 = vpop.f32.mrf.mxu0
    %v2646 = vadd.f32 0.0, %v2645
    %2647 = vmatmul.bf16.gmra.mxu0 %v2603
    %v2648 = vpop.f32.mrf.mxu0
    %v2649 = vadd.f32 0.0, %v2648
    %v2650 = vpop.f32.mrf.mxu0
    %v2651 = vadd.f32 0.0, %v2650
    %2652 = vdwg.mxu0
    %v2653 = vadd.f32 %v361, %v2614
    %v2654 = vadd.f32 %v363, %v2616
    %v2655 = vadd.f32 %v366, %v2619
    %v2656 = vadd.f32 %v368, %v2621
    %v2657 = vadd.f32 %v371, %v2624
    %v2658 = vadd.f32 %v373, %v2626
    %v2659 = vadd.f32 %v376, %v2629
    %v2660 = vadd.f32 %v378, %v2631
    %v2661 = vadd.f32 %v381, %v2634
    %v2662 = vadd.f32 %v383, %v2636
    %v2663 = vadd.f32 %v386, %v2639
    %v2664 = vadd.f32 %v388, %v2641
    %v2665 = vadd.f32 %v391, %v2644
    %v2666 = vadd.f32 %v393, %v2646
    %v2667 = vadd.f32 %v396, %v2649
    %v2668 = vadd.f32 %v398, %v2651
    %v2669 = vmax.f32 %v2653, 0.0
    %v2670 = vmax.f32 %v2654, 0.0
    %v2671 = vmax.f32 %v2655, 0.0
    %v2672 = vmax.f32 %v2656, 0.0
    %v2673 = vmax.f32 %v2657, 0.0
    %v2674 = vmax.f32 %v2658, 0.0
    %v2675 = vmax.f32 %v2659, 0.0
    %v2676 = vmax.f32 %v2660, 0.0
    %v2677 = vmax.f32 %v2661, 0.0
    %v2678 = vmax.f32 %v2662, 0.0
    %v2679 = vmax.f32 %v2663, 0.0
    %v2680 = vmax.f32 %v2664, 0.0
    %v2681 = vmax.f32 %v2665, 0.0
    %v2682 = vmax.f32 %v2666, 0.0
    %v2683 = vmax.f32 %v2667, 0.0
    %v2684 = vmax.f32 %v2668, 0.0
    %v2685 = vmin.f32 %v2669, 1.0
    %v2686 = vmin.f32 %v2670, 1.0
    %v2687 = vmin.f32 %v2671, 1.0
    %v2688 = vmin.f32 %v2672, 1.0
    %v2689 = vmin.f32 %v2673, 1.0
    %v2690 = vmin.f32 %v2674, 1.0
    %v2691 = vmin.f32 %v2675, 1.0
    %v2692 = vmin.f32 %v2676, 1.0
    %v2693 = vmin.f32 %v2677, 1.0
    %v2694 = vmin.f32 %v2678, 1.0
    %v2695 = vmin.f32 %v2679, 1.0
    %v2696 = vmin.f32 %v2680, 1.0
    %v2697 = vmin.f32 %v2681, 1.0
    %v2698 = vmin.f32 %v2682, 1.0
    %v2699 = vmin.f32 %v2683, 1.0
    %v2700 = vmin.f32 %v2684, 1.0
    %v2701 = vpack.c.bf16 %v2581, %v2580
    %v2702 = vpack.c.bf16 %v2583, %v2582
    %v2703 = vpack.c.bf16 %v2585, %v2584
    %v2704 = vpack.c.bf16 %v2587, %v2586
    %v2705 = vpack.c.bf16 %v2589, %v2588
    %v2706 = vpack.c.bf16 %v2591, %v2590
    %v2707 = vpack.c.bf16 %v2593, %v2592
    %v2708 = vpack.c.bf16 %v2595, %v2594
    %2709 = vmatpush.bf16.msra.mxu0 %v705
    %2710 = vmatpush.bf16.msra.mxu0 %v704
    %2711 = vmatpush.bf16.msra.mxu0 %v703
    %2712 = vmatpush.bf16.msra.mxu0 %v702
    %2713 = vmatpush.bf16.msra.mxu0 %v701
    %2714 = vmatpush.bf16.msra.mxu0 %v700
    %2715 = vmatpush.bf16.msra.mxu0 %v699
    %2716 = vmatpush.bf16.msra.mxu0 %v698
    %2717 = vmatmul.bf16.gmra.mxu0 %v2701
    %v2718 = vpop.f32.mrf.mxu0
    %v2719 = vadd.f32 0.0, %v2718
    %v2720 = vpop.f32.mrf.mxu0
    %v2721 = vadd.f32 0.0, %v2720
    %2722 = vmatmul.bf16.gmra.mxu0 %v2702
    %v2723 = vpop.f32.mrf.mxu0
    %v2724 = vadd.f32 0.0, %v2723
    %v2725 = vpop.f32.mrf.mxu0
    %v2726 = vadd.f32 0.0, %v2725
    %2727 = vmatmul.bf16.gmra.mxu0 %v2703
    %v2728 = vpop.f32.mrf.mxu0
    %v2729 = vadd.f32 0.0, %v2728
    %v2730 = vpop.f32.mrf.mxu0
    %v2731 = vadd.f32 0.0, %v2730
    %2732 = vmatmul.bf16.gmra.mxu0 %v2704
    %v2733 = vpop.f32.mrf.mxu0
    %v2734 = vadd.f32 0.0, %v2733
    %v2735 = vpop.f32.mrf.mxu0
    %v2736 = vadd.f32 0.0, %v2735
    %2737 = vmatmul.bf16.gmra.mxu0 %v2705
    %v2738 = vpop.f32.mrf.mxu0
    %v2739 = vadd.f32 0.0, %v2738
    %v2740 = vpop.f32.mrf.mxu0
    %v2741 = vadd.f32 0.0, %v2740
    %2742 = vmatmul.bf16.gmra.mxu0 %v2706
    %v2743 = vpop.f32.mrf.mxu0
    %v2744 = vadd.f32 0.0, %v2743
    %v2745 = vpop.f32.mrf.mxu0
    %v2746 = vadd.f32 0.0, %v2745
    %2747 = vmatmul.bf16.gmra.mxu0 %v2707
    %v2748 = vpop.f32.mrf.mxu0
    %v2749 = vadd.f32 0.0, %v2748
    %v2750 = vpop.f32.mrf.mxu0
    %v2751 = vadd.f32 0.0, %v2750
    %2752 = vmatmul.bf16.gmra.mxu0 %v2708
    %v2753 = vpop.f32.mrf.mxu0
    %v2754 = vadd.f32 0.0, %v2753
    %v2755 = vpop.f32.mrf.mxu0
    %v2756 = vadd.f32 0.0, %v2755
    %2757 = vdwg.mxu0
    %v2758 = vadd.f32 %v587, %v2719
    %v2759 = vadd.f32 %v589, %v2721
    %v2760 = vadd.f32 %v592, %v2724
    %v2761 = vadd.f32 %v594, %v2726
    %v2762 = vadd.f32 %v597, %v2729
    %v2763 = vadd.f32 %v599, %v2731
    %v2764 = vadd.f32 %v602, %v2734
    %v2765 = vadd.f32 %v604, %v2736
    %v2766 = vadd.f32 %v607, %v2739
    %v2767 = vadd.f32 %v609, %v2741
    %v2768 = vadd.f32 %v612, %v2744
    %v2769 = vadd.f32 %v614, %v2746
    %v2770 = vadd.f32 %v617, %v2749
    %v2771 = vadd.f32 %v619, %v2751
    %v2772 = vadd.f32 %v622, %v2754
    %v2773 = vadd.f32 %v624, %v2756
    %v2774 = vmax.f32 %v2758, 0.0
    %v2775 = vmax.f32 %v2759, 0.0
    %v2776 = vmax.f32 %v2760, 0.0
    %v2777 = vmax.f32 %v2761, 0.0
    %v2778 = vmax.f32 %v2762, 0.0
    %v2779 = vmax.f32 %v2763, 0.0
    %v2780 = vmax.f32 %v2764, 0.0
    %v2781 = vmax.f32 %v2765, 0.0
    %v2782 = vmax.f32 %v2766, 0.0
    %v2783 = vmax.f32 %v2767, 0.0
    %v2784 = vmax.f32 %v2768, 0.0
    %v2785 = vmax.f32 %v2769, 0.0
    %v2786 = vmax.f32 %v2770, 0.0
    %v2787 = vmax.f32 %v2771, 0.0
    %v2788 = vmax.f32 %v2772, 0.0
    %v2789 = vmax.f32 %v2773, 0.0
    %v2790 = vmin.f32 %v2774, 1.0
    %v2791 = vmin.f32 %v2775, 1.0
    %v2792 = vmin.f32 %v2776, 1.0
    %v2793 = vmin.f32 %v2777, 1.0
    %v2794 = vmin.f32 %v2778, 1.0
    %v2795 = vmin.f32 %v2779, 1.0
    %v2796 = vmin.f32 %v2780, 1.0
    %v2797 = vmin.f32 %v2781, 1.0
    %v2798 = vmin.f32 %v2782, 1.0
    %v2799 = vmin.f32 %v2783, 1.0
    %v2800 = vmin.f32 %v2784, 1.0
    %v2801 = vmin.f32 %v2785, 1.0
    %v2802 = vmin.f32 %v2786, 1.0
    %v2803 = vmin.f32 %v2787, 1.0
    %v2804 = vmin.f32 %v2788, 1.0
    %v2805 = vmin.f32 %v2789, 1.0
    %2806 = vst [vmem:[#allocation8] sm:$0xff] %v2685
    %2807 = vst [vmem:[#allocation8 + $0x8] sm:$0xff] %v2686
    %2808 = vst [vmem:[#allocation8 + $0x10] sm:$0xff] %v2687
    %2809 = vst [vmem:[#allocation8 + $0x18] sm:$0xff] %v2688
    %2810 = vst [vmem:[#allocation8 + $0x20] sm:$0xff] %v2689
    %2811 = vst [vmem:[#allocation8 + $0x28] sm:$0xff] %v2690
    %2812 = vst [vmem:[#allocation8 + $0x30] sm:$0xff] %v2691
    %2813 = vst [vmem:[#allocation8 + $0x38] sm:$0xff] %v2692
    %2814 = vst [vmem:[#allocation8 + $0x40] sm:$0xff] %v2693
    %2815 = vst [vmem:[#allocation8 + $0x48] sm:$0xff] %v2694
    %2816 = vst [vmem:[#allocation8 + $0x50] sm:$0xff] %v2695
    %2817 = vst [vmem:[#allocation8 + $0x58] sm:$0xff] %v2696
    %2818 = vst [vmem:[#allocation8 + $0x60] sm:$0xff] %v2697
    %2819 = vst [vmem:[#allocation8 + $0x68] sm:$0xff] %v2698
    %2820 = vst [vmem:[#allocation8 + $0x70] sm:$0xff] %v2699
    %2821 = vst [vmem:[#allocation8 + $0x78] sm:$0xff] %v2700
    %2822 = vst [vmem:[#allocation8 + $0x80] sm:$0xff] %v2790
    %2823 = vst [vmem:[#allocation8 + $0x88] sm:$0xff] %v2791
    %2824 = vst [vmem:[#allocation8 + $0x90] sm:$0xff] %v2792
    %2825 = vst [vmem:[#allocation8 + $0x98] sm:$0xff] %v2793
    %2826 = vst [vmem:[#allocation8 + $0xa0] sm:$0xff] %v2794
    %2827 = vst [vmem:[#allocation8 + $0xa8] sm:$0xff] %v2795
    %2828 = vst [vmem:[#allocation8 + $0xb0] sm:$0xff] %v2796
    %2829 = vst [vmem:[#allocation8 + $0xb8] sm:$0xff] %v2797
    %2830 = vst [vmem:[#allocation8 + $0xc0] sm:$0xff] %v2798
    %2831 = vst [vmem:[#allocation8 + $0xc8] sm:$0xff] %v2799
    %2832 = vst [vmem:[#allocation8 + $0xd0] sm:$0xff] %v2800
    %2833 = vst [vmem:[#allocation8 + $0xd8] sm:$0xff] %v2801
    %2834 = vst [vmem:[#allocation8 + $0xe0] sm:$0xff] %v2802
    %2835 = vst [vmem:[#allocation8 + $0xe8] sm:$0xff] %v2803
    %2836 = vst [vmem:[#allocation8 + $0xf0] sm:$0xff] %v2804
    %2837 = vst [vmem:[#allocation8 + $0xf8] sm:$0xff] %v2805
    // Predicated region
    $region26: #{tpu_custom_call.1} parent=1 // pred_check
      _
    $region27: #{tpu_custom_call.1} parent=1 // pred_check_branch
      %2839 = sbr.rel (0) target = $region29
    $region28: #{tpu_custom_call.1} parent=1 // pred_region
      %2841 = vsyncadd [#allocation4], 0
      %s2842 = sshll.u32 [#allocation8], 4
      %s2843 = int_to_ptr.vmem [resolvable:$true] %s2842
      %s2844 = sshll.u32 %s3, 4
      %s2845 = int_to_ptr.hbm [resolvable:$true] %s2844
      %2850 = dma.vmem_to_hbm [thread:$0]  %s2843, 4096, %s2845, [#allocation4], 128, 128, 8
    $region29: #{tpu_custom_call.1} parent=1 // pred_fallthru
      _
    // Predicated region
    $region30: #{tpu_custom_call.1} parent=1 // pred_check
      _
    $region31: #{tpu_custom_call.1} parent=1 // pred_check_branch
      %2852 = sbr.rel (0) target = $region33
    $region32: #{tpu_custom_call.1} parent=1 // pred_region
      %2854 = dma.done [#allocation4], 4096
    $region33: #{tpu_custom_call.1} parent=1 // pred_fallthru
      _
    %2855 = vsyncpa [#allocation3], 1
    %2856 = vsyncpa [#allocation6], 1
    %2857 = vsyncpa [#allocation4], 1

</llo_original>
